<compile_context>
chip_gen: v5e
topology: v5e:2x2
jax: 0.10.0
libtpu: 0.0.40
codegen_flags: <defaults>
</compile_context>

<pallas_src>
import functools

import jax
import jax.numpy as jnp
from jax import lax
from jax.experimental import pallas as pl
from jax.experimental.pallas import tpu as pltpu

EPS = 1e-5
LANE = 128

# bf16 storage for all HBM intermediates + bf16 MXU matmuls (f32 accumulate,
# f32 elementwise/BN math).
MATMUL_DTYPE = jnp.bfloat16


def _round_up(x, m):
    return (x + m - 1) // m * m


def _vmem_limit_bytes():
    # Scoped-VMEM budget: ~half of physical per-core VMEM, capped.
    # v5e/v6e (128 MiB physical) -> 64 MiB; v7x (64 MiB/TC) -> 32 MiB.
    try:
        cap = int(pltpu.get_tpu_info().vmem_capacity_bytes)
        return max(32 * 1024 * 1024, min(cap // 2, 96 * 1024 * 1024))
    except Exception:
        return 32 * 1024 * 1024


def _mm(a, b):
    return jnp.dot(a.astype(MATMUL_DTYPE), b.astype(MATMUL_DTYPE),
                   preferred_element_type=jnp.float32)


def _row_stats(y):
    # Per-channel [sum | sum-of-squares] over the rows of this tile,
    # lane-dense: (1, 1, 2*C).  y is the f32 accumulator.
    s = jnp.sum(y, axis=0, keepdims=True)
    ss = jnp.sum(y * y, axis=0, keepdims=True)
    return jnp.concatenate([s, ss], axis=-1)[None]


# --------------------------- kernels ---------------------------------------

def conv1_kernel(x_ref, w_ref, y_ref, st_ref):
    # conv1 (1x1) + BN1 partial stats for this row tile.
    y = _mm(x_ref[...], w_ref[...])                       # f32 accumulator
    y_ref[...] = y.astype(y_ref.dtype)                    # bf16 to HBM
    st_ref[...] = _row_stats(y)


def conv2_kernel(H, W, y1_ref, sc_ref, sh_ref, w_ref, y2_ref, st_ref, pad_scr):
    # bn1 + relu, then 3x3 conv (stride=1, pad=1) as 9 accumulated per-tap
    # matmuls against static shifted windows of a zero-bordered VMEM scratch,
    # + BN2 partial stats.  Each grid step owns whole images, so the halo is
    # entirely the zero border of the scratch.
    nb = y1_ref.shape[0]
    P = y1_ref.shape[-1]
    sc = sc_ref[...].reshape(1, 1, 1, P)
    sh = sh_ref[...].reshape(1, 1, 1, P)
    a = jnp.maximum(y1_ref[...].astype(jnp.float32) * sc + sh, 0.0)
    a = a.astype(pad_scr.dtype)                            # (nb, H, W, P) bf16

    # Zero only the 1-pixel border (cheap, redone every step so it is
    # megacore-safe); the interior is fully overwritten each step.
    zrow = jnp.zeros((nb, 1, W + 2, P), pad_scr.dtype)
    zcol = jnp.zeros((nb, H + 2, 1, P), pad_scr.dtype)
    pad_scr[:, 0:1, :, :] = zrow
    pad_scr[:, H + 1:H + 2, :, :] = zrow
    pad_scr[:, :, 0:1, :] = zcol
    pad_scr[:, :, W + 1:W + 2, :] = zcol
    pad_scr[:, 1:H + 1, 1:W + 1, :] = a

    # 9 accumulated taps: K = P per matmul (matches v5e's 128-wide MXU; the
    # live temp stays ~1x the activation tile instead of 9x).
    acc = jnp.zeros((nb * H * W, P), jnp.float32)
    for t in range(9):
        dy, dx = t // 3, t % 3
        tap = pad_scr[:, dy:dy + H, dx:dx + W, :].reshape(nb * H * W, P)
        acc = acc + jnp.dot(tap, w_ref[t * P:(t + 1) * P, :],
                            preferred_element_type=jnp.float32)

    y2_ref[...] = acc.reshape(nb, H, W, P).astype(y2_ref.dtype)
    st_ref[...] = _row_stats(acc)


def conv3_kernel(y2_ref, sc_ref, sh_ref, w_ref, y3_ref, st_ref):
    # bn2 + relu, conv3 (1x1), + BN3 partial stats.
    a = jnp.maximum(y2_ref[...].astype(jnp.float32) * sc_ref[...]
                    + sh_ref[...], 0.0)
    y3 = _mm(a, w_ref[...])
    y3_ref[...] = y3.astype(y3_ref.dtype)
    st_ref[...] = _row_stats(y3)


def out_kernel(y3_ref, sc_ref, sh_ref, x_ref, o_ref):
    # bn3 + residual add + relu.  (Identity shortcut `+ 0.0` is a no-op.)
    o_ref[...] = jnp.maximum(
        y3_ref[...].astype(jnp.float32) * sc_ref[...] + sh_ref[...]
        + x_ref[...].astype(jnp.float32), 0.0)


# --------------------------- wrapper ----------------------------------------

def _bn_scale_shift(partials, count, gamma, beta):
    # partials: (tiles, 1, 2*C) lane-dense per-tile [sum | sum-of-squares].
    # Accumulation is kept in f32 (partial sums are f32 kernel outputs).
    p = jnp.sum(partials[:, 0, :], axis=0)                 # (2*C,)
    C = gamma.shape[0]
    s, ss = p[:C], p[C:]
    mean = s / count
    var = jnp.maximum(ss / count - mean * mean, 0.0)       # biased (training BN)
    rstd = lax.rsqrt(var + EPS)
    scale = gamma * rstd
    shift = beta - mean * scale
    return scale.reshape(1, -1), shift.reshape(1, -1)


def _pick_row_tile(M, target=2048):
    # Largest divisor of M that is a multiple of 8 and <= target.  Bigger
    # tiles keep the mem-bound stages near the HBM roofline.
    t = min(M, target)
    for cand in range(t, 7, -1):
        if M % cand == 0 and cand % 8 == 0:
            return cand
    return M


def bottleneck_forward(x_nchw, w1, w2_hwio, w3, g1, b1, g2, b2, g3, b3,
                       *, row_tile=None, batch_tile=1):
    N, Cin, H, W = x_nchw.shape
    P = w1.shape[1]
    Cout = w3.shape[1]
    assert Cout == Cin, "downsample=None requires inplanes == planes * 4"
    M = N * H * W

    if row_tile is None:
        row_tile = _pick_row_tile(M)
    assert M % row_tile == 0 and row_tile % 8 == 0
    assert N % batch_tile == 0
    n_rt = M // row_tile
    n_bt = N // batch_tile

    cin_p = _round_up(Cin, LANE)
    p_p = _round_up(P, LANE)
    cout_p = _round_up(Cout, LANE)          # == cin_p since Cout == Cin

    # NCHW -> NHWC -> (M, C), channels padded to a lane multiple, stored bf16
    # (one copy serves conv1 and the stage-4 residual add).
    x2 = jnp.transpose(x_nchw, (0, 2, 3, 1)).reshape(M, Cin)
    x2p = jnp.pad(x2, ((0, 0), (0, cin_p - Cin))).astype(MATMUL_DTYPE)

    w1p = jnp.pad(w1, ((0, cin_p - Cin), (0, p_p - P))).astype(MATMUL_DTYPE)
    w2p = jnp.pad(w2_hwio,
                  ((0, 0), (0, 0), (0, p_p - P), (0, p_p - P))
                  ).reshape(9 * p_p, p_p).astype(MATMUL_DTYPE)
    w3p = jnp.pad(w3, ((0, p_p - P), (0, cout_p - Cout))).astype(MATMUL_DTYPE)

    # gamma/beta padded with zeros so padded channels stay exactly zero.
    g1p = jnp.pad(g1, (0, p_p - P)); b1p = jnp.pad(b1, (0, p_p - P))
    g2p = jnp.pad(g2, (0, p_p - P)); b2p = jnp.pad(b2, (0, p_p - P))
    g3p = jnp.pad(g3, (0, cout_p - Cout)); b3p = jnp.pad(b3, (0, cout_p - Cout))

    cparams = pltpu.CompilerParams(dimension_semantics=("parallel",),
                                   vmem_limit_bytes=_vmem_limit_bytes())

    # ---- stage 1: conv1 (1x1) + BN1 partial stats ---------------------------
    y1, st1 = pl.pallas_call(
        conv1_kernel,
        grid=(n_rt,),
        in_specs=[pl.BlockSpec((row_tile, cin_p), lambda i: (i, 0)),
                  pl.BlockSpec((cin_p, p_p), lambda i: (0, 0))],
        out_specs=(pl.BlockSpec((row_tile, p_p), lambda i: (i, 0)),
                   pl.BlockSpec((1, 1, 2 * p_p), lambda i: (i, 0, 0))),
        out_shape=(jax.ShapeDtypeStruct((M, p_p), MATMUL_DTYPE),
                   jax.ShapeDtypeStruct((n_rt, 1, 2 * p_p), jnp.float32)),
        compiler_params=cparams,
    )(x2p, w1p)
    sc1, sh1 = _bn_scale_shift(st1, M, g1p, b1p)

    # ---- stage 2: bn1+relu, conv2 (3x3, 9-tap accumulate), BN2 stats --------
    y1_4d = y1.reshape(N, H, W, p_p)
    y2_4d, st2 = pl.pallas_call(
        functools.partial(conv2_kernel, H, W),
        grid=(n_bt,),
        in_specs=[pl.BlockSpec((batch_tile, H, W, p_p),
                               lambda i: (i, 0, 0, 0)),
                  pl.BlockSpec((1, p_p), lambda i: (0, 0)),
                  pl.BlockSpec((1, p_p), lambda i: (0, 0)),
                  pl.BlockSpec((9 * p_p, p_p), lambda i: (0, 0))],
        out_specs=(pl.BlockSpec((batch_tile, H, W, p_p),
                                lambda i: (i, 0, 0, 0)),
                   pl.BlockSpec((1, 1, 2 * p_p), lambda i: (i, 0, 0))),
        out_shape=(jax.ShapeDtypeStruct((N, H, W, p_p), MATMUL_DTYPE),
                   jax.ShapeDtypeStruct((n_bt, 1, 2 * p_p), jnp.float32)),
        scratch_shapes=[pltpu.VMEM((batch_tile, H + 2, W + 2, p_p),
                                   MATMUL_DTYPE)],
        compiler_params=cparams,
    )(y1_4d, sc1, sh1, w2p)
    sc2, sh2 = _bn_scale_shift(st2, M, g2p, b2p)

    # ---- stage 3: bn2+relu, conv3 (1x1), BN3 partial stats ------------------
    y2 = y2_4d.reshape(M, p_p)
    y3, st3 = pl.pallas_call(
        conv3_kernel,
        grid=(n_rt,),
        in_specs=[pl.BlockSpec((row_tile, p_p), lambda i: (i, 0)),
                  pl.BlockSpec((1, p_p), lambda i: (0, 0)),
                  pl.BlockSpec((1, p_p), lambda i: (0, 0)),
                  pl.BlockSpec((p_p, cout_p), lambda i: (0, 0))],
        out_specs=(pl.BlockSpec((row_tile, cout_p), lambda i: (i, 0)),
                   pl.BlockSpec((1, 1, 2 * cout_p), lambda i: (i, 0, 0))),
        out_shape=(jax.ShapeDtypeStruct((M, cout_p), MATMUL_DTYPE),
                   jax.ShapeDtypeStruct((n_rt, 1, 2 * cout_p), jnp.float32)),
        compiler_params=cparams,
    )(y2, sc2, sh2, w3p)
    sc3, sh3 = _bn_scale_shift(st3, M, g3p, b3p)

    # ---- stage 4: bn3 + residual add + relu ---------------------------------
    out = pl.pallas_call(
        out_kernel,
        grid=(n_rt,),
        in_specs=[pl.BlockSpec((row_tile, cout_p), lambda i: (i, 0)),
                  pl.BlockSpec((1, cout_p), lambda i: (0, 0)),
                  pl.BlockSpec((1, cout_p), lambda i: (0, 0)),
                  pl.BlockSpec((row_tile, cin_p), lambda i: (i, 0))],
        out_specs=pl.BlockSpec((row_tile, cout_p), lambda i: (i, 0)),
        out_shape=jax.ShapeDtypeStruct((M, cout_p), jnp.float32),
        compiler_params=cparams,
    )(y3, sc3, sh3, x2p)

    out = out[:, :Cout].reshape(N, H, W, Cout)
    return jnp.transpose(out, (0, 3, 1, 2))              # back to NCHW


# --------------------------- reference --------------------------------------

def reference_forward(x_nchw, w1, w2_hwio, w3, g1, b1, g2, b2, g3, b3):
    x = jnp.transpose(x_nchw, (0, 2, 3, 1))              # NHWC

    def bn(y, g, b):
        mean = jnp.mean(y, axis=(0, 1, 2), keepdims=True)
        var = jnp.mean((y - mean) ** 2, axis=(0, 1, 2), keepdims=True)
        return ((y - mean) * lax.rsqrt(var + EPS)
                * g.reshape(1, 1, 1, -1) + b.reshape(1, 1, 1, -1))

    dn = ('NHWC', 'HWIO', 'NHWC')
    y = lax.conv_general_dilated(x, w1.reshape(1, 1, *w1.shape), (1, 1),
                                 'VALID', dimension_numbers=dn)
    y = jnp.maximum(bn(y, g1, b1), 0.0)
    y = lax.conv_general_dilated(y, w2_hwio, (1, 1), ((1, 1), (1, 1)),
                                 dimension_numbers=dn)
    y = jnp.maximum(bn(y, g2, b2), 0.0)
    y = lax.conv_general_dilated(y, w3.reshape(1, 1, *w3.shape), (1, 1),
                                 'VALID', dimension_numbers=dn)
    y = bn(y, g3, b3)
    y = jnp.maximum(y + x, 0.0)
    return jnp.transpose(y, (0, 3, 1, 2))


if __name__ == "__main__":
    key = jax.random.PRNGKey(0)
    N, H, W = 2, 16, 16
    planes = 4
    inplanes = planes * 4          # 16: required so the residual add is valid

    ks = jax.random.split(key, 4)
    x = jax.random.normal(ks[0], (N, inplanes, H, W), jnp.float32)   # NCHW

    # conv weights (deterministic kaiming-ish init); BN: gamma=1, beta=0
    w1 = jax.random.normal(ks[1], (inplanes, planes), jnp.float32) * (2.0 / inplanes) ** 0.5
    w2 = jax.random.normal(ks[2], (3, 3, planes, planes), jnp.float32) * (2.0 / (9 * planes)) ** 0.5
    w3 = jax.random.normal(ks[3], (planes, planes * 4), jnp.float32) * (2.0 / planes) ** 0.5
    g1 = jnp.ones((planes,), jnp.float32); b1 = jnp.zeros((planes,), jnp.float32)
    g2 = jnp.ones((planes,), jnp.float32); b2 = jnp.zeros((planes,), jnp.float32)
    g3 = jnp.ones((planes * 4,), jnp.float32); b3 = jnp.zeros((planes * 4,), jnp.float32)

    # row_tile=128 -> 4 row-tiles: exercises real multi-step pipelined grids
    # at this tiny test shape (the default target is 2048 rows for real sizes).
    fwd = jax.jit(functools.partial(bottleneck_forward, row_tile=128))
    out = jax.block_until_ready(fwd(x, w1, w2, w3, g1, b1, g2, b2, g3, b3))
    assert out.shape == (N, inplanes, H, W)

    ref = reference_forward(x, w1, w2, w3, g1, b1, g2, b2, g3, b3)
    # bf16 intermediates/matmuls vs an f32 reference: scaled-abs error check.
    err = float(jnp.max(jnp.abs(out - ref) / (jnp.abs(ref) + 1.0)))
    assert err < 5e-2, f"mismatch vs reference: {err}"

    print("KERNEL_OK")
</pallas_src>

<mosaic_0001>
module attributes {stable_mosaic.version = 11 : i64} {
  func.func @conv1_kernel(%arg0: i32, %arg1: memref<128x128xbf16, #tpu.memory_space<vmem>>, %arg2: memref<128x128xbf16, #tpu.memory_space<vmem>>, %arg3: memref<128x128xbf16, #tpu.memory_space<vmem>>, %arg4: memref<1x1x256xf32, #tpu.memory_space<vmem>>) attributes {dimension_semantics = [#tpu.dimension_semantics<parallel>], iteration_bounds = array<i64: 4>, scalar_prefetch = 0 : i64, scratch_operands = 0 : i64, tpu.core_type = #tpu.core_type<tc>, window_params = [{transform_indices = @transform_0, window_bounds = array<i64: 128, 128>}, {pipeline_mode = #tpu.pipeline_mode<synchronous>, transform_indices = @transform_1, window_bounds = array<i64: 128, 128>}, {transform_indices = @transform_2, window_bounds = array<i64: 128, 128>}, {transform_indices = @transform_3, window_bounds = array<i64: 1, 1, 256>}]} {
    %c0 = arith.constant 0 : index
    %c0_0 = arith.constant 0 : index
    %0 = vector.load %arg1[%c0, %c0_0] : memref<128x128xbf16, #tpu.memory_space<vmem>>, vector<128x128xbf16>
    %c0_1 = arith.constant 0 : index
    %c0_2 = arith.constant 0 : index
    %1 = vector.load %arg2[%c0_1, %c0_2] : memref<128x128xbf16, #tpu.memory_space<vmem>>, vector<128x128xbf16>
    %cst = arith.constant dense<0.000000e+00> : vector<128x128xf32>
    %2 = tpu.matmul %0, %1, %cst {dimension_numbers = #tpu.dot_dimension_numbers<[1], [0], [0], [1], [0, 0, 1, 1], [], []>} : vector<128x128xbf16>, vector<128x128xbf16>, vector<128x128xf32> -> vector<128x128xf32>
    %3 = arith.truncf %2 : vector<128x128xf32> to vector<128x128xbf16>
    %c0_3 = arith.constant 0 : index
    %c0_4 = arith.constant 0 : index
    %4 = vector.load %arg3[%c0_3, %c0_4] : memref<128x128xbf16, #tpu.memory_space<vmem>>, vector<128x128xbf16>
    tpu.vector_store %arg3[%c0_3, %c0_4], %3 {strides = array<i32>} : memref<128x128xbf16, #tpu.memory_space<vmem>>, vector<128x128xbf16>,
    %cst_5 = arith.constant dense<0.000000e+00> : vector<128xf32>
    %5 = vector.multi_reduction <add>, %2, %cst_5 [0] : vector<128x128xf32> to vector<128xf32>
    %6 = vector.shape_cast %5 : vector<128xf32> to vector<1x128xf32>
    %7 = arith.mulf %2, %2 : vector<128x128xf32>
    %cst_6 = arith.constant dense<0.000000e+00> : vector<128xf32>
    %8 = vector.multi_reduction <add>, %7, %cst_6 [0] : vector<128x128xf32> to vector<128xf32>
    %9 = vector.shape_cast %8 : vector<128xf32> to vector<1x128xf32>
    %10 = tpu.concatenate %6, %9 in 1 : vector<1x128xf32>, vector<1x128xf32> -> vector<1x256xf32>
    %11 = vector.shape_cast %10 : vector<1x256xf32> to vector<1x1x256xf32>
    %c0_7 = arith.constant 0 : index
    %c0_8 = arith.constant 0 : index
    %c0_9 = arith.constant 0 : index
    %12 = vector.load %arg4[%c0_7, %c0_8, %c0_9] : memref<1x1x256xf32, #tpu.memory_space<vmem>>, vector<1x1x256xf32>
    tpu.vector_store %arg4[%c0_7, %c0_8, %c0_9], %11 {strides = array<i32>} : memref<1x1x256xf32, #tpu.memory_space<vmem>>, vector<1x1x256xf32>,
    return
  }
  func.func @transform_0(%arg0: i32) -> (i32, i32) {
    %c0_i32 = arith.constant 0 : i32
    %c0_i32_0 = arith.constant 0 : i32
    return %arg0, %c0_i32 : i32, i32
  }
  func.func @transform_1(%arg0: i32) -> (i32, i32) {
    %c0_i32 = arith.constant 0 : i32
    %c0_i32_0 = arith.constant 0 : i32
    %c0_i32_1 = arith.constant 0 : i32
    return %c0_i32, %c0_i32_0 : i32, i32
  }
  func.func @transform_2(%arg0: i32) -> (i32, i32) {
    %c0_i32 = arith.constant 0 : i32
    %c0_i32_0 = arith.constant 0 : i32
    return %arg0, %c0_i32 : i32, i32
  }
  func.func @transform_3(%arg0: i32) -> (i32, i32, i32) {
    %c0_i32 = arith.constant 0 : i32
    %c0_i32_0 = arith.constant 0 : i32
    %c0_i32_1 = arith.constant 0 : i32
    return %arg0, %c0_i32, %c0_i32_0 : i32, i32, i32
  }
}

module attributes {stable_mosaic.version = 11 : i64} {
  func.func @conv2_kernel(%arg0: i32, %arg1: memref<1x16x16x128xbf16, #tpu.memory_space<vmem>>, %arg2: memref<1x128xf32, #tpu.memory_space<vmem>>, %arg3: memref<1x128xf32, #tpu.memory_space<vmem>>, %arg4: memref<1152x128xbf16, #tpu.memory_space<vmem>>, %arg5: memref<1x16x16x128xbf16, #tpu.memory_space<vmem>>, %arg6: memref<1x1x256xf32, #tpu.memory_space<vmem>>, %arg7: memref<1x18x18x128xbf16, #tpu.memory_space<vmem>>) attributes {dimension_semantics = [#tpu.dimension_semantics<parallel>], iteration_bounds = array<i64: 2>, scalar_prefetch = 0 : i64, scratch_operands = 1 : i64, tpu.core_type = #tpu.core_type<tc>, window_params = [{transform_indices = @transform_0, window_bounds = array<i64: 1, 16, 16, 128>}, {pipeline_mode = #tpu.pipeline_mode<synchronous>, transform_indices = @transform_1, window_bounds = array<i64: 1, 128>}, {pipeline_mode = #tpu.pipeline_mode<synchronous>, transform_indices = @transform_2, window_bounds = array<i64: 1, 128>}, {pipeline_mode = #tpu.pipeline_mode<synchronous>, transform_indices = @transform_3, window_bounds = array<i64: 1152, 128>}, {transform_indices = @transform_4, window_bounds = array<i64: 1, 16, 16, 128>}, {transform_indices = @transform_5, window_bounds = array<i64: 1, 1, 256>}]} {
    %c0 = arith.constant 0 : index
    %c0_0 = arith.constant 0 : index
    %0 = vector.load %arg2[%c0, %c0_0] : memref<1x128xf32, #tpu.memory_space<vmem>>, vector<1x128xf32>
    %1 = vector.shape_cast %0 : vector<1x128xf32> to vector<1x1x1x128xf32>
    %c0_1 = arith.constant 0 : index
    %c0_2 = arith.constant 0 : index
    %2 = vector.load %arg3[%c0_1, %c0_2] : memref<1x128xf32, #tpu.memory_space<vmem>>, vector<1x128xf32>
    %3 = vector.shape_cast %2 : vector<1x128xf32> to vector<1x1x1x128xf32>
    %c0_3 = arith.constant 0 : index
    %c0_4 = arith.constant 0 : index
    %c0_5 = arith.constant 0 : index
    %c0_6 = arith.constant 0 : index
    %4 = vector.load %arg1[%c0_3, %c0_4, %c0_5, %c0_6] : memref<1x16x16x128xbf16, #tpu.memory_space<vmem>>, vector<1x16x16x128xbf16>
    %5 = arith.extf %4 : vector<1x16x16x128xbf16> to vector<1x16x16x128xf32>
    %6 = vector.broadcast %1 : vector<1x1x1x128xf32> to vector<1x16x16x128xf32>
    %7 = arith.mulf %5, %6 : vector<1x16x16x128xf32>
    %8 = vector.broadcast %3 : vector<1x1x1x128xf32> to vector<1x16x16x128xf32>
    %9 = arith.addf %7, %8 : vector<1x16x16x128xf32>
    %cst = arith.constant 0.000000e+00 : f32
    %10 = vector.broadcast %cst : f32 to vector<1x16x16x128xf32>
    %11 = arith.maximumf %9, %10 : vector<1x16x16x128xf32>
    %12 = arith.truncf %11 : vector<1x16x16x128xf32> to vector<1x16x16x128xbf16>
    %cst_7 = arith.constant 0.000000e+00 : bf16
    %13 = vector.broadcast %cst_7 : bf16 to vector<1x1x18x128xbf16>
    %cst_8 = arith.constant 0.000000e+00 : bf16
    %14 = vector.broadcast %cst_8 : bf16 to vector<1x18x1x128xbf16>
    %c0_9 = arith.constant 0 : index
    %c0_10 = arith.constant 0 : index
    %c0_11 = arith.constant 0 : index
    %c0_12 = arith.constant 0 : index
    %15 = vector.load %arg7[%c0_9, %c0_10, %c0_11, %c0_12] : memref<1x18x18x128xbf16, #tpu.memory_space<vmem>>, vector<1x1x18x128xbf16>
    tpu.vector_store %arg7[%c0_9, %c0_10, %c0_11, %c0_12], %13 {strides = array<i32>} : memref<1x18x18x128xbf16, #tpu.memory_space<vmem>>, vector<1x1x18x128xbf16>,
    %c0_13 = arith.constant 0 : index
    %c17 = arith.constant 17 : index
    %c0_14 = arith.constant 0 : index
    %c0_15 = arith.constant 0 : index
    %16 = vector.load %arg7[%c0_13, %c17, %c0_14, %c0_15] : memref<1x18x18x128xbf16, #tpu.memory_space<vmem>>, vector<1x1x18x128xbf16>
    tpu.vector_store %arg7[%c0_13, %c17, %c0_14, %c0_15], %13 {strides = array<i32>} : memref<1x18x18x128xbf16, #tpu.memory_space<vmem>>, vector<1x1x18x128xbf16>,
    %c0_16 = arith.constant 0 : index
    %c0_17 = arith.constant 0 : index
    %c0_18 = arith.constant 0 : index
    %c0_19 = arith.constant 0 : index
    %17 = vector.load %arg7[%c0_16, %c0_17, %c0_18, %c0_19] : memref<1x18x18x128xbf16, #tpu.memory_space<vmem>>, vector<1x18x1x128xbf16>
    tpu.vector_store %arg7[%c0_16, %c0_17, %c0_18, %c0_19], %14 {strides = array<i32>} : memref<1x18x18x128xbf16, #tpu.memory_space<vmem>>, vector<1x18x1x128xbf16>,
    %c0_20 = arith.constant 0 : index
    %c0_21 = arith.constant 0 : index
    %c17_22 = arith.constant 17 : index
    %c0_23 = arith.constant 0 : index
    %18 = vector.load %arg7[%c0_20, %c0_21, %c17_22, %c0_23] : memref<1x18x18x128xbf16, #tpu.memory_space<vmem>>, vector<1x18x1x128xbf16>
    tpu.vector_store %arg7[%c0_20, %c0_21, %c17_22, %c0_23], %14 {strides = array<i32>} : memref<1x18x18x128xbf16, #tpu.memory_space<vmem>>, vector<1x18x1x128xbf16>,
    %c0_24 = arith.constant 0 : index
    %c1 = arith.constant 1 : index
    %c1_25 = arith.constant 1 : index
    %c0_26 = arith.constant 0 : index
    %19 = vector.load %arg7[%c0_24, %c1, %c1_25, %c0_26] : memref<1x18x18x128xbf16, #tpu.memory_space<vmem>>, vector<1x16x16x128xbf16>
    tpu.vector_store %arg7[%c0_24, %c1, %c1_25, %c0_26], %12 {strides = array<i32>} : memref<1x18x18x128xbf16, #tpu.memory_space<vmem>>, vector<1x16x16x128xbf16>,
    %cst_27 = arith.constant 0.000000e+00 : f32
    %20 = vector.broadcast %cst_27 : f32 to vector<256x128xf32>
    %c0_28 = arith.constant 0 : index
    %c0_29 = arith.constant 0 : index
    %c0_30 = arith.constant 0 : index
    %c0_31 = arith.constant 0 : index
    %21 = vector.load %arg7[%c0_28, %c0_29, %c0_30, %c0_31] : memref<1x18x18x128xbf16, #tpu.memory_space<vmem>>, vector<1x16x16x128xbf16>
    %22 = vector.shape_cast %21 : vector<1x16x16x128xbf16> to vector<256x128xbf16>
    %c0_32 = arith.constant 0 : index
    %c0_33 = arith.constant 0 : index
    %23 = vector.load %arg4[%c0_32, %c0_33] : memref<1152x128xbf16, #tpu.memory_space<vmem>>, vector<128x128xbf16>
    %cst_34 = arith.constant dense<0.000000e+00> : vector<256x128xf32>
    %24 = tpu.matmul %22, %23, %cst_34 {dimension_numbers = #tpu.dot_dimension_numbers<[1], [0], [0], [1], [0, 0, 1, 1], [], []>} : vector<256x128xbf16>, vector<128x128xbf16>, vector<256x128xf32> -> vector<256x128xf32>
    %25 = arith.addf %20, %24 : vector<256x128xf32>
    %c0_35 = arith.constant 0 : index
    %c0_36 = arith.constant 0 : index
    %c1_37 = arith.constant 1 : index
    %c0_38 = arith.constant 0 : index
    %26 = vector.load %arg7[%c0_35, %c0_36, %c1_37, %c0_38] : memref<1x18x18x128xbf16, #tpu.memory_space<vmem>>, vector<1x16x16x128xbf16>
    %27 = vector.shape_cast %26 : vector<1x16x16x128xbf16> to vector<256x128xbf16>
    %c128 = arith.constant 128 : index
    %c0_39 = arith.constant 0 : index
    %28 = vector.load %arg4[%c128, %c0_39] : memref<1152x128xbf16, #tpu.memory_space<vmem>>, vector<128x128xbf16>
    %cst_40 = arith.constant dense<0.000000e+00> : vector<256x128xf32>
    %29 = tpu.matmul %27, %28, %cst_40 {dimension_numbers = #tpu.dot_dimension_numbers<[1], [0], [0], [1], [0, 0, 1, 1], [], []>} : vector<256x128xbf16>, vector<128x128xbf16>, vector<256x128xf32> -> vector<256x128xf32>
    %30 = arith.addf %25, %29 : vector<256x128xf32>
    %c0_41 = arith.constant 0 : index
    %c0_42 = arith.constant 0 : index
    %c2 = arith.constant 2 : index
    %c0_43 = arith.constant 0 : index
    %31 = vector.load %arg7[%c0_41, %c0_42, %c2, %c0_43] : memref<1x18x18x128xbf16, #tpu.memory_space<vmem>>, vector<1x16x16x128xbf16>
    %32 = vector.shape_cast %31 : vector<1x16x16x128xbf16> to vector<256x128xbf16>
    %c256 = arith.constant 256 : index
    %c0_44 = arith.constant 0 : index
    %33 = vector.load %arg4[%c256, %c0_44] : memref<1152x128xbf16, #tpu.memory_space<vmem>>, vector<128x128xbf16>
    %cst_45 = arith.constant dense<0.000000e+00> : vector<256x128xf32>
    %34 = tpu.matmul %32, %33, %cst_45 {dimension_numbers = #tpu.dot_dimension_numbers<[1], [0], [0], [1], [0, 0, 1, 1], [], []>} : vector<256x128xbf16>, vector<128x128xbf16>, vector<256x128xf32> -> vector<256x128xf32>
    %35 = arith.addf %30, %34 : vector<256x128xf32>
    %c0_46 = arith.constant 0 : index
    %c1_47 = arith.constant 1 : index
    %c0_48 = arith.constant 0 : index
    %c0_49 = arith.constant 0 : index
    %36 = vector.load %arg7[%c0_46, %c1_47, %c0_48, %c0_49] : memref<1x18x18x128xbf16, #tpu.memory_space<vmem>>, vector<1x16x16x128xbf16>
    %37 = vector.shape_cast %36 : vector<1x16x16x128xbf16> to vector<256x128xbf16>
    %c384 = arith.constant 384 : index
    %c0_50 = arith.constant 0 : index
    %38 = vector.load %arg4[%c384, %c0_50] : memref<1152x128xbf16, #tpu.memory_space<vmem>>, vector<128x128xbf16>
    %cst_51 = arith.constant dense<0.000000e+00> : vector<256x128xf32>
    %39 = tpu.matmul %37, %38, %cst_51 {dimension_numbers = #tpu.dot_dimension_numbers<[1], [0], [0], [1], [0, 0, 1, 1], [], []>} : vector<256x128xbf16>, vector<128x128xbf16>, vector<256x128xf32> -> vector<256x128xf32>
    %40 = arith.addf %35, %39 : vector<256x128xf32>
    %c0_52 = arith.constant 0 : index
    %c1_53 = arith.constant 1 : index
    %c1_54 = arith.constant 1 : index
    %c0_55 = arith.constant 0 : index
    %41 = vector.load %arg7[%c0_52, %c1_53, %c1_54, %c0_55] : memref<1x18x18x128xbf16, #tpu.memory_space<vmem>>, vector<1x16x16x128xbf16>
    %42 = vector.shape_cast %41 : vector<1x16x16x128xbf16> to vector<256x128xbf16>
    %c512 = arith.constant 512 : index
    %c0_56 = arith.constant 0 : index
    %43 = vector.load %arg4[%c512, %c0_56] : memref<1152x128xbf16, #tpu.memory_space<vmem>>, vector<128x128xbf16>
    %cst_57 = arith.constant dense<0.000000e+00> : vector<256x128xf32>
    %44 = tpu.matmul %42, %43, %cst_57 {dimension_numbers = #tpu.dot_dimension_numbers<[1], [0], [0], [1], [0, 0, 1, 1], [], []>} : vector<256x128xbf16>, vector<128x128xbf16>, vector<256x128xf32> -> vector<256x128xf32>
    %45 = arith.addf %40, %44 : vector<256x128xf32>
    %c0_58 = arith.constant 0 : index
    %c1_59 = arith.constant 1 : index
    %c2_60 = arith.constant 2 : index
    %c0_61 = arith.constant 0 : index
    %46 = vector.load %arg7[%c0_58, %c1_59, %c2_60, %c0_61] : memref<1x18x18x128xbf16, #tpu.memory_space<vmem>>, vector<1x16x16x128xbf16>
    %47 = vector.shape_cast %46 : vector<1x16x16x128xbf16> to vector<256x128xbf16>
    %c640 = arith.constant 640 : index
    %c0_62 = arith.constant 0 : index
    %48 = vector.load %arg4[%c640, %c0_62] : memref<1152x128xbf16, #tpu.memory_space<vmem>>, vector<128x128xbf16>
    %cst_63 = arith.constant dense<0.000000e+00> : vector<256x128xf32>
    %49 = tpu.matmul %47, %48, %cst_63 {dimension_numbers = #tpu.dot_dimension_numbers<[1], [0], [0], [1], [0, 0, 1, 1], [], []>} : vector<256x128xbf16>, vector<128x128xbf16>, vector<256x128xf32> -> vector<256x128xf32>
    %50 = arith.addf %45, %49 : vector<256x128xf32>
    %c0_64 = arith.constant 0 : index
    %c2_65 = arith.constant 2 : index
    %c0_66 = arith.constant 0 : index
    %c0_67 = arith.constant 0 : index
    %51 = vector.load %arg7[%c0_64, %c2_65, %c0_66, %c0_67] : memref<1x18x18x128xbf16, #tpu.memory_space<vmem>>, vector<1x16x16x128xbf16>
    %52 = vector.shape_cast %51 : vector<1x16x16x128xbf16> to vector<256x128xbf16>
    %c768 = arith.constant 768 : index
    %c0_68 = arith.constant 0 : index
    %53 = vector.load %arg4[%c768, %c0_68] : memref<1152x128xbf16, #tpu.memory_space<vmem>>, vector<128x128xbf16>
    %cst_69 = arith.constant dense<0.000000e+00> : vector<256x128xf32>
    %54 = tpu.matmul %52, %53, %cst_69 {dimension_numbers = #tpu.dot_dimension_numbers<[1], [0], [0], [1], [0, 0, 1, 1], [], []>} : vector<256x128xbf16>, vector<128x128xbf16>, vector<256x128xf32> -> vector<256x128xf32>
    %55 = arith.addf %50, %54 : vector<256x128xf32>
    %c0_70 = arith.constant 0 : index
    %c2_71 = arith.constant 2 : index
    %c1_72 = arith.constant 1 : index
    %c0_73 = arith.constant 0 : index
    %56 = vector.load %arg7[%c0_70, %c2_71, %c1_72, %c0_73] : memref<1x18x18x128xbf16, #tpu.memory_space<vmem>>, vector<1x16x16x128xbf16>
    %57 = vector.shape_cast %56 : vector<1x16x16x128xbf16> to vector<256x128xbf16>
    %c896 = arith.constant 896 : index
    %c0_74 = arith.constant 0 : index
    %58 = vector.load %arg4[%c896, %c0_74] : memref<1152x128xbf16, #tpu.memory_space<vmem>>, vector<128x128xbf16>
    %cst_75 = arith.constant dense<0.000000e+00> : vector<256x128xf32>
    %59 = tpu.matmul %57, %58, %cst_75 {dimension_numbers = #tpu.dot_dimension_numbers<[1], [0], [0], [1], [0, 0, 1, 1], [], []>} : vector<256x128xbf16>, vector<128x128xbf16>, vector<256x128xf32> -> vector<256x128xf32>
    %60 = arith.addf %55, %59 : vector<256x128xf32>
    %c0_76 = arith.constant 0 : index
    %c2_77 = arith.constant 2 : index
    %c2_78 = arith.constant 2 : index
    %c0_79 = arith.constant 0 : index
    %61 = vector.load %arg7[%c0_76, %c2_77, %c2_78, %c0_79] : memref<1x18x18x128xbf16, #tpu.memory_space<vmem>>, vector<1x16x16x128xbf16>
    %62 = vector.shape_cast %61 : vector<1x16x16x128xbf16> to vector<256x128xbf16>
    %c1024 = arith.constant 1024 : index
    %c0_80 = arith.constant 0 : index
    %63 = vector.load %arg4[%c1024, %c0_80] : memref<1152x128xbf16, #tpu.memory_space<vmem>>, vector<128x128xbf16>
    %cst_81 = arith.constant dense<0.000000e+00> : vector<256x128xf32>
    %64 = tpu.matmul %62, %63, %cst_81 {dimension_numbers = #tpu.dot_dimension_numbers<[1], [0], [0], [1], [0, 0, 1, 1], [], []>} : vector<256x128xbf16>, vector<128x128xbf16>, vector<256x128xf32> -> vector<256x128xf32>
    %65 = arith.addf %60, %64 : vector<256x128xf32>
    %66 = vector.shape_cast %65 : vector<256x128xf32> to vector<1x16x16x128xf32>
    %67 = arith.truncf %66 : vector<1x16x16x128xf32> to vector<1x16x16x128xbf16>
    %c0_82 = arith.constant 0 : index
    %c0_83 = arith.constant 0 : index
    %c0_84 = arith.constant 0 : index
    %c0_85 = arith.constant 0 : index
    %68 = vector.load %arg5[%c0_82, %c0_83, %c0_84, %c0_85] : memref<1x16x16x128xbf16, #tpu.memory_space<vmem>>, vector<1x16x16x128xbf16>
    tpu.vector_store %arg5[%c0_82, %c0_83, %c0_84, %c0_85], %67 {strides = array<i32>} : memref<1x16x16x128xbf16, #tpu.memory_space<vmem>>, vector<1x16x16x128xbf16>,
    %cst_86 = arith.constant dense<0.000000e+00> : vector<128xf32>
    %69 = vector.multi_reduction <add>, %65, %cst_86 [0] : vector<256x128xf32> to vector<128xf32>
    %70 = vector.shape_cast %69 : vector<128xf32> to vector<1x128xf32>
    %71 = arith.mulf %65, %65 : vector<256x128xf32>
    %cst_87 = arith.constant dense<0.000000e+00> : vector<128xf32>
    %72 = vector.multi_reduction <add>, %71, %cst_87 [0] : vector<256x128xf32> to vector<128xf32>
    %73 = vector.shape_cast %72 : vector<128xf32> to vector<1x128xf32>
    %74 = tpu.concatenate %70, %73 in 1 : vector<1x128xf32>, vector<1x128xf32> -> vector<1x256xf32>
    %75 = vector.shape_cast %74 : vector<1x256xf32> to vector<1x1x256xf32>
    %c0_88 = arith.constant 0 : index
    %c0_89 = arith.constant 0 : index
    %c0_90 = arith.constant 0 : index
    %76 = vector.load %arg6[%c0_88, %c0_89, %c0_90] : memref<1x1x256xf32, #tpu.memory_space<vmem>>, vector<1x1x256xf32>
    tpu.vector_store %arg6[%c0_88, %c0_89, %c0_90], %75 {strides = array<i32>} : memref<1x1x256xf32, #tpu.memory_space<vmem>>, vector<1x1x256xf32>,
    return
  }
  func.func @transform_0(%arg0: i32) -> (i32, i32, i32, i32) {
    %c0_i32 = arith.constant 0 : i32
    %c0_i32_0 = arith.constant 0 : i32
    %c0_i32_1 = arith.constant 0 : i32
    %c0_i32_2 = arith.constant 0 : i32
    return %arg0, %c0_i32, %c0_i32_0, %c0_i32_1 : i32, i32, i32, i32
  }
  func.func @transform_1(%arg0: i32) -> (i32, i32) {
    %c0_i32 = arith.constant 0 : i32
    %c0_i32_0 = arith.constant 0 : i32
    %c0_i32_1 = arith.constant 0 : i32
    return %c0_i32, %c0_i32_0 : i32, i32
  }
  func.func @transform_2(%arg0: i32) -> (i32, i32) {
    %c0_i32 = arith.constant 0 : i32
    %c0_i32_0 = arith.constant 0 : i32
    %c0_i32_1 = arith.constant 0 : i32
    return %c0_i32, %c0_i32_0 : i32, i32
  }
  func.func @transform_3(%arg0: i32) -> (i32, i32) {
    %c0_i32 = arith.constant 0 : i32
    %c0_i32_0 = arith.constant 0 : i32
    %c0_i32_1 = arith.constant 0 : i32
    return %c0_i32, %c0_i32_0 : i32, i32
  }
  func.func @transform_4(%arg0: i32) -> (i32, i32, i32, i32) {
    %c0_i32 = arith.constant 0 : i32
    %c0_i32_0 = arith.constant 0 : i32
    %c0_i32_1 = arith.constant 0 : i32
    %c0_i32_2 = arith.constant 0 : i32
    return %arg0, %c0_i32, %c0_i32_0, %c0_i32_1 : i32, i32, i32, i32
  }
  func.func @transform_5(%arg0: i32) -> (i32, i32, i32) {
    %c0_i32 = arith.constant 0 : i32
    %c0_i32_0 = arith.constant 0 : i32
    %c0_i32_1 = arith.constant 0 : i32
    return %arg0, %c0_i32, %c0_i32_0 : i32, i32, i32
  }
}

module attributes {stable_mosaic.version = 11 : i64} {
  func.func @conv3_kernel(%arg0: i32, %arg1: memref<128x128xbf16, #tpu.memory_space<vmem>>, %arg2: memref<1x128xf32, #tpu.memory_space<vmem>>, %arg3: memref<1x128xf32, #tpu.memory_space<vmem>>, %arg4: memref<128x128xbf16, #tpu.memory_space<vmem>>, %arg5: memref<128x128xbf16, #tpu.memory_space<vmem>>, %arg6: memref<1x1x256xf32, #tpu.memory_space<vmem>>) attributes {dimension_semantics = [#tpu.dimension_semantics<parallel>], iteration_bounds = array<i64: 4>, scalar_prefetch = 0 : i64, scratch_operands = 0 : i64, tpu.core_type = #tpu.core_type<tc>, window_params = [{transform_indices = @transform_0, window_bounds = array<i64: 128, 128>}, {pipeline_mode = #tpu.pipeline_mode<synchronous>, transform_indices = @transform_1, window_bounds = array<i64: 1, 128>}, {pipeline_mode = #tpu.pipeline_mode<synchronous>, transform_indices = @transform_2, window_bounds = array<i64: 1, 128>}, {pipeline_mode = #tpu.pipeline_mode<synchronous>, transform_indices = @transform_3, window_bounds = array<i64: 128, 128>}, {transform_indices = @transform_4, window_bounds = array<i64: 128, 128>}, {transform_indices = @transform_5, window_bounds = array<i64: 1, 1, 256>}]} {
    %c0 = arith.constant 0 : index
    %c0_0 = arith.constant 0 : index
    %0 = vector.load %arg1[%c0, %c0_0] : memref<128x128xbf16, #tpu.memory_space<vmem>>, vector<128x128xbf16>
    %1 = arith.extf %0 : vector<128x128xbf16> to vector<128x128xf32>
    %c0_1 = arith.constant 0 : index
    %c0_2 = arith.constant 0 : index
    %2 = vector.load %arg2[%c0_1, %c0_2] : memref<1x128xf32, #tpu.memory_space<vmem>>, vector<1x128xf32>
    %3 = vector.broadcast %2 : vector<1x128xf32> to vector<128x128xf32>
    %4 = arith.mulf %1, %3 : vector<128x128xf32>
    %c0_3 = arith.constant 0 : index
    %c0_4 = arith.constant 0 : index
    %5 = vector.load %arg3[%c0_3, %c0_4] : memref<1x128xf32, #tpu.memory_space<vmem>>, vector<1x128xf32>
    %6 = vector.broadcast %5 : vector<1x128xf32> to vector<128x128xf32>
    %7 = arith.addf %4, %6 : vector<128x128xf32>
    %cst = arith.constant 0.000000e+00 : f32
    %8 = vector.broadcast %cst : f32 to vector<128x128xf32>
    %9 = arith.maximumf %7, %8 : vector<128x128xf32>
    %c0_5 = arith.constant 0 : index
    %c0_6 = arith.constant 0 : index
    %10 = vector.load %arg4[%c0_5, %c0_6] : memref<128x128xbf16, #tpu.memory_space<vmem>>, vector<128x128xbf16>
    %11 = arith.truncf %9 : vector<128x128xf32> to vector<128x128xbf16>
    %cst_7 = arith.constant dense<0.000000e+00> : vector<128x128xf32>
    %12 = tpu.matmul %11, %10, %cst_7 {dimension_numbers = #tpu.dot_dimension_numbers<[1], [0], [0], [1], [0, 0, 1, 1], [], []>} : vector<128x128xbf16>, vector<128x128xbf16>, vector<128x128xf32> -> vector<128x128xf32>
    %13 = arith.truncf %12 : vector<128x128xf32> to vector<128x128xbf16>
    %c0_8 = arith.constant 0 : index
    %c0_9 = arith.constant 0 : index
    %14 = vector.load %arg5[%c0_8, %c0_9] : memref<128x128xbf16, #tpu.memory_space<vmem>>, vector<128x128xbf16>
    tpu.vector_store %arg5[%c0_8, %c0_9], %13 {strides = array<i32>} : memref<128x128xbf16, #tpu.memory_space<vmem>>, vector<128x128xbf16>,
    %cst_10 = arith.constant dense<0.000000e+00> : vector<128xf32>
    %15 = vector.multi_reduction <add>, %12, %cst_10 [0] : vector<128x128xf32> to vector<128xf32>
    %16 = vector.shape_cast %15 : vector<128xf32> to vector<1x128xf32>
    %17 = arith.mulf %12, %12 : vector<128x128xf32>
    %cst_11 = arith.constant dense<0.000000e+00> : vector<128xf32>
    %18 = vector.multi_reduction <add>, %17, %cst_11 [0] : vector<128x128xf32> to vector<128xf32>
    %19 = vector.shape_cast %18 : vector<128xf32> to vector<1x128xf32>
    %20 = tpu.concatenate %16, %19 in 1 : vector<1x128xf32>, vector<1x128xf32> -> vector<1x256xf32>
    %21 = vector.shape_cast %20 : vector<1x256xf32> to vector<1x1x256xf32>
    %c0_12 = arith.constant 0 : index
    %c0_13 = arith.constant 0 : index
    %c0_14 = arith.constant 0 : index
    %22 = vector.load %arg6[%c0_12, %c0_13, %c0_14] : memref<1x1x256xf32, #tpu.memory_space<vmem>>, vector<1x1x256xf32>
    tpu.vector_store %arg6[%c0_12, %c0_13, %c0_14], %21 {strides = array<i32>} : memref<1x1x256xf32, #tpu.memory_space<vmem>>, vector<1x1x256xf32>,
    return
  }
  func.func @transform_0(%arg0: i32) -> (i32, i32) {
    %c0_i32 = arith.constant 0 : i32
    %c0_i32_0 = arith.constant 0 : i32
    return %arg0, %c0_i32 : i32, i32
  }
  func.func @transform_1(%arg0: i32) -> (i32, i32) {
    %c0_i32 = arith.constant 0 : i32
    %c0_i32_0 = arith.constant 0 : i32
    %c0_i32_1 = arith.constant 0 : i32
    return %c0_i32, %c0_i32_0 : i32, i32
  }
  func.func @transform_2(%arg0: i32) -> (i32, i32) {
    %c0_i32 = arith.constant 0 : i32
    %c0_i32_0 = arith.constant 0 : i32
    %c0_i32_1 = arith.constant 0 : i32
    return %c0_i32, %c0_i32_0 : i32, i32
  }
  func.func @transform_3(%arg0: i32) -> (i32, i32) {
    %c0_i32 = arith.constant 0 : i32
    %c0_i32_0 = arith.constant 0 : i32
    %c0_i32_1 = arith.constant 0 : i32
    return %c0_i32, %c0_i32_0 : i32, i32
  }
  func.func @transform_4(%arg0: i32) -> (i32, i32) {
    %c0_i32 = arith.constant 0 : i32
    %c0_i32_0 = arith.constant 0 : i32
    return %arg0, %c0_i32 : i32, i32
  }
  func.func @transform_5(%arg0: i32) -> (i32, i32, i32) {
    %c0_i32 = arith.constant 0 : i32
    %c0_i32_0 = arith.constant 0 : i32
    %c0_i32_1 = arith.constant 0 : i32
    return %arg0, %c0_i32, %c0_i32_0 : i32, i32, i32
  }
}

module attributes {stable_mosaic.version = 11 : i64} {
  func.func @out_kernel(%arg0: i32, %arg1: memref<128x128xbf16, #tpu.memory_space<vmem>>, %arg2: memref<1x128xf32, #tpu.memory_space<vmem>>, %arg3: memref<1x128xf32, #tpu.memory_space<vmem>>, %arg4: memref<128x128xbf16, #tpu.memory_space<vmem>>, %arg5: memref<128x128xf32, #tpu.memory_space<vmem>>) attributes {dimension_semantics = [#tpu.dimension_semantics<parallel>], iteration_bounds = array<i64: 4>, scalar_prefetch = 0 : i64, scratch_operands = 0 : i64, tpu.core_type = #tpu.core_type<tc>, window_params = [{transform_indices = @transform_0, window_bounds = array<i64: 128, 128>}, {pipeline_mode = #tpu.pipeline_mode<synchronous>, transform_indices = @transform_1, window_bounds = array<i64: 1, 128>}, {pipeline_mode = #tpu.pipeline_mode<synchronous>, transform_indices = @transform_2, window_bounds = array<i64: 1, 128>}, {transform_indices = @transform_3, window_bounds = array<i64: 128, 128>}, {transform_indices = @transform_4, window_bounds = array<i64: 128, 128>}]} {
    %c0 = arith.constant 0 : index
    %c0_0 = arith.constant 0 : index
    %0 = vector.load %arg1[%c0, %c0_0] : memref<128x128xbf16, #tpu.memory_space<vmem>>, vector<128x128xbf16>
    %1 = arith.extf %0 : vector<128x128xbf16> to vector<128x128xf32>
    %c0_1 = arith.constant 0 : index
    %c0_2 = arith.constant 0 : index
    %2 = vector.load %arg2[%c0_1, %c0_2] : memref<1x128xf32, #tpu.memory_space<vmem>>, vector<1x128xf32>
    %3 = vector.broadcast %2 : vector<1x128xf32> to vector<128x128xf32>
    %4 = arith.mulf %1, %3 : vector<128x128xf32>
    %c0_3 = arith.constant 0 : index
    %c0_4 = arith.constant 0 : index
    %5 = vector.load %arg3[%c0_3, %c0_4] : memref<1x128xf32, #tpu.memory_space<vmem>>, vector<1x128xf32>
    %6 = vector.broadcast %5 : vector<1x128xf32> to vector<128x128xf32>
    %7 = arith.addf %4, %6 : vector<128x128xf32>
    %c0_5 = arith.constant 0 : index
    %c0_6 = arith.constant 0 : index
    %8 = vector.load %arg4[%c0_5, %c0_6] : memref<128x128xbf16, #tpu.memory_space<vmem>>, vector<128x128xbf16>
    %9 = arith.extf %8 : vector<128x128xbf16> to vector<128x128xf32>
    %10 = arith.addf %7, %9 : vector<128x128xf32>
    %cst = arith.constant 0.000000e+00 : f32
    %11 = vector.broadcast %cst : f32 to vector<128x128xf32>
    %12 = arith.maximumf %10, %11 : vector<128x128xf32>
    %c0_7 = arith.constant 0 : index
    %c0_8 = arith.constant 0 : index
    %13 = vector.load %arg5[%c0_7, %c0_8] : memref<128x128xf32, #tpu.memory_space<vmem>>, vector<128x128xf32>
    tpu.vector_store %arg5[%c0_7, %c0_8], %12 {strides = array<i32>} : memref<128x128xf32, #tpu.memory_space<vmem>>, vector<128x128xf32>,
    return
  }
  func.func @transform_0(%arg0: i32) -> (i32, i32) {
    %c0_i32 = arith.constant 0 : i32
    %c0_i32_0 = arith.constant 0 : i32
    return %arg0, %c0_i32 : i32, i32
  }
  func.func @transform_1(%arg0: i32) -> (i32, i32) {
    %c0_i32 = arith.constant 0 : i32
    %c0_i32_0 = arith.constant 0 : i32
    %c0_i32_1 = arith.constant 0 : i32
    return %c0_i32, %c0_i32_0 : i32, i32
  }
  func.func @transform_2(%arg0: i32) -> (i32, i32) {
    %c0_i32 = arith.constant 0 : i32
    %c0_i32_0 = arith.constant 0 : i32
    %c0_i32_1 = arith.constant 0 : i32
    return %c0_i32, %c0_i32_0 : i32, i32
  }
  func.func @transform_3(%arg0: i32) -> (i32, i32) {
    %c0_i32 = arith.constant 0 : i32
    %c0_i32_0 = arith.constant 0 : i32
    return %arg0, %c0_i32 : i32, i32
  }
  func.func @transform_4(%arg0: i32) -> (i32, i32) {
    %c0_i32 = arith.constant 0 : i32
    %c0_i32_0 = arith.constant 0 : i32
    return %arg0, %c0_i32 : i32, i32
  }
}

</mosaic_0001>

<llo_original>
// kernel: bottleneck_forward.4
$region0: #{bottleneck_forward.4}
  #allocation0 [shape = 'u32[]', space=smem, size = 0x4, offset = 0x4, fixed_abs, tag = 'smem constant byte address 0x4 - core index']
  #allocation1 [shape = 'u32[72,128]{1,0:T(1,128)}', space=vmem, size = 0x9000, scoped, tag = 'internal scratch']
  %s0 = inlined_call_operand.vmem [shape: bf16[512,128], index: 0, kind: input, shape index: {}]
  %s1 = inlined_call_operand.vmem [shape: bf16[128,128], index: 1, kind: input, shape index: {}]
  %s2 = inlined_call_operand.vmem [shape: bf16[512,128], index: 2, kind: output, shape index: {0}]
  %s3 = inlined_call_operand.vmem [shape: f32[4,1,256], index: 3, kind: output, shape index: {1}]
  %4 = xla_tuple %s2, %s3
  %s5 = sld [smem:[#allocation0]]
  $region49: #{bottleneck_forward.4} parent=0
    _
  %s7 = ssub.s32 1, %s5
  %s8 = scalar_select 0, %s7, %s5
  loop: start=0, step=1, limit=6
  $region2: #{bottleneck_forward.4} parent=0 // loop_pre_header
    _
  $region3: #{bottleneck_forward.4} parent=0 // loop_header
    %s10 = sphi 0, %s14
    %p11 = scmp.ge.s32.totalorder %s10, 6
    %s20 = sphi 0, %s22
    %s23 = sphi 0, %s20
    %s24 = sphi 0, %s23
    %s40 = sphi 0, %s24
    %s44 = sphi 0, %s44
    %s46 = sphi 0, %s44
    %s47 = sphi 0, %s46
    %s61 = sphi 0, %s47
    %s67 = sphi 0, %s69
    %s70 = sphi 0, %s67
    %s71 = sphi 0, %s70
    %s87 = sphi 0, %s71
    %s93 = sphi 0, %s95
    %s96 = sphi 0, %s93
    %s97 = sphi 0, %s96
    %s113 = sphi 0, %s97
  $region4: #{bottleneck_forward.4} parent=0 // loop_header_branch
    %13 = sbr.rel (%p11) target = $region8
  $region5: #{bottleneck_forward.4} parent=0 // loop_body
    %s15 = ssub.s32 %s10, 1
    %s16 = ssub.s32 %s10, 2
    %s17 = sadd.s32 %s10, 1
    %s18 = ssub.s32 %s10, %s17
    %p19 = scmp.eq.s32.totalorder %s18, 0
    %s21 = sadd.s32 %s20, 1
    %s22 = scalar_select %p19, %s20, %s21
    %p25 = pneg %p19
    %p26 = scmp.eq.s32.totalorder %s10, 3
    %p27 = por %p25, %p26
    %p28 = scmp.ne.s32.totalorder %s20, %s23
    %p29 = scmp.eq.s32.totalorder %s10, 0
    %p30 = por %p28, %p29
    %p31 = scmp.ne.s32.totalorder %s20, %s23
    %p32 = scmp.eq.s32.totalorder %s15, 3
    %p33 = por %p31, %p32
    %p34 = scmp.ne.s32.totalorder %s23, %s24
    %p35 = scmp.eq.s32.totalorder %s15, 0
    %p36 = por %p34, %p35
    %p37 = scmp.ne.s32.totalorder %s23, %s24
    %p38 = scmp.eq.s32.totalorder %s16, 3
    %p39 = por %p37, %p38
    %p41 = scmp.ne.s32.totalorder %s24, %s40
    %p42 = scmp.eq.s32.totalorder %s16, 0
    %p43 = por %p41, %p42
    %s45 = sadd.s32 %s44, 1
    %p48 = scmp.eq.s32.totalorder %s10, 3
    %p49 = scmp.ne.s32.totalorder %s44, %s46
    %p50 = scmp.eq.s32.totalorder %s10, 0
    %p51 = por %p49, %p50
    %p52 = scmp.ne.s32.totalorder %s44, %s46
    %p53 = scmp.eq.s32.totalorder %s15, 3
    %p54 = por %p52, %p53
    %p55 = scmp.ne.s32.totalorder %s46, %s47
    %p56 = scmp.eq.s32.totalorder %s15, 0
    %p57 = por %p55, %p56
    %p58 = scmp.ne.s32.totalorder %s46, %s47
    %p59 = scmp.eq.s32.totalorder %s16, 3
    %p60 = por %p58, %p59
    %p62 = scmp.ne.s32.totalorder %s47, %s61
    %p63 = scmp.eq.s32.totalorder %s16, 0
    %p64 = por %p62, %p63
    %s65 = ssub.s32 %s10, %s17
    %p66 = scmp.eq.s32.totalorder %s65, 0
    %s68 = sadd.s32 %s67, 1
    %s69 = scalar_select %p66, %s67, %s68
    %p72 = pneg %p66
    %p73 = scmp.eq.s32.totalorder %s10, 3
    %p74 = por %p72, %p73
    %p75 = scmp.ne.s32.totalorder %s67, %s70
    %p76 = scmp.eq.s32.totalorder %s10, 0
    %p77 = por %p75, %p76
    %p78 = scmp.ne.s32.totalorder %s67, %s70
    %p79 = scmp.eq.s32.totalorder %s15, 3
    %p80 = por %p78, %p79
    %p81 = scmp.ne.s32.totalorder %s70, %s71
    %p82 = scmp.eq.s32.totalorder %s15, 0
    %p83 = por %p81, %p82
    %p84 = scmp.ne.s32.totalorder %s70, %s71
    %p85 = scmp.eq.s32.totalorder %s16, 3
    %p86 = por %p84, %p85
    %p88 = scmp.ne.s32.totalorder %s71, %s87
    %p89 = scmp.eq.s32.totalorder %s16, 0
    %p90 = por %p88, %p89
    %s91 = ssub.s32 %s10, %s17
    %p92 = scmp.eq.s32.totalorder %s91, 0
    %s94 = sadd.s32 %s93, 1
    %s95 = scalar_select %p92, %s93, %s94
    %p98 = pneg %p92
    %p99 = scmp.eq.s32.totalorder %s10, 3
    %p100 = por %p98, %p99
    %p101 = scmp.ne.s32.totalorder %s93, %s96
    %p102 = scmp.eq.s32.totalorder %s10, 0
    %p103 = por %p101, %p102
    %p104 = scmp.ne.s32.totalorder %s93, %s96
    %p105 = scmp.eq.s32.totalorder %s15, 3
    %p106 = por %p104, %p105
    %p107 = scmp.ne.s32.totalorder %s96, %s97
    %p108 = scmp.eq.s32.totalorder %s15, 0
    %p109 = por %p107, %p108
    %p110 = scmp.ne.s32.totalorder %s96, %s97
    %p111 = scmp.eq.s32.totalorder %s16, 3
    %p112 = por %p110, %p111
    %p114 = scmp.ne.s32.totalorder %s97, %s113
    %p115 = scmp.eq.s32.totalorder %s16, 0
    %p116 = por %p114, %p115
    %p117 = scmp.le.s32.totalorder 1, %s10
    %p118 = scmp.lt.s32.totalorder %s10, 5
    %p119 = pnand %p117, %p118
    %p120 = pneg %p119
    // Predicated region
    $region9: #{bottleneck_forward.4} parent=5 // pred_check
      _
    $region10: #{bottleneck_forward.4} parent=5 // pred_check_branch
      %122 = sbr.rel (%p119) target = $region12
    $region11: #{bottleneck_forward.4} parent=5 // pred_region
      %s123 = ssub.s32 %s10, 1
      // Predicated region
      $region13: #{bottleneck_forward.4} parent=11 // pred_check
        %p124 = pneg %p57
      $region14: #{bottleneck_forward.4} parent=11 // pred_check_branch
        %126 = sbr.rel (%p124) target = $region16
      $region15: #{bottleneck_forward.4} parent=11 // pred_region
        _
      $region16: #{bottleneck_forward.4} parent=11 // pred_fallthru
        _
    $region12: #{bottleneck_forward.4} parent=5 // pred_fallthru
      _
    %p127 = scmp.lt.s32.totalorder %s10, 4
    // Predicated region
    $region17: #{bottleneck_forward.4} parent=5 // pred_check
      %p128 = pneg %p127
    $region18: #{bottleneck_forward.4} parent=5 // pred_check_branch
      %130 = sbr.rel (%p128) target = $region20
    $region19: #{bottleneck_forward.4} parent=5 // pred_region
      // Predicated region
      $region21: #{bottleneck_forward.4} parent=19 // pred_check
        %p131 = pneg %p30
      $region22: #{bottleneck_forward.4} parent=19 // pred_check_branch
        %133 = sbr.rel (%p131) target = $region24
      $region23: #{bottleneck_forward.4} parent=19 // pred_region
        %s134 = smul.u32 16, %s10
        %p135 = scmp.lt.s32.totalorder %s134, 63
        %s136 = scalar_select %p135, %s134, 63
        %s137 = smul.addr %s136, 4
        %s138 = scalar_lea.vmem %s0, %s137
        %s139 = smul.u32 16, %s10
      $region24: #{bottleneck_forward.4} parent=19 // pred_fallthru
        _
    $region20: #{bottleneck_forward.4} parent=5 // pred_fallthru
      _
    %p140 = scmp.le.s32.totalorder 1, %s10
    %p141 = scmp.lt.s32.totalorder %s10, 5
    %p142 = pnand %p140, %p141
    %p143 = pneg %p142
    // Predicated region
    $region25: #{bottleneck_forward.4} parent=5 // pred_check
      _
    $region26: #{bottleneck_forward.4} parent=5 // pred_check_branch
      %145 = sbr.rel (%p142) target = $region28
    $region27: #{bottleneck_forward.4} parent=5 // pred_region
      %s146 = ssub.s32 %s10, 1
      %s147 = smul.u32 16, %s15
      %p148 = scmp.lt.s32.totalorder %s147, 63
      %s149 = scalar_select %p148, %s147, 63
      %s150 = smul.addr %s149, 4
      %s151 = scalar_lea.vmem %s0, %s150
      %p152 = pneg %p36
      %p153 = pneg %p33
      %p154 = pneg %p57
      %p155 = pneg %p54
      %p156 = pneg %p83
      %p157 = pneg %p80
      %s158 = smul.u32 16, %s15
      %p159 = scmp.lt.s32.totalorder %s158, 63
      %s160 = scalar_select %p159, %s158, 63
      %s161 = smul.addr %s160, 4
      %s162 = scalar_lea.vmem %s2, %s161
      %p163 = pneg %p109
      %p164 = pneg %p106
      %p165 = scmp.lt.s32.totalorder %s15, 3
      %s166 = scalar_select %p165, %s15, 3
      %s167 = smul.addr %s166, 2
      %s168 = scalar_lea.vmem %s3, %s167
      %s169 = smul.u32 16, %s15
      %p170 = scmp.lt.s32.totalorder %s169, 63
      %s171 = scalar_select %p170, %s169, 63
      %s172 = smul.addr %s171, 4
      %s173 = scalar_lea.vmem %s0, %s172
      %s174 = smul.u32 16, %s15
      %s175 = smul.u32 16, %s15
      %p176 = scmp.lt.s32.totalorder %s175, 63
      %s177 = scalar_select %p176, %s175, 63
      %s178 = smul.addr %s177, 4
      %s179 = scalar_lea.vmem %s2, %s178
      %s180 = smul.u32 16, %s15
      %p181 = scmp.lt.s32.totalorder %s15, 3
      %s182 = scalar_select %p181, %s15, 3
      %s183 = smul.addr %s182, 2
      %s184 = scalar_lea.vmem %s3, %s183
      %v185 = vld [vmem:[%s173] sm:$0xf]
      %v186 = vld [vmem:[%s173 + $0x4] sm:$0xf]
      %v187 = vld [vmem:[%s173 + $0x8] sm:$0xf]
      %v188 = vld [vmem:[%s173 + $0xc] sm:$0xf]
      %v189 = vld [vmem:[%s173 + $0x10] sm:$0xf]
      %v190 = vld [vmem:[%s173 + $0x14] sm:$0xf]
      %v191 = vld [vmem:[%s173 + $0x18] sm:$0xf]
      %v192 = vld [vmem:[%s173 + $0x1c] sm:$0xf]
      %v193 = vld [vmem:[%s173 + $0x20] sm:$0xf]
      %v194 = vld [vmem:[%s173 + $0x24] sm:$0xf]
      %v195 = vld [vmem:[%s173 + $0x28] sm:$0xf]
      %v196 = vld [vmem:[%s173 + $0x2c] sm:$0xf]
      %v197 = vld [vmem:[%s173 + $0x30] sm:$0xf]
      %v198 = vld [vmem:[%s173 + $0x34] sm:$0xf]
      %v199 = vld [vmem:[%s173 + $0x38] sm:$0xf]
      %v200 = vld [vmem:[%s173 + $0x3c] sm:$0xf]
      %v201 = vld [vmem:[%s1] sm:$0xf]
      %v202 = vld [vmem:[%s1 + $0x4] sm:$0xf]
      %v203 = vld [vmem:[%s1 + $0x8] sm:$0xf]
      %v204 = vld [vmem:[%s1 + $0xc] sm:$0xf]
      %v205 = vld [vmem:[%s1 + $0x10] sm:$0xf]
      %v206 = vld [vmem:[%s1 + $0x14] sm:$0xf]
      %v207 = vld [vmem:[%s1 + $0x18] sm:$0xf]
      %v208 = vld [vmem:[%s1 + $0x1c] sm:$0xf]
      %v209 = vld [vmem:[%s1 + $0x20] sm:$0xf]
      %v210 = vld [vmem:[%s1 + $0x24] sm:$0xf]
      %v211 = vld [vmem:[%s1 + $0x28] sm:$0xf]
      %v212 = vld [vmem:[%s1 + $0x2c] sm:$0xf]
      %v213 = vld [vmem:[%s1 + $0x30] sm:$0xf]
      %v214 = vld [vmem:[%s1 + $0x34] sm:$0xf]
      %v215 = vld [vmem:[%s1 + $0x38] sm:$0xf]
      %v216 = vld [vmem:[%s1 + $0x3c] sm:$0xf]
      %v233 = vunpack.c.l.b16 %v185
      %v234 = vunpack.c.l.b16 %v186
      %v235 = vunpack.c.l.b16 %v187
      %v236 = vunpack.c.l.b16 %v188
      %v237 = vunpack.c.l.b16 %v189
      %v238 = vunpack.c.l.b16 %v190
      %v239 = vunpack.c.l.b16 %v191
      %v240 = vunpack.c.l.b16 %v192
      %v241 = vunpack.c.l.b16 %v193
      %v242 = vunpack.c.l.b16 %v194
      %v243 = vunpack.c.l.b16 %v195
      %v244 = vunpack.c.l.b16 %v196
      %v245 = vunpack.c.l.b16 %v197
      %v246 = vunpack.c.l.b16 %v198
      %v247 = vunpack.c.l.b16 %v199
      %v248 = vunpack.c.l.b16 %v200
      %v249 = vpack.c.b16 %v234, %v233
      %v250 = vpack.c.b16 %v236, %v235
      %v251 = vpack.c.b16 %v238, %v237
      %v252 = vpack.c.b16 %v240, %v239
      %v253 = vpack.c.b16 %v242, %v241
      %v254 = vpack.c.b16 %v244, %v243
      %v255 = vpack.c.b16 %v246, %v245
      %v256 = vpack.c.b16 %v248, %v247
      %v281 = vunpack.c.l.b16 %v201
      %v282 = vunpack.c.l.b16 %v202
      %v283 = vunpack.c.l.b16 %v203
      %v284 = vunpack.c.l.b16 %v204
      %v285 = vunpack.c.l.b16 %v205
      %v286 = vunpack.c.l.b16 %v206
      %v287 = vunpack.c.l.b16 %v207
      %v288 = vunpack.c.l.b16 %v208
      %v289 = vunpack.c.l.b16 %v209
      %v290 = vunpack.c.l.b16 %v210
      %v291 = vunpack.c.l.b16 %v211
      %v292 = vunpack.c.l.b16 %v212
      %v293 = vunpack.c.l.b16 %v213
      %v294 = vunpack.c.l.b16 %v214
      %v295 = vunpack.c.l.b16 %v215
      %v296 = vunpack.c.l.b16 %v216
      %v297 = vpack.c.b16 %v282, %v281
      %v298 = vpack.c.b16 %v284, %v283
      %v299 = vpack.c.b16 %v286, %v285
      %v300 = vpack.c.b16 %v288, %v287
      %v301 = vpack.c.b16 %v290, %v289
      %v302 = vpack.c.b16 %v292, %v291
      %v303 = vpack.c.b16 %v294, %v293
      %v304 = vpack.c.b16 %v296, %v295
      %313 = vmatpush.bf16.msra.mxu0 %v304
      %314 = vmatpush.bf16.msra.mxu0 %v303
      %315 = vmatpush.bf16.msra.mxu0 %v302
      %316 = vmatpush.bf16.msra.mxu0 %v301
      %317 = vmatpush.bf16.msra.mxu0 %v300
      %318 = vmatpush.bf16.msra.mxu0 %v299
      %319 = vmatpush.bf16.msra.mxu0 %v298
      %320 = vmatpush.bf16.msra.mxu0 %v297
      %321 = vmatmul.bf16.gmra.mxu0 %v249
      %v322 = vpop.f32.mrf.mxu0
      %v323 = vadd.f32 0.0, %v322
      %v324 = vpop.f32.mrf.mxu0
      %v325 = vadd.f32 0.0, %v324
      %326 = vmatmul.bf16.gmra.mxu0 %v250
      %v327 = vpop.f32.mrf.mxu0
      %v328 = vadd.f32 0.0, %v327
      %v329 = vpop.f32.mrf.mxu0
      %v330 = vadd.f32 0.0, %v329
      %331 = vmatmul.bf16.gmra.mxu0 %v251
      %v332 = vpop.f32.mrf.mxu0
      %v333 = vadd.f32 0.0, %v332
      %v334 = vpop.f32.mrf.mxu0
      %v335 = vadd.f32 0.0, %v334
      %336 = vmatmul.bf16.gmra.mxu0 %v252
      %v337 = vpop.f32.mrf.mxu0
      %v338 = vadd.f32 0.0, %v337
      %v339 = vpop.f32.mrf.mxu0
      %v340 = vadd.f32 0.0, %v339
      %341 = vmatmul.bf16.gmra.mxu0 %v253
      %v342 = vpop.f32.mrf.mxu0
      %v343 = vadd.f32 0.0, %v342
      %v344 = vpop.f32.mrf.mxu0
      %v345 = vadd.f32 0.0, %v344
      %346 = vmatmul.bf16.gmra.mxu0 %v254
      %v347 = vpop.f32.mrf.mxu0
      %v348 = vadd.f32 0.0, %v347
      %v349 = vpop.f32.mrf.mxu0
      %v350 = vadd.f32 0.0, %v349
      %351 = vmatmul.bf16.gmra.mxu0 %v255
      %v352 = vpop.f32.mrf.mxu0
      %v353 = vadd.f32 0.0, %v352
      %v354 = vpop.f32.mrf.mxu0
      %v355 = vadd.f32 0.0, %v354
      %356 = vmatmul.bf16.gmra.mxu0 %v256
      %v357 = vpop.f32.mrf.mxu0
      %v358 = vadd.f32 0.0, %v357
      %v359 = vpop.f32.mrf.mxu0
      %v360 = vadd.f32 0.0, %v359
      %361 = vdwg.mxu0
      %v362 = vpack.c.bf16 %v323, %v323
      %v363 = vpack.c.bf16 %v325, %v325
      %v364 = vpack.c.bf16 %v328, %v328
      %v365 = vpack.c.bf16 %v330, %v330
      %v366 = vpack.c.bf16 %v333, %v333
      %v367 = vpack.c.bf16 %v335, %v335
      %v368 = vpack.c.bf16 %v338, %v338
      %v369 = vpack.c.bf16 %v340, %v340
      %v370 = vpack.c.bf16 %v343, %v343
      %v371 = vpack.c.bf16 %v345, %v345
      %v372 = vpack.c.bf16 %v348, %v348
      %v373 = vpack.c.bf16 %v350, %v350
      %v374 = vpack.c.bf16 %v353, %v353
      %v375 = vpack.c.bf16 %v355, %v355
      %v376 = vpack.c.bf16 %v358, %v358
      %v377 = vpack.c.bf16 %v360, %v360
      %378 = vst [vmem:[%s179] sm:$0xf] %v362
      %379 = vst [vmem:[%s179 + $0x4] sm:$0xf] %v363
      %380 = vst [vmem:[%s179 + $0x8] sm:$0xf] %v364
      %381 = vst [vmem:[%s179 + $0xc] sm:$0xf] %v365
      %382 = vst [vmem:[%s179 + $0x10] sm:$0xf] %v366
      %383 = vst [vmem:[%s179 + $0x14] sm:$0xf] %v367
      %384 = vst [vmem:[%s179 + $0x18] sm:$0xf] %v368
      %385 = vst [vmem:[%s179 + $0x1c] sm:$0xf] %v369
      %386 = vst [vmem:[%s179 + $0x20] sm:$0xf] %v370
      %387 = vst [vmem:[%s179 + $0x24] sm:$0xf] %v371
      %388 = vst [vmem:[%s179 + $0x28] sm:$0xf] %v372
      %389 = vst [vmem:[%s179 + $0x2c] sm:$0xf] %v373
      %390 = vst [vmem:[%s179 + $0x30] sm:$0xf] %v374
      %391 = vst [vmem:[%s179 + $0x34] sm:$0xf] %v375
      %392 = vst [vmem:[%s179 + $0x38] sm:$0xf] %v376
      %393 = vst [vmem:[%s179 + $0x3c] sm:$0xf] %v377
      %v394 = vadd.f32 %v323, %v325
      %v395 = vadd.f32 %v394, %v328
      %v396 = vadd.f32 %v395, %v330
      %v397 = vadd.f32 %v396, %v333
      %v398 = vadd.f32 %v397, %v335
      %v399 = vadd.f32 %v398, %v338
      %v400 = vadd.f32 %v399, %v340
      %v401 = vadd.f32 %v400, %v343
      %v402 = vadd.f32 %v401, %v345
      %v403 = vadd.f32 %v402, %v348
      %v404 = vadd.f32 %v403, %v350
      %v405 = vadd.f32 %v404, %v353
      %v406 = vadd.f32 %v405, %v355
      %v407 = vadd.f32 %v406, %v358
      %v408 = vadd.f32 %v407, %v360
      %v409 = vrot.slane %v408, 4
      %v410 = vadd.f32 %v408, %v409
      %v411 = vrot.slane %v410, 2
      %v412 = vadd.f32 %v410, %v411
      %v413 = vrot.slane %v412, 1
      %v414 = vadd.f32 %v412, %v413
      %v415 = vmul.f32 %v323, %v323
      %v416 = vmul.f32 %v325, %v325
      %v417 = vmul.f32 %v328, %v328
      %v418 = vmul.f32 %v330, %v330
      %v419 = vmul.f32 %v333, %v333
      %v420 = vmul.f32 %v335, %v335
      %v421 = vmul.f32 %v338, %v338
      %v422 = vmul.f32 %v340, %v340
      %v423 = vmul.f32 %v343, %v343
      %v424 = vmul.f32 %v345, %v345
      %v425 = vmul.f32 %v348, %v348
      %v426 = vmul.f32 %v350, %v350
      %v427 = vmul.f32 %v353, %v353
      %v428 = vmul.f32 %v355, %v355
      %v429 = vmul.f32 %v358, %v358
      %v430 = vmul.f32 %v360, %v360
      %v431 = vadd.f32 %v415, %v416
      %v432 = vadd.f32 %v431, %v417
      %v433 = vadd.f32 %v432, %v418
      %v434 = vadd.f32 %v433, %v419
      %v435 = vadd.f32 %v434, %v420
      %v436 = vadd.f32 %v435, %v421
      %v437 = vadd.f32 %v436, %v422
      %v438 = vadd.f32 %v437, %v423
      %v439 = vadd.f32 %v438, %v424
      %v440 = vadd.f32 %v439, %v425
      %v441 = vadd.f32 %v440, %v426
      %v442 = vadd.f32 %v441, %v427
      %v443 = vadd.f32 %v442, %v428
      %v444 = vadd.f32 %v443, %v429
      %v445 = vadd.f32 %v444, %v430
      %v446 = vrot.slane %v445, 4
      %v447 = vadd.f32 %v445, %v446
      %v448 = vrot.slane %v447, 2
      %v449 = vadd.f32 %v447, %v448
      %v450 = vrot.slane %v449, 1
      %v451 = vadd.f32 %v449, %v450
      %v454 = vrot.slane %v451, 7
      %vm455 = vcmask 1040384
      %v456 = vsel %vm455, %v414, %v454
      %v458 = vlaneseq
      %vm459 = vcmp.ge.s32.totalorder %v458, 0
      %vm460 = vcmp.lt.s32.totalorder %v458, 256
      %vm461 = vmand %vm459, %vm460
      %462 = vst.msk [vmem:[%s184] sm:$0x3] %vm461, %v456
      %s463 = smul.u32 16, %s15
      %p464 = scmp.lt.s32.totalorder %s463, 63
      %s465 = scalar_select %p464, %s463, 63
      %s466 = smul.addr %s465, 4
      %s467 = scalar_lea.vmem %s2, %s466
      %p468 = scmp.lt.s32.totalorder %s15, 3
      %s469 = scalar_select %p468, %s15, 3
      %s470 = smul.addr %s469, 2
      %s471 = scalar_lea.vmem %s3, %s470
      // Predicated region
      $region29: #{bottleneck_forward.4} parent=27 // pred_check
        %p472 = pneg %p80
      $region30: #{bottleneck_forward.4} parent=27 // pred_check_branch
        %474 = sbr.rel (%p472) target = $region32
      $region31: #{bottleneck_forward.4} parent=27 // pred_region
        %s475 = smul.u32 16, %s15
      $region32: #{bottleneck_forward.4} parent=27 // pred_fallthru
        _
      // Predicated region
      $region33: #{bottleneck_forward.4} parent=27 // pred_check
        %p476 = pneg %p106
      $region34: #{bottleneck_forward.4} parent=27 // pred_check_branch
        %478 = sbr.rel (%p476) target = $region36
      $region35: #{bottleneck_forward.4} parent=27 // pred_region
        _
      $region36: #{bottleneck_forward.4} parent=27 // pred_fallthru
        _
    $region28: #{bottleneck_forward.4} parent=5 // pred_fallthru
      _
    %p479 = scmp.le.s32.totalorder 2, %s10
    // Predicated region
    $region37: #{bottleneck_forward.4} parent=5 // pred_check
      %p480 = pneg %p479
    $region38: #{bottleneck_forward.4} parent=5 // pred_check_branch
      %482 = sbr.rel (%p480) target = $region40
    $region39: #{bottleneck_forward.4} parent=5 // pred_region
      %s483 = ssub.s32 %s10, 2
      // Predicated region
      $region41: #{bottleneck_forward.4} parent=39 // pred_check
        %p484 = pneg %p86
      $region42: #{bottleneck_forward.4} parent=39 // pred_check_branch
        %486 = sbr.rel (%p484) target = $region44
      $region43: #{bottleneck_forward.4} parent=39 // pred_region
        %s487 = smul.u32 16, %s16
        %p488 = scmp.lt.s32.totalorder %s487, 63
        %s489 = scalar_select %p488, %s487, 63
        %s490 = smul.addr %s489, 4
        %s491 = scalar_lea.vmem %s2, %s490
      $region44: #{bottleneck_forward.4} parent=39 // pred_fallthru
        _
      // Predicated region
      $region45: #{bottleneck_forward.4} parent=39 // pred_check
        %p492 = pneg %p112
      $region46: #{bottleneck_forward.4} parent=39 // pred_check_branch
        %494 = sbr.rel (%p492) target = $region48
      $region47: #{bottleneck_forward.4} parent=39 // pred_region
        %p495 = scmp.lt.s32.totalorder %s16, 3
        %s496 = scalar_select %p495, %s16, 3
        %s497 = smul.addr %s496, 2
        %s498 = scalar_lea.vmem %s3, %s497
      $region48: #{bottleneck_forward.4} parent=39 // pred_fallthru
        _
    $region40: #{bottleneck_forward.4} parent=5 // pred_fallthru
      _
  $region6: #{bottleneck_forward.4} parent=0 // loop_footer
    %s14 = sadd.s32 1, %s10
  $region7: #{bottleneck_forward.4} parent=0 // loop_footer_branch
    %9 = sbr.rel target = $region3
  $region8: #{bottleneck_forward.4} parent=0 // loop_exit
    _

// kernel: bottleneck_forward.6
$region0: #{bottleneck_forward.6}
  #allocation0 [shape = 'u32[]', space=smem, size = 0x4, offset = 0x4, fixed_abs, tag = 'smem constant byte address 0x4 - core index']
  #allocation1 [shape = 'u32[72,128]{1,0:T(1,128)}', space=vmem, size = 0x9000, scoped, tag = 'internal scratch']
  %s0 = inlined_call_operand.vmem [shape: bf16[512,128], index: 0, kind: input, shape index: {}]
  %s1 = inlined_call_operand.vmem [shape: f32[1,128], index: 1, kind: input, shape index: {}]
  %s2 = inlined_call_operand.vmem [shape: f32[1,128], index: 2, kind: input, shape index: {}]
  %s3 = inlined_call_operand.vmem [shape: bf16[128,128], index: 3, kind: input, shape index: {}]
  %s4 = inlined_call_operand.vmem [shape: bf16[512,128], index: 4, kind: output, shape index: {0}]
  %s5 = inlined_call_operand.vmem [shape: f32[4,1,256], index: 5, kind: output, shape index: {1}]
  %6 = xla_tuple %s4, %s5
  %s7 = sld [smem:[#allocation0]]
  $region57: #{bottleneck_forward.6} parent=0
    _
  %s9 = ssub.s32 1, %s7
  %s10 = scalar_select 0, %s9, %s7
  loop: start=0, step=1, limit=6
  $region2: #{bottleneck_forward.6} parent=0 // loop_pre_header
    _
  $region3: #{bottleneck_forward.6} parent=0 // loop_header
    %s12 = sphi 0, %s16
    %p13 = scmp.ge.s32.totalorder %s12, 6
    %s22 = sphi 0, %s24
    %s25 = sphi 0, %s22
    %s26 = sphi 0, %s25
    %s42 = sphi 0, %s26
    %s46 = sphi 0, %s46
    %s48 = sphi 0, %s46
    %s49 = sphi 0, %s48
    %s63 = sphi 0, %s49
    %s67 = sphi 0, %s67
    %s69 = sphi 0, %s67
    %s70 = sphi 0, %s69
    %s84 = sphi 0, %s70
    %s88 = sphi 0, %s88
    %s90 = sphi 0, %s88
    %s91 = sphi 0, %s90
    %s105 = sphi 0, %s91
    %s111 = sphi 0, %s113
    %s114 = sphi 0, %s111
    %s115 = sphi 0, %s114
    %s131 = sphi 0, %s115
    %s137 = sphi 0, %s139
    %s140 = sphi 0, %s137
    %s141 = sphi 0, %s140
    %s157 = sphi 0, %s141
  $region4: #{bottleneck_forward.6} parent=0 // loop_header_branch
    %15 = sbr.rel (%p13) target = $region8
  $region5: #{bottleneck_forward.6} parent=0 // loop_body
    %s17 = ssub.s32 %s12, 1
    %s18 = ssub.s32 %s12, 2
    %s19 = sadd.s32 %s12, 1
    %s20 = ssub.s32 %s12, %s19
    %p21 = scmp.eq.s32.totalorder %s20, 0
    %s23 = sadd.s32 %s22, 1
    %s24 = scalar_select %p21, %s22, %s23
    %p27 = pneg %p21
    %p28 = scmp.eq.s32.totalorder %s12, 3
    %p29 = por %p27, %p28
    %p30 = scmp.ne.s32.totalorder %s22, %s25
    %p31 = scmp.eq.s32.totalorder %s12, 0
    %p32 = por %p30, %p31
    %p33 = scmp.ne.s32.totalorder %s22, %s25
    %p34 = scmp.eq.s32.totalorder %s17, 3
    %p35 = por %p33, %p34
    %p36 = scmp.ne.s32.totalorder %s25, %s26
    %p37 = scmp.eq.s32.totalorder %s17, 0
    %p38 = por %p36, %p37
    %p39 = scmp.ne.s32.totalorder %s25, %s26
    %p40 = scmp.eq.s32.totalorder %s18, 3
    %p41 = por %p39, %p40
    %p43 = scmp.ne.s32.totalorder %s26, %s42
    %p44 = scmp.eq.s32.totalorder %s18, 0
    %p45 = por %p43, %p44
    %s47 = sadd.s32 %s46, 1
    %p50 = scmp.eq.s32.totalorder %s12, 3
    %p51 = scmp.ne.s32.totalorder %s46, %s48
    %p52 = scmp.eq.s32.totalorder %s12, 0
    %p53 = por %p51, %p52
    %p54 = scmp.ne.s32.totalorder %s46, %s48
    %p55 = scmp.eq.s32.totalorder %s17, 3
    %p56 = por %p54, %p55
    %p57 = scmp.ne.s32.totalorder %s48, %s49
    %p58 = scmp.eq.s32.totalorder %s17, 0
    %p59 = por %p57, %p58
    %p60 = scmp.ne.s32.totalorder %s48, %s49
    %p61 = scmp.eq.s32.totalorder %s18, 3
    %p62 = por %p60, %p61
    %p64 = scmp.ne.s32.totalorder %s49, %s63
    %p65 = scmp.eq.s32.totalorder %s18, 0
    %p66 = por %p64, %p65
    %s68 = sadd.s32 %s67, 1
    %p71 = scmp.eq.s32.totalorder %s12, 3
    %p72 = scmp.ne.s32.totalorder %s67, %s69
    %p73 = scmp.eq.s32.totalorder %s12, 0
    %p74 = por %p72, %p73
    %p75 = scmp.ne.s32.totalorder %s67, %s69
    %p76 = scmp.eq.s32.totalorder %s17, 3
    %p77 = por %p75, %p76
    %p78 = scmp.ne.s32.totalorder %s69, %s70
    %p79 = scmp.eq.s32.totalorder %s17, 0
    %p80 = por %p78, %p79
    %p81 = scmp.ne.s32.totalorder %s69, %s70
    %p82 = scmp.eq.s32.totalorder %s18, 3
    %p83 = por %p81, %p82
    %p85 = scmp.ne.s32.totalorder %s70, %s84
    %p86 = scmp.eq.s32.totalorder %s18, 0
    %p87 = por %p85, %p86
    %s89 = sadd.s32 %s88, 1
    %p92 = scmp.eq.s32.totalorder %s12, 3
    %p93 = scmp.ne.s32.totalorder %s88, %s90
    %p94 = scmp.eq.s32.totalorder %s12, 0
    %p95 = por %p93, %p94
    %p96 = scmp.ne.s32.totalorder %s88, %s90
    %p97 = scmp.eq.s32.totalorder %s17, 3
    %p98 = por %p96, %p97
    %p99 = scmp.ne.s32.totalorder %s90, %s91
    %p100 = scmp.eq.s32.totalorder %s17, 0
    %p101 = por %p99, %p100
    %p102 = scmp.ne.s32.totalorder %s90, %s91
    %p103 = scmp.eq.s32.totalorder %s18, 3
    %p104 = por %p102, %p103
    %p106 = scmp.ne.s32.totalorder %s91, %s105
    %p107 = scmp.eq.s32.totalorder %s18, 0
    %p108 = por %p106, %p107
    %s109 = ssub.s32 %s12, %s19
    %p110 = scmp.eq.s32.totalorder %s109, 0
    %s112 = sadd.s32 %s111, 1
    %s113 = scalar_select %p110, %s111, %s112
    %p116 = pneg %p110
    %p117 = scmp.eq.s32.totalorder %s12, 3
    %p118 = por %p116, %p117
    %p119 = scmp.ne.s32.totalorder %s111, %s114
    %p120 = scmp.eq.s32.totalorder %s12, 0
    %p121 = por %p119, %p120
    %p122 = scmp.ne.s32.totalorder %s111, %s114
    %p123 = scmp.eq.s32.totalorder %s17, 3
    %p124 = por %p122, %p123
    %p125 = scmp.ne.s32.totalorder %s114, %s115
    %p126 = scmp.eq.s32.totalorder %s17, 0
    %p127 = por %p125, %p126
    %p128 = scmp.ne.s32.totalorder %s114, %s115
    %p129 = scmp.eq.s32.totalorder %s18, 3
    %p130 = por %p128, %p129
    %p132 = scmp.ne.s32.totalorder %s115, %s131
    %p133 = scmp.eq.s32.totalorder %s18, 0
    %p134 = por %p132, %p133
    %s135 = ssub.s32 %s12, %s19
    %p136 = scmp.eq.s32.totalorder %s135, 0
    %s138 = sadd.s32 %s137, 1
    %s139 = scalar_select %p136, %s137, %s138
    %p142 = pneg %p136
    %p143 = scmp.eq.s32.totalorder %s12, 3
    %p144 = por %p142, %p143
    %p145 = scmp.ne.s32.totalorder %s137, %s140
    %p146 = scmp.eq.s32.totalorder %s12, 0
    %p147 = por %p145, %p146
    %p148 = scmp.ne.s32.totalorder %s137, %s140
    %p149 = scmp.eq.s32.totalorder %s17, 3
    %p150 = por %p148, %p149
    %p151 = scmp.ne.s32.totalorder %s140, %s141
    %p152 = scmp.eq.s32.totalorder %s17, 0
    %p153 = por %p151, %p152
    %p154 = scmp.ne.s32.totalorder %s140, %s141
    %p155 = scmp.eq.s32.totalorder %s18, 3
    %p156 = por %p154, %p155
    %p158 = scmp.ne.s32.totalorder %s141, %s157
    %p159 = scmp.eq.s32.totalorder %s18, 0
    %p160 = por %p158, %p159
    %p161 = scmp.le.s32.totalorder 1, %s12
    %p162 = scmp.lt.s32.totalorder %s12, 5
    %p163 = pnand %p161, %p162
    %p164 = pneg %p163
    // Predicated region
    $region9: #{bottleneck_forward.6} parent=5 // pred_check
      _
    $region10: #{bottleneck_forward.6} parent=5 // pred_check_branch
      %166 = sbr.rel (%p163) target = $region12
    $region11: #{bottleneck_forward.6} parent=5 // pred_region
      %s167 = ssub.s32 %s12, 1
      // Predicated region
      $region13: #{bottleneck_forward.6} parent=11 // pred_check
        %p168 = pneg %p59
      $region14: #{bottleneck_forward.6} parent=11 // pred_check_branch
        %170 = sbr.rel (%p168) target = $region16
      $region15: #{bottleneck_forward.6} parent=11 // pred_region
        _
      $region16: #{bottleneck_forward.6} parent=11 // pred_fallthru
        _
      // Predicated region
      $region17: #{bottleneck_forward.6} parent=11 // pred_check
        %p171 = pneg %p80
      $region18: #{bottleneck_forward.6} parent=11 // pred_check_branch
        %173 = sbr.rel (%p171) target = $region20
      $region19: #{bottleneck_forward.6} parent=11 // pred_region
        _
      $region20: #{bottleneck_forward.6} parent=11 // pred_fallthru
        _
      // Predicated region
      $region21: #{bottleneck_forward.6} parent=11 // pred_check
        %p174 = pneg %p101
      $region22: #{bottleneck_forward.6} parent=11 // pred_check_branch
        %176 = sbr.rel (%p174) target = $region24
      $region23: #{bottleneck_forward.6} parent=11 // pred_region
        _
      $region24: #{bottleneck_forward.6} parent=11 // pred_fallthru
        _
    $region12: #{bottleneck_forward.6} parent=5 // pred_fallthru
      _
    %p177 = scmp.lt.s32.totalorder %s12, 4
    // Predicated region
    $region25: #{bottleneck_forward.6} parent=5 // pred_check
      %p178 = pneg %p177
    $region26: #{bottleneck_forward.6} parent=5 // pred_check_branch
      %180 = sbr.rel (%p178) target = $region28
    $region27: #{bottleneck_forward.6} parent=5 // pred_region
      // Predicated region
      $region29: #{bottleneck_forward.6} parent=27 // pred_check
        %p181 = pneg %p32
      $region30: #{bottleneck_forward.6} parent=27 // pred_check_branch
        %183 = sbr.rel (%p181) target = $region32
      $region31: #{bottleneck_forward.6} parent=27 // pred_region
        %s184 = smul.u32 16, %s12
        %p185 = scmp.lt.s32.totalorder %s184, 63
        %s186 = scalar_select %p185, %s184, 63
        %s187 = smul.addr %s186, 4
        %s188 = scalar_lea.vmem %s0, %s187
        %s189 = smul.u32 16, %s12
      $region32: #{bottleneck_forward.6} parent=27 // pred_fallthru
        _
    $region28: #{bottleneck_forward.6} parent=5 // pred_fallthru
      _
    %p190 = scmp.le.s32.totalorder 1, %s12
    %p191 = scmp.lt.s32.totalorder %s12, 5
    %p192 = pnand %p190, %p191
    %p193 = pneg %p192
    // Predicated region
    $region33: #{bottleneck_forward.6} parent=5 // pred_check
      _
    $region34: #{bottleneck_forward.6} parent=5 // pred_check_branch
      %195 = sbr.rel (%p192) target = $region36
    $region35: #{bottleneck_forward.6} parent=5 // pred_region
      %s196 = ssub.s32 %s12, 1
      %s197 = smul.u32 16, %s17
      %p198 = scmp.lt.s32.totalorder %s197, 63
      %s199 = scalar_select %p198, %s197, 63
      %s200 = smul.addr %s199, 4
      %s201 = scalar_lea.vmem %s0, %s200
      %p202 = pneg %p38
      %p203 = pneg %p35
      %p204 = pneg %p59
      %p205 = pneg %p56
      %p206 = pneg %p80
      %p207 = pneg %p77
      %p208 = pneg %p101
      %p209 = pneg %p98
      %p210 = pneg %p127
      %p211 = pneg %p124
      %s212 = smul.u32 16, %s17
      %p213 = scmp.lt.s32.totalorder %s212, 63
      %s214 = scalar_select %p213, %s212, 63
      %s215 = smul.addr %s214, 4
      %s216 = scalar_lea.vmem %s4, %s215
      %p217 = pneg %p153
      %p218 = pneg %p150
      %p219 = scmp.lt.s32.totalorder %s17, 3
      %s220 = scalar_select %p219, %s17, 3
      %s221 = smul.addr %s220, 2
      %s222 = scalar_lea.vmem %s5, %s221
      %s223 = smul.u32 16, %s17
      %p224 = scmp.lt.s32.totalorder %s223, 63
      %s225 = scalar_select %p224, %s223, 63
      %s226 = smul.addr %s225, 4
      %s227 = scalar_lea.vmem %s0, %s226
      %s228 = smul.u32 16, %s17
      %s229 = smul.u32 16, %s17
      %p230 = scmp.lt.s32.totalorder %s229, 63
      %s231 = scalar_select %p230, %s229, 63
      %s232 = smul.addr %s231, 4
      %s233 = scalar_lea.vmem %s4, %s232
      %s234 = smul.u32 16, %s17
      %p235 = scmp.lt.s32.totalorder %s17, 3
      %s236 = scalar_select %p235, %s17, 3
      %s237 = smul.addr %s236, 2
      %s238 = scalar_lea.vmem %s5, %s237
      %v239 = vld [vmem:[%s227] sm:$0xf]
      %v240 = vld [vmem:[%s227 + $0x4] sm:$0xf]
      %v241 = vld [vmem:[%s227 + $0x8] sm:$0xf]
      %v242 = vld [vmem:[%s227 + $0xc] sm:$0xf]
      %v243 = vld [vmem:[%s227 + $0x10] sm:$0xf]
      %v244 = vld [vmem:[%s227 + $0x14] sm:$0xf]
      %v245 = vld [vmem:[%s227 + $0x18] sm:$0xf]
      %v246 = vld [vmem:[%s227 + $0x1c] sm:$0xf]
      %v247 = vld [vmem:[%s227 + $0x20] sm:$0xf]
      %v248 = vld [vmem:[%s227 + $0x24] sm:$0xf]
      %v249 = vld [vmem:[%s227 + $0x28] sm:$0xf]
      %v250 = vld [vmem:[%s227 + $0x2c] sm:$0xf]
      %v251 = vld [vmem:[%s227 + $0x30] sm:$0xf]
      %v252 = vld [vmem:[%s227 + $0x34] sm:$0xf]
      %v253 = vld [vmem:[%s227 + $0x38] sm:$0xf]
      %v254 = vld [vmem:[%s227 + $0x3c] sm:$0xf]
      %v255 = vunpack.c.l.bf16 %v239
      %v256 = vunpack.c.l.bf16 %v240
      %v257 = vunpack.c.l.bf16 %v241
      %v258 = vunpack.c.l.bf16 %v242
      %v259 = vunpack.c.l.bf16 %v243
      %v260 = vunpack.c.l.bf16 %v244
      %v261 = vunpack.c.l.bf16 %v245
      %v262 = vunpack.c.l.bf16 %v246
      %v263 = vunpack.c.l.bf16 %v247
      %v264 = vunpack.c.l.bf16 %v248
      %v265 = vunpack.c.l.bf16 %v249
      %v266 = vunpack.c.l.bf16 %v250
      %v267 = vunpack.c.l.bf16 %v251
      %v268 = vunpack.c.l.bf16 %v252
      %v269 = vunpack.c.l.bf16 %v253
      %v270 = vunpack.c.l.bf16 %v254
      %v271 = vld [vmem:[%s1] sm:$0x1]
      %v273 = vperm.slane %v271, 0
      %v275 = vmul.f32 %v255, %v273
      %v276 = vmul.f32 %v256, %v273
      %v277 = vmul.f32 %v257, %v273
      %v278 = vmul.f32 %v258, %v273
      %v279 = vmul.f32 %v259, %v273
      %v280 = vmul.f32 %v260, %v273
      %v281 = vmul.f32 %v261, %v273
      %v282 = vmul.f32 %v262, %v273
      %v283 = vmul.f32 %v263, %v273
      %v284 = vmul.f32 %v264, %v273
      %v285 = vmul.f32 %v265, %v273
      %v286 = vmul.f32 %v266, %v273
      %v287 = vmul.f32 %v267, %v273
      %v288 = vmul.f32 %v268, %v273
      %v289 = vmul.f32 %v269, %v273
      %v290 = vmul.f32 %v270, %v273
      %v291 = vld [vmem:[%s2] sm:$0x1]
      %v293 = vperm.slane %v291, 0
      %v295 = vadd.f32 %v275, %v293
      %v296 = vadd.f32 %v276, %v293
      %v297 = vadd.f32 %v277, %v293
      %v298 = vadd.f32 %v278, %v293
      %v299 = vadd.f32 %v279, %v293
      %v300 = vadd.f32 %v280, %v293
      %v301 = vadd.f32 %v281, %v293
      %v302 = vadd.f32 %v282, %v293
      %v303 = vadd.f32 %v283, %v293
      %v304 = vadd.f32 %v284, %v293
      %v305 = vadd.f32 %v285, %v293
      %v306 = vadd.f32 %v286, %v293
      %v307 = vadd.f32 %v287, %v293
      %v308 = vadd.f32 %v288, %v293
      %v309 = vadd.f32 %v289, %v293
      %v310 = vadd.f32 %v290, %v293
      %v311 = vmax.f32 %v295, 0.0
      %v312 = vmax.f32 %v296, 0.0
      %v313 = vmax.f32 %v297, 0.0
      %v314 = vmax.f32 %v298, 0.0
      %v315 = vmax.f32 %v299, 0.0
      %v316 = vmax.f32 %v300, 0.0
      %v317 = vmax.f32 %v301, 0.0
      %v318 = vmax.f32 %v302, 0.0
      %v319 = vmax.f32 %v303, 0.0
      %v320 = vmax.f32 %v304, 0.0
      %v321 = vmax.f32 %v305, 0.0
      %v322 = vmax.f32 %v306, 0.0
      %v323 = vmax.f32 %v307, 0.0
      %v324 = vmax.f32 %v308, 0.0
      %v325 = vmax.f32 %v309, 0.0
      %v326 = vmax.f32 %v310, 0.0
      %v327 = vld [vmem:[%s3] sm:$0xf]
      %v328 = vld [vmem:[%s3 + $0x4] sm:$0xf]
      %v329 = vld [vmem:[%s3 + $0x8] sm:$0xf]
      %v330 = vld [vmem:[%s3 + $0xc] sm:$0xf]
      %v331 = vld [vmem:[%s3 + $0x10] sm:$0xf]
      %v332 = vld [vmem:[%s3 + $0x14] sm:$0xf]
      %v333 = vld [vmem:[%s3 + $0x18] sm:$0xf]
      %v334 = vld [vmem:[%s3 + $0x1c] sm:$0xf]
      %v335 = vld [vmem:[%s3 + $0x20] sm:$0xf]
      %v336 = vld [vmem:[%s3 + $0x24] sm:$0xf]
      %v337 = vld [vmem:[%s3 + $0x28] sm:$0xf]
      %v338 = vld [vmem:[%s3 + $0x2c] sm:$0xf]
      %v339 = vld [vmem:[%s3 + $0x30] sm:$0xf]
      %v340 = vld [vmem:[%s3 + $0x34] sm:$0xf]
      %v341 = vld [vmem:[%s3 + $0x38] sm:$0xf]
      %v342 = vld [vmem:[%s3 + $0x3c] sm:$0xf]
      %v343 = vpack.c.bf16 %v312, %v311
      %v344 = vpack.c.bf16 %v314, %v313
      %v345 = vpack.c.bf16 %v316, %v315
      %v346 = vpack.c.bf16 %v318, %v317
      %v347 = vpack.c.bf16 %v320, %v319
      %v348 = vpack.c.bf16 %v322, %v321
      %v349 = vpack.c.bf16 %v324, %v323
      %v350 = vpack.c.bf16 %v326, %v325
      %v367 = vunpack.c.l.b16 %v327
      %v368 = vunpack.c.l.b16 %v328
      %v369 = vunpack.c.l.b16 %v329
      %v370 = vunpack.c.l.b16 %v330
      %v371 = vunpack.c.l.b16 %v331
      %v372 = vunpack.c.l.b16 %v332
      %v373 = vunpack.c.l.b16 %v333
      %v374 = vunpack.c.l.b16 %v334
      %v375 = vunpack.c.l.b16 %v335
      %v376 = vunpack.c.l.b16 %v336
      %v377 = vunpack.c.l.b16 %v337
      %v378 = vunpack.c.l.b16 %v338
      %v379 = vunpack.c.l.b16 %v339
      %v380 = vunpack.c.l.b16 %v340
      %v381 = vunpack.c.l.b16 %v341
      %v382 = vunpack.c.l.b16 %v342
      %v383 = vpack.c.b16 %v368, %v367
      %v384 = vpack.c.b16 %v370, %v369
      %v385 = vpack.c.b16 %v372, %v371
      %v386 = vpack.c.b16 %v374, %v373
      %v387 = vpack.c.b16 %v376, %v375
      %v388 = vpack.c.b16 %v378, %v377
      %v389 = vpack.c.b16 %v380, %v379
      %v390 = vpack.c.b16 %v382, %v381
      %399 = vmatpush.bf16.msra.mxu0 %v390
      %400 = vmatpush.bf16.msra.mxu0 %v389
      %401 = vmatpush.bf16.msra.mxu0 %v388
      %402 = vmatpush.bf16.msra.mxu0 %v387
      %403 = vmatpush.bf16.msra.mxu0 %v386
      %404 = vmatpush.bf16.msra.mxu0 %v385
      %405 = vmatpush.bf16.msra.mxu0 %v384
      %406 = vmatpush.bf16.msra.mxu0 %v383
      %407 = vmatmul.bf16.gmra.mxu0 %v343
      %v408 = vpop.f32.mrf.mxu0
      %v409 = vadd.f32 0.0, %v408
      %v410 = vpop.f32.mrf.mxu0
      %v411 = vadd.f32 0.0, %v410
      %412 = vmatmul.bf16.gmra.mxu0 %v344
      %v413 = vpop.f32.mrf.mxu0
      %v414 = vadd.f32 0.0, %v413
      %v415 = vpop.f32.mrf.mxu0
      %v416 = vadd.f32 0.0, %v415
      %417 = vmatmul.bf16.gmra.mxu0 %v345
      %v418 = vpop.f32.mrf.mxu0
      %v419 = vadd.f32 0.0, %v418
      %v420 = vpop.f32.mrf.mxu0
      %v421 = vadd.f32 0.0, %v420
      %422 = vmatmul.bf16.gmra.mxu0 %v346
      %v423 = vpop.f32.mrf.mxu0
      %v424 = vadd.f32 0.0, %v423
      %v425 = vpop.f32.mrf.mxu0
      %v426 = vadd.f32 0.0, %v425
      %427 = vmatmul.bf16.gmra.mxu0 %v347
      %v428 = vpop.f32.mrf.mxu0
      %v429 = vadd.f32 0.0, %v428
      %v430 = vpop.f32.mrf.mxu0
      %v431 = vadd.f32 0.0, %v430
      %432 = vmatmul.bf16.gmra.mxu0 %v348
      %v433 = vpop.f32.mrf.mxu0
      %v434 = vadd.f32 0.0, %v433
      %v435 = vpop.f32.mrf.mxu0
      %v436 = vadd.f32 0.0, %v435
      %437 = vmatmul.bf16.gmra.mxu0 %v349
      %v438 = vpop.f32.mrf.mxu0
      %v439 = vadd.f32 0.0, %v438
      %v440 = vpop.f32.mrf.mxu0
      %v441 = vadd.f32 0.0, %v440
      %442 = vmatmul.bf16.gmra.mxu0 %v350
      %v443 = vpop.f32.mrf.mxu0
      %v444 = vadd.f32 0.0, %v443
      %v445 = vpop.f32.mrf.mxu0
      %v446 = vadd.f32 0.0, %v445
      %447 = vdwg.mxu0
      %v448 = vpack.c.bf16 %v409, %v409
      %v449 = vpack.c.bf16 %v411, %v411
      %v450 = vpack.c.bf16 %v414, %v414
      %v451 = vpack.c.bf16 %v416, %v416
      %v452 = vpack.c.bf16 %v419, %v419
      %v453 = vpack.c.bf16 %v421, %v421
      %v454 = vpack.c.bf16 %v424, %v424
      %v455 = vpack.c.bf16 %v426, %v426
      %v456 = vpack.c.bf16 %v429, %v429
      %v457 = vpack.c.bf16 %v431, %v431
      %v458 = vpack.c.bf16 %v434, %v434
      %v459 = vpack.c.bf16 %v436, %v436
      %v460 = vpack.c.bf16 %v439, %v439
      %v461 = vpack.c.bf16 %v441, %v441
      %v462 = vpack.c.bf16 %v444, %v444
      %v463 = vpack.c.bf16 %v446, %v446
      %464 = vst [vmem:[%s233] sm:$0xf] %v448
      %465 = vst [vmem:[%s233 + $0x4] sm:$0xf] %v449
      %466 = vst [vmem:[%s233 + $0x8] sm:$0xf] %v450
      %467 = vst [vmem:[%s233 + $0xc] sm:$0xf] %v451
      %468 = vst [vmem:[%s233 + $0x10] sm:$0xf] %v452
      %469 = vst [vmem:[%s233 + $0x14] sm:$0xf] %v453
      %470 = vst [vmem:[%s233 + $0x18] sm:$0xf] %v454
      %471 = vst [vmem:[%s233 + $0x1c] sm:$0xf] %v455
      %472 = vst [vmem:[%s233 + $0x20] sm:$0xf] %v456
      %473 = vst [vmem:[%s233 + $0x24] sm:$0xf] %v457
      %474 = vst [vmem:[%s233 + $0x28] sm:$0xf] %v458
      %475 = vst [vmem:[%s233 + $0x2c] sm:$0xf] %v459
      %476 = vst [vmem:[%s233 + $0x30] sm:$0xf] %v460
      %477 = vst [vmem:[%s233 + $0x34] sm:$0xf] %v461
      %478 = vst [vmem:[%s233 + $0x38] sm:$0xf] %v462
      %479 = vst [vmem:[%s233 + $0x3c] sm:$0xf] %v463
      %v480 = vadd.f32 %v409, %v411
      %v481 = vadd.f32 %v480, %v414
      %v482 = vadd.f32 %v481, %v416
      %v483 = vadd.f32 %v482, %v419
      %v484 = vadd.f32 %v483, %v421
      %v485 = vadd.f32 %v484, %v424
      %v486 = vadd.f32 %v485, %v426
      %v487 = vadd.f32 %v486, %v429
      %v488 = vadd.f32 %v487, %v431
      %v489 = vadd.f32 %v488, %v434
      %v490 = vadd.f32 %v489, %v436
      %v491 = vadd.f32 %v490, %v439
      %v492 = vadd.f32 %v491, %v441
      %v493 = vadd.f32 %v492, %v444
      %v494 = vadd.f32 %v493, %v446
      %v495 = vrot.slane %v494, 4
      %v496 = vadd.f32 %v494, %v495
      %v497 = vrot.slane %v496, 2
      %v498 = vadd.f32 %v496, %v497
      %v499 = vrot.slane %v498, 1
      %v500 = vadd.f32 %v498, %v499
      %v501 = vmul.f32 %v409, %v409
      %v502 = vmul.f32 %v411, %v411
      %v503 = vmul.f32 %v414, %v414
      %v504 = vmul.f32 %v416, %v416
      %v505 = vmul.f32 %v419, %v419
      %v506 = vmul.f32 %v421, %v421
      %v507 = vmul.f32 %v424, %v424
      %v508 = vmul.f32 %v426, %v426
      %v509 = vmul.f32 %v429, %v429
      %v510 = vmul.f32 %v431, %v431
      %v511 = vmul.f32 %v434, %v434
      %v512 = vmul.f32 %v436, %v436
      %v513 = vmul.f32 %v439, %v439
      %v514 = vmul.f32 %v441, %v441
      %v515 = vmul.f32 %v444, %v444
      %v516 = vmul.f32 %v446, %v446
      %v517 = vadd.f32 %v501, %v502
      %v518 = vadd.f32 %v517, %v503
      %v519 = vadd.f32 %v518, %v504
      %v520 = vadd.f32 %v519, %v505
      %v521 = vadd.f32 %v520, %v506
      %v522 = vadd.f32 %v521, %v507
      %v523 = vadd.f32 %v522, %v508
      %v524 = vadd.f32 %v523, %v509
      %v525 = vadd.f32 %v524, %v510
      %v526 = vadd.f32 %v525, %v511
      %v527 = vadd.f32 %v526, %v512
      %v528 = vadd.f32 %v527, %v513
      %v529 = vadd.f32 %v528, %v514
      %v530 = vadd.f32 %v529, %v515
      %v531 = vadd.f32 %v530, %v516
      %v532 = vrot.slane %v531, 4
      %v533 = vadd.f32 %v531, %v532
      %v534 = vrot.slane %v533, 2
      %v535 = vadd.f32 %v533, %v534
      %v536 = vrot.slane %v535, 1
      %v537 = vadd.f32 %v535, %v536
      %v540 = vrot.slane %v537, 7
      %vm541 = vcmask 1040384
      %v542 = vsel %vm541, %v500, %v540
      %v544 = vlaneseq
      %vm545 = vcmp.ge.s32.totalorder %v544, 0
      %vm546 = vcmp.lt.s32.totalorder %v544, 256
      %vm547 = vmand %vm545, %vm546
      %548 = vst.msk [vmem:[%s238] sm:$0x3] %vm547, %v542
      %s549 = smul.u32 16, %s17
      %p550 = scmp.lt.s32.totalorder %s549, 63
      %s551 = scalar_select %p550, %s549, 63
      %s552 = smul.addr %s551, 4
      %s553 = scalar_lea.vmem %s4, %s552
      %p554 = scmp.lt.s32.totalorder %s17, 3
      %s555 = scalar_select %p554, %s17, 3
      %s556 = smul.addr %s555, 2
      %s557 = scalar_lea.vmem %s5, %s556
      // Predicated region
      $region37: #{bottleneck_forward.6} parent=35 // pred_check
        %p558 = pneg %p124
      $region38: #{bottleneck_forward.6} parent=35 // pred_check_branch
        %560 = sbr.rel (%p558) target = $region40
      $region39: #{bottleneck_forward.6} parent=35 // pred_region
        %s561 = smul.u32 16, %s17
      $region40: #{bottleneck_forward.6} parent=35 // pred_fallthru
        _
      // Predicated region
      $region41: #{bottleneck_forward.6} parent=35 // pred_check
        %p562 = pneg %p150
      $region42: #{bottleneck_forward.6} parent=35 // pred_check_branch
        %564 = sbr.rel (%p562) target = $region44
      $region43: #{bottleneck_forward.6} parent=35 // pred_region
        _
      $region44: #{bottleneck_forward.6} parent=35 // pred_fallthru
        _
    $region36: #{bottleneck_forward.6} parent=5 // pred_fallthru
      _
    %p565 = scmp.le.s32.totalorder 2, %s12
    // Predicated region
    $region45: #{bottleneck_forward.6} parent=5 // pred_check
      %p566 = pneg %p565
    $region46: #{bottleneck_forward.6} parent=5 // pred_check_branch
      %568 = sbr.rel (%p566) target = $region48
    $region47: #{bottleneck_forward.6} parent=5 // pred_region
      %s569 = ssub.s32 %s12, 2
      // Predicated region
      $region49: #{bottleneck_forward.6} parent=47 // pred_check
        %p570 = pneg %p130
      $region50: #{bottleneck_forward.6} parent=47 // pred_check_branch
        %572 = sbr.rel (%p570) target = $region52
      $region51: #{bottleneck_forward.6} parent=47 // pred_region
        %s573 = smul.u32 16, %s18
        %p574 = scmp.lt.s32.totalorder %s573, 63
        %s575 = scalar_select %p574, %s573, 63
        %s576 = smul.addr %s575, 4
        %s577 = scalar_lea.vmem %s4, %s576
      $region52: #{bottleneck_forward.6} parent=47 // pred_fallthru
        _
      // Predicated region
      $region53: #{bottleneck_forward.6} parent=47 // pred_check
        %p578 = pneg %p156
      $region54: #{bottleneck_forward.6} parent=47 // pred_check_branch
        %580 = sbr.rel (%p578) target = $region56
      $region55: #{bottleneck_forward.6} parent=47 // pred_region
        %p581 = scmp.lt.s32.totalorder %s18, 3
        %s582 = scalar_select %p581, %s18, 3
        %s583 = smul.addr %s582, 2
        %s584 = scalar_lea.vmem %s5, %s583
      $region56: #{bottleneck_forward.6} parent=47 // pred_fallthru
        _
    $region48: #{bottleneck_forward.6} parent=5 // pred_fallthru
      _
  $region6: #{bottleneck_forward.6} parent=0 // loop_footer
    %s16 = sadd.s32 1, %s12
  $region7: #{bottleneck_forward.6} parent=0 // loop_footer_branch
    %11 = sbr.rel target = $region3
  $region8: #{bottleneck_forward.6} parent=0 // loop_exit
    _

// kernel: bottleneck_forward.7
$region0: #{bottleneck_forward.7}
  #allocation0 [shape = 'u32[]', space=smem, size = 0x4, offset = 0x4, fixed_abs, tag = 'smem constant byte address 0x4 - core index']
  #allocation1 [shape = 'u32[72,128]{1,0:T(1,128)}', space=vmem, size = 0x9000, scoped, tag = 'internal scratch']
  %s0 = inlined_call_operand.vmem [shape: bf16[512,128], index: 0, kind: input, shape index: {}]
  %s1 = inlined_call_operand.vmem [shape: f32[1,128], index: 1, kind: input, shape index: {}]
  %s2 = inlined_call_operand.vmem [shape: f32[1,128], index: 2, kind: input, shape index: {}]
  %s3 = inlined_call_operand.vmem [shape: bf16[512,128], index: 3, kind: input, shape index: {}]
  %s4 = inlined_call_operand.vmem [shape: f32[512,128], index: 4, kind: output, shape index: {}]
  %s5 = sld [smem:[#allocation0]]
  $region49: #{bottleneck_forward.7} parent=0
    _
  %s7 = ssub.s32 1, %s5
  %s8 = scalar_select 0, %s7, %s5
  loop: start=0, step=1, limit=6
  $region2: #{bottleneck_forward.7} parent=0 // loop_pre_header
    _
  $region3: #{bottleneck_forward.7} parent=0 // loop_header
    %s10 = sphi 0, %s14
    %p11 = scmp.ge.s32.totalorder %s10, 6
    %s20 = sphi 0, %s22
    %s23 = sphi 0, %s20
    %s24 = sphi 0, %s23
    %s40 = sphi 0, %s24
    %s44 = sphi 0, %s44
    %s46 = sphi 0, %s44
    %s47 = sphi 0, %s46
    %s61 = sphi 0, %s47
    %s65 = sphi 0, %s65
    %s67 = sphi 0, %s65
    %s68 = sphi 0, %s67
    %s82 = sphi 0, %s68
    %s88 = sphi 0, %s90
    %s91 = sphi 0, %s88
    %s92 = sphi 0, %s91
    %s108 = sphi 0, %s92
    %s114 = sphi 0, %s116
    %s117 = sphi 0, %s114
    %s118 = sphi 0, %s117
    %s134 = sphi 0, %s118
  $region4: #{bottleneck_forward.7} parent=0 // loop_header_branch
    %13 = sbr.rel (%p11) target = $region8
  $region5: #{bottleneck_forward.7} parent=0 // loop_body
    %s15 = ssub.s32 %s10, 1
    %s16 = ssub.s32 %s10, 2
    %s17 = sadd.s32 %s10, 1
    %s18 = ssub.s32 %s10, %s17
    %p19 = scmp.eq.s32.totalorder %s18, 0
    %s21 = sadd.s32 %s20, 1
    %s22 = scalar_select %p19, %s20, %s21
    %p25 = pneg %p19
    %p26 = scmp.eq.s32.totalorder %s10, 3
    %p27 = por %p25, %p26
    %p28 = scmp.ne.s32.totalorder %s20, %s23
    %p29 = scmp.eq.s32.totalorder %s10, 0
    %p30 = por %p28, %p29
    %p31 = scmp.ne.s32.totalorder %s20, %s23
    %p32 = scmp.eq.s32.totalorder %s15, 3
    %p33 = por %p31, %p32
    %p34 = scmp.ne.s32.totalorder %s23, %s24
    %p35 = scmp.eq.s32.totalorder %s15, 0
    %p36 = por %p34, %p35
    %p37 = scmp.ne.s32.totalorder %s23, %s24
    %p38 = scmp.eq.s32.totalorder %s16, 3
    %p39 = por %p37, %p38
    %p41 = scmp.ne.s32.totalorder %s24, %s40
    %p42 = scmp.eq.s32.totalorder %s16, 0
    %p43 = por %p41, %p42
    %s45 = sadd.s32 %s44, 1
    %p48 = scmp.eq.s32.totalorder %s10, 3
    %p49 = scmp.ne.s32.totalorder %s44, %s46
    %p50 = scmp.eq.s32.totalorder %s10, 0
    %p51 = por %p49, %p50
    %p52 = scmp.ne.s32.totalorder %s44, %s46
    %p53 = scmp.eq.s32.totalorder %s15, 3
    %p54 = por %p52, %p53
    %p55 = scmp.ne.s32.totalorder %s46, %s47
    %p56 = scmp.eq.s32.totalorder %s15, 0
    %p57 = por %p55, %p56
    %p58 = scmp.ne.s32.totalorder %s46, %s47
    %p59 = scmp.eq.s32.totalorder %s16, 3
    %p60 = por %p58, %p59
    %p62 = scmp.ne.s32.totalorder %s47, %s61
    %p63 = scmp.eq.s32.totalorder %s16, 0
    %p64 = por %p62, %p63
    %s66 = sadd.s32 %s65, 1
    %p69 = scmp.eq.s32.totalorder %s10, 3
    %p70 = scmp.ne.s32.totalorder %s65, %s67
    %p71 = scmp.eq.s32.totalorder %s10, 0
    %p72 = por %p70, %p71
    %p73 = scmp.ne.s32.totalorder %s65, %s67
    %p74 = scmp.eq.s32.totalorder %s15, 3
    %p75 = por %p73, %p74
    %p76 = scmp.ne.s32.totalorder %s67, %s68
    %p77 = scmp.eq.s32.totalorder %s15, 0
    %p78 = por %p76, %p77
    %p79 = scmp.ne.s32.totalorder %s67, %s68
    %p80 = scmp.eq.s32.totalorder %s16, 3
    %p81 = por %p79, %p80
    %p83 = scmp.ne.s32.totalorder %s68, %s82
    %p84 = scmp.eq.s32.totalorder %s16, 0
    %p85 = por %p83, %p84
    %s86 = ssub.s32 %s10, %s17
    %p87 = scmp.eq.s32.totalorder %s86, 0
    %s89 = sadd.s32 %s88, 1
    %s90 = scalar_select %p87, %s88, %s89
    %p93 = pneg %p87
    %p94 = scmp.eq.s32.totalorder %s10, 3
    %p95 = por %p93, %p94
    %p96 = scmp.ne.s32.totalorder %s88, %s91
    %p97 = scmp.eq.s32.totalorder %s10, 0
    %p98 = por %p96, %p97
    %p99 = scmp.ne.s32.totalorder %s88, %s91
    %p100 = scmp.eq.s32.totalorder %s15, 3
    %p101 = por %p99, %p100
    %p102 = scmp.ne.s32.totalorder %s91, %s92
    %p103 = scmp.eq.s32.totalorder %s15, 0
    %p104 = por %p102, %p103
    %p105 = scmp.ne.s32.totalorder %s91, %s92
    %p106 = scmp.eq.s32.totalorder %s16, 3
    %p107 = por %p105, %p106
    %p109 = scmp.ne.s32.totalorder %s92, %s108
    %p110 = scmp.eq.s32.totalorder %s16, 0
    %p111 = por %p109, %p110
    %s112 = ssub.s32 %s10, %s17
    %p113 = scmp.eq.s32.totalorder %s112, 0
    %s115 = sadd.s32 %s114, 1
    %s116 = scalar_select %p113, %s114, %s115
    %p119 = pneg %p113
    %p120 = scmp.eq.s32.totalorder %s10, 3
    %p121 = por %p119, %p120
    %p122 = scmp.ne.s32.totalorder %s114, %s117
    %p123 = scmp.eq.s32.totalorder %s10, 0
    %p124 = por %p122, %p123
    %p125 = scmp.ne.s32.totalorder %s114, %s117
    %p126 = scmp.eq.s32.totalorder %s15, 3
    %p127 = por %p125, %p126
    %p128 = scmp.ne.s32.totalorder %s117, %s118
    %p129 = scmp.eq.s32.totalorder %s15, 0
    %p130 = por %p128, %p129
    %p131 = scmp.ne.s32.totalorder %s117, %s118
    %p132 = scmp.eq.s32.totalorder %s16, 3
    %p133 = por %p131, %p132
    %p135 = scmp.ne.s32.totalorder %s118, %s134
    %p136 = scmp.eq.s32.totalorder %s16, 0
    %p137 = por %p135, %p136
    %p138 = scmp.le.s32.totalorder 1, %s10
    %p139 = scmp.lt.s32.totalorder %s10, 5
    %p140 = pnand %p138, %p139
    %p141 = pneg %p140
    // Predicated region
    $region9: #{bottleneck_forward.7} parent=5 // pred_check
      _
    $region10: #{bottleneck_forward.7} parent=5 // pred_check_branch
      %143 = sbr.rel (%p140) target = $region12
    $region11: #{bottleneck_forward.7} parent=5 // pred_region
      %s144 = ssub.s32 %s10, 1
      // Predicated region
      $region13: #{bottleneck_forward.7} parent=11 // pred_check
        %p145 = pneg %p57
      $region14: #{bottleneck_forward.7} parent=11 // pred_check_branch
        %147 = sbr.rel (%p145) target = $region16
      $region15: #{bottleneck_forward.7} parent=11 // pred_region
        _
      $region16: #{bottleneck_forward.7} parent=11 // pred_fallthru
        _
      // Predicated region
      $region17: #{bottleneck_forward.7} parent=11 // pred_check
        %p148 = pneg %p78
      $region18: #{bottleneck_forward.7} parent=11 // pred_check_branch
        %150 = sbr.rel (%p148) target = $region20
      $region19: #{bottleneck_forward.7} parent=11 // pred_region
        _
      $region20: #{bottleneck_forward.7} parent=11 // pred_fallthru
        _
    $region12: #{bottleneck_forward.7} parent=5 // pred_fallthru
      _
    %p151 = scmp.lt.s32.totalorder %s10, 4
    // Predicated region
    $region21: #{bottleneck_forward.7} parent=5 // pred_check
      %p152 = pneg %p151
    $region22: #{bottleneck_forward.7} parent=5 // pred_check_branch
      %154 = sbr.rel (%p152) target = $region24
    $region23: #{bottleneck_forward.7} parent=5 // pred_region
      // Predicated region
      $region25: #{bottleneck_forward.7} parent=23 // pred_check
        %p155 = pneg %p30
      $region26: #{bottleneck_forward.7} parent=23 // pred_check_branch
        %157 = sbr.rel (%p155) target = $region28
      $region27: #{bottleneck_forward.7} parent=23 // pred_region
        %s158 = smul.u32 16, %s10
        %p159 = scmp.lt.s32.totalorder %s158, 63
        %s160 = scalar_select %p159, %s158, 63
        %s161 = smul.addr %s160, 4
        %s162 = scalar_lea.vmem %s0, %s161
        %s163 = smul.u32 16, %s10
      $region28: #{bottleneck_forward.7} parent=23 // pred_fallthru
        _
      // Predicated region
      $region29: #{bottleneck_forward.7} parent=23 // pred_check
        %p164 = pneg %p98
      $region30: #{bottleneck_forward.7} parent=23 // pred_check_branch
        %166 = sbr.rel (%p164) target = $region32
      $region31: #{bottleneck_forward.7} parent=23 // pred_region
        %s167 = smul.u32 16, %s10
        %p168 = scmp.lt.s32.totalorder %s167, 63
        %s169 = scalar_select %p168, %s167, 63
        %s170 = smul.addr %s169, 4
        %s171 = scalar_lea.vmem %s3, %s170
        %s172 = smul.u32 16, %s10
      $region32: #{bottleneck_forward.7} parent=23 // pred_fallthru
        _
    $region24: #{bottleneck_forward.7} parent=5 // pred_fallthru
      _
    %p173 = scmp.le.s32.totalorder 1, %s10
    %p174 = scmp.lt.s32.totalorder %s10, 5
    %p175 = pnand %p173, %p174
    %p176 = pneg %p175
    // Predicated region
    $region33: #{bottleneck_forward.7} parent=5 // pred_check
      _
    $region34: #{bottleneck_forward.7} parent=5 // pred_check_branch
      %178 = sbr.rel (%p175) target = $region36
    $region35: #{bottleneck_forward.7} parent=5 // pred_region
      %s179 = ssub.s32 %s10, 1
      %s180 = smul.u32 16, %s15
      %p181 = scmp.lt.s32.totalorder %s180, 63
      %s182 = scalar_select %p181, %s180, 63
      %s183 = smul.addr %s182, 4
      %s184 = scalar_lea.vmem %s0, %s183
      %p185 = pneg %p36
      %p186 = pneg %p33
      %p187 = pneg %p57
      %p188 = pneg %p54
      %p189 = pneg %p78
      %p190 = pneg %p75
      %s191 = smul.u32 16, %s15
      %p192 = scmp.lt.s32.totalorder %s191, 63
      %s193 = scalar_select %p192, %s191, 63
      %s194 = smul.addr %s193, 4
      %s195 = scalar_lea.vmem %s3, %s194
      %p196 = pneg %p104
      %p197 = pneg %p101
      %p198 = pneg %p130
      %p199 = pneg %p127
      %s200 = smul.u32 16, %s15
      %p201 = scmp.lt.s32.totalorder %s200, 63
      %s202 = scalar_select %p201, %s200, 63
      %s203 = smul.addr %s202, 8
      %s204 = scalar_lea.vmem %s4, %s203
      %s205 = smul.u32 16, %s15
      %p206 = scmp.lt.s32.totalorder %s205, 63
      %s207 = scalar_select %p206, %s205, 63
      %s208 = smul.addr %s207, 4
      %s209 = scalar_lea.vmem %s0, %s208
      %s210 = smul.u32 16, %s15
      %s211 = smul.u32 16, %s15
      %p212 = scmp.lt.s32.totalorder %s211, 63
      %s213 = scalar_select %p212, %s211, 63
      %s214 = smul.addr %s213, 4
      %s215 = scalar_lea.vmem %s3, %s214
      %s216 = smul.u32 16, %s15
      %s217 = smul.u32 16, %s15
      %p218 = scmp.lt.s32.totalorder %s217, 63
      %s219 = scalar_select %p218, %s217, 63
      %s220 = smul.addr %s219, 8
      %s221 = scalar_lea.vmem %s4, %s220
      %s222 = smul.u32 16, %s15
      %v223 = vld [vmem:[%s209] sm:$0xf]
      %v224 = vld [vmem:[%s209 + $0x4] sm:$0xf]
      %v225 = vld [vmem:[%s209 + $0x8] sm:$0xf]
      %v226 = vld [vmem:[%s209 + $0xc] sm:$0xf]
      %v227 = vld [vmem:[%s209 + $0x10] sm:$0xf]
      %v228 = vld [vmem:[%s209 + $0x14] sm:$0xf]
      %v229 = vld [vmem:[%s209 + $0x18] sm:$0xf]
      %v230 = vld [vmem:[%s209 + $0x1c] sm:$0xf]
      %v231 = vld [vmem:[%s209 + $0x20] sm:$0xf]
      %v232 = vld [vmem:[%s209 + $0x24] sm:$0xf]
      %v233 = vld [vmem:[%s209 + $0x28] sm:$0xf]
      %v234 = vld [vmem:[%s209 + $0x2c] sm:$0xf]
      %v235 = vld [vmem:[%s209 + $0x30] sm:$0xf]
      %v236 = vld [vmem:[%s209 + $0x34] sm:$0xf]
      %v237 = vld [vmem:[%s209 + $0x38] sm:$0xf]
      %v238 = vld [vmem:[%s209 + $0x3c] sm:$0xf]
      %v239 = vunpack.c.l.bf16 %v223
      %v240 = vunpack.c.l.bf16 %v224
      %v241 = vunpack.c.l.bf16 %v225
      %v242 = vunpack.c.l.bf16 %v226
      %v243 = vunpack.c.l.bf16 %v227
      %v244 = vunpack.c.l.bf16 %v228
      %v245 = vunpack.c.l.bf16 %v229
      %v246 = vunpack.c.l.bf16 %v230
      %v247 = vunpack.c.l.bf16 %v231
      %v248 = vunpack.c.l.bf16 %v232
      %v249 = vunpack.c.l.bf16 %v233
      %v250 = vunpack.c.l.bf16 %v234
      %v251 = vunpack.c.l.bf16 %v235
      %v252 = vunpack.c.l.bf16 %v236
      %v253 = vunpack.c.l.bf16 %v237
      %v254 = vunpack.c.l.bf16 %v238
      %v255 = vld [vmem:[%s1] sm:$0x1]
      %v257 = vperm.slane %v255, 0
      %v259 = vmul.f32 %v239, %v257
      %v260 = vmul.f32 %v240, %v257
      %v261 = vmul.f32 %v241, %v257
      %v262 = vmul.f32 %v242, %v257
      %v263 = vmul.f32 %v243, %v257
      %v264 = vmul.f32 %v244, %v257
      %v265 = vmul.f32 %v245, %v257
      %v266 = vmul.f32 %v246, %v257
      %v267 = vmul.f32 %v247, %v257
      %v268 = vmul.f32 %v248, %v257
      %v269 = vmul.f32 %v249, %v257
      %v270 = vmul.f32 %v250, %v257
      %v271 = vmul.f32 %v251, %v257
      %v272 = vmul.f32 %v252, %v257
      %v273 = vmul.f32 %v253, %v257
      %v274 = vmul.f32 %v254, %v257
      %v275 = vld [vmem:[%s2] sm:$0x1]
      %v277 = vperm.slane %v275, 0
      %v279 = vadd.f32 %v259, %v277
      %v280 = vadd.f32 %v260, %v277
      %v281 = vadd.f32 %v261, %v277
      %v282 = vadd.f32 %v262, %v277
      %v283 = vadd.f32 %v263, %v277
      %v284 = vadd.f32 %v264, %v277
      %v285 = vadd.f32 %v265, %v277
      %v286 = vadd.f32 %v266, %v277
      %v287 = vadd.f32 %v267, %v277
      %v288 = vadd.f32 %v268, %v277
      %v289 = vadd.f32 %v269, %v277
      %v290 = vadd.f32 %v270, %v277
      %v291 = vadd.f32 %v271, %v277
      %v292 = vadd.f32 %v272, %v277
      %v293 = vadd.f32 %v273, %v277
      %v294 = vadd.f32 %v274, %v277
      %v295 = vld [vmem:[%s215] sm:$0xf]
      %v296 = vld [vmem:[%s215 + $0x4] sm:$0xf]
      %v297 = vld [vmem:[%s215 + $0x8] sm:$0xf]
      %v298 = vld [vmem:[%s215 + $0xc] sm:$0xf]
      %v299 = vld [vmem:[%s215 + $0x10] sm:$0xf]
      %v300 = vld [vmem:[%s215 + $0x14] sm:$0xf]
      %v301 = vld [vmem:[%s215 + $0x18] sm:$0xf]
      %v302 = vld [vmem:[%s215 + $0x1c] sm:$0xf]
      %v303 = vld [vmem:[%s215 + $0x20] sm:$0xf]
      %v304 = vld [vmem:[%s215 + $0x24] sm:$0xf]
      %v305 = vld [vmem:[%s215 + $0x28] sm:$0xf]
      %v306 = vld [vmem:[%s215 + $0x2c] sm:$0xf]
      %v307 = vld [vmem:[%s215 + $0x30] sm:$0xf]
      %v308 = vld [vmem:[%s215 + $0x34] sm:$0xf]
      %v309 = vld [vmem:[%s215 + $0x38] sm:$0xf]
      %v310 = vld [vmem:[%s215 + $0x3c] sm:$0xf]
      %v311 = vunpack.c.l.bf16 %v295
      %v312 = vunpack.c.l.bf16 %v296
      %v313 = vunpack.c.l.bf16 %v297
      %v314 = vunpack.c.l.bf16 %v298
      %v315 = vunpack.c.l.bf16 %v299
      %v316 = vunpack.c.l.bf16 %v300
      %v317 = vunpack.c.l.bf16 %v301
      %v318 = vunpack.c.l.bf16 %v302
      %v319 = vunpack.c.l.bf16 %v303
      %v320 = vunpack.c.l.bf16 %v304
      %v321 = vunpack.c.l.bf16 %v305
      %v322 = vunpack.c.l.bf16 %v306
      %v323 = vunpack.c.l.bf16 %v307
      %v324 = vunpack.c.l.bf16 %v308
      %v325 = vunpack.c.l.bf16 %v309
      %v326 = vunpack.c.l.bf16 %v310
      %v327 = vadd.f32 %v279, %v311
      %v328 = vadd.f32 %v280, %v312
      %v329 = vadd.f32 %v281, %v313
      %v330 = vadd.f32 %v282, %v314
      %v331 = vadd.f32 %v283, %v315
      %v332 = vadd.f32 %v284, %v316
      %v333 = vadd.f32 %v285, %v317
      %v334 = vadd.f32 %v286, %v318
      %v335 = vadd.f32 %v287, %v319
      %v336 = vadd.f32 %v288, %v320
      %v337 = vadd.f32 %v289, %v321
      %v338 = vadd.f32 %v290, %v322
      %v339 = vadd.f32 %v291, %v323
      %v340 = vadd.f32 %v292, %v324
      %v341 = vadd.f32 %v293, %v325
      %v342 = vadd.f32 %v294, %v326
      %v343 = vmax.f32 %v327, 0.0
      %v344 = vmax.f32 %v328, 0.0
      %v345 = vmax.f32 %v329, 0.0
      %v346 = vmax.f32 %v330, 0.0
      %v347 = vmax.f32 %v331, 0.0
      %v348 = vmax.f32 %v332, 0.0
      %v349 = vmax.f32 %v333, 0.0
      %v350 = vmax.f32 %v334, 0.0
      %v351 = vmax.f32 %v335, 0.0
      %v352 = vmax.f32 %v336, 0.0
      %v353 = vmax.f32 %v337, 0.0
      %v354 = vmax.f32 %v338, 0.0
      %v355 = vmax.f32 %v339, 0.0
      %v356 = vmax.f32 %v340, 0.0
      %v357 = vmax.f32 %v341, 0.0
      %v358 = vmax.f32 %v342, 0.0
      %359 = vst [vmem:[%s221] sm:$0xff] %v343
      %360 = vst [vmem:[%s221 + $0x8] sm:$0xff] %v344
      %361 = vst [vmem:[%s221 + $0x10] sm:$0xff] %v345
      %362 = vst [vmem:[%s221 + $0x18] sm:$0xff] %v346
      %363 = vst [vmem:[%s221 + $0x20] sm:$0xff] %v347
      %364 = vst [vmem:[%s221 + $0x28] sm:$0xff] %v348
      %365 = vst [vmem:[%s221 + $0x30] sm:$0xff] %v349
      %366 = vst [vmem:[%s221 + $0x38] sm:$0xff] %v350
      %367 = vst [vmem:[%s221 + $0x40] sm:$0xff] %v351
      %368 = vst [vmem:[%s221 + $0x48] sm:$0xff] %v352
      %369 = vst [vmem:[%s221 + $0x50] sm:$0xff] %v353
      %370 = vst [vmem:[%s221 + $0x58] sm:$0xff] %v354
      %371 = vst [vmem:[%s221 + $0x60] sm:$0xff] %v355
      %372 = vst [vmem:[%s221 + $0x68] sm:$0xff] %v356
      %373 = vst [vmem:[%s221 + $0x70] sm:$0xff] %v357
      %374 = vst [vmem:[%s221 + $0x78] sm:$0xff] %v358
      %s375 = smul.u32 16, %s15
      %p376 = scmp.lt.s32.totalorder %s375, 63
      %s377 = scalar_select %p376, %s375, 63
      %s378 = smul.addr %s377, 8
      %s379 = scalar_lea.vmem %s4, %s378
      // Predicated region
      $region37: #{bottleneck_forward.7} parent=35 // pred_check
        %p380 = pneg %p127
      $region38: #{bottleneck_forward.7} parent=35 // pred_check_branch
        %382 = sbr.rel (%p380) target = $region40
      $region39: #{bottleneck_forward.7} parent=35 // pred_region
        %s383 = smul.u32 16, %s15
      $region40: #{bottleneck_forward.7} parent=35 // pred_fallthru
        _
    $region36: #{bottleneck_forward.7} parent=5 // pred_fallthru
      _
    %p384 = scmp.le.s32.totalorder 2, %s10
    // Predicated region
    $region41: #{bottleneck_forward.7} parent=5 // pred_check
      %p385 = pneg %p384
    $region42: #{bottleneck_forward.7} parent=5 // pred_check_branch
      %387 = sbr.rel (%p385) target = $region44
    $region43: #{bottleneck_forward.7} parent=5 // pred_region
      %s388 = ssub.s32 %s10, 2
      // Predicated region
      $region45: #{bottleneck_forward.7} parent=43 // pred_check
        %p389 = pneg %p133
      $region46: #{bottleneck_forward.7} parent=43 // pred_check_branch
        %391 = sbr.rel (%p389) target = $region48
      $region47: #{bottleneck_forward.7} parent=43 // pred_region
        %s392 = smul.u32 16, %s16
        %p393 = scmp.lt.s32.totalorder %s392, 63
        %s394 = scalar_select %p393, %s392, 63
        %s395 = smul.addr %s394, 8
        %s396 = scalar_lea.vmem %s4, %s395
      $region48: #{bottleneck_forward.7} parent=43 // pred_fallthru
        _
    $region44: #{bottleneck_forward.7} parent=5 // pred_fallthru
      _
  $region6: #{bottleneck_forward.7} parent=0 // loop_footer
    %s14 = sadd.s32 1, %s10
  $region7: #{bottleneck_forward.7} parent=0 // loop_footer_branch
    %9 = sbr.rel target = $region3
  $region8: #{bottleneck_forward.7} parent=0 // loop_exit
    _

// kernel: bottleneck_forward.5
$region0: #{bottleneck_forward.5}
  #allocation0 [shape = 'u32[]', space=smem, size = 0x4, offset = 0x4, fixed_abs, tag = 'smem constant byte address 0x4 - core index']
  #allocation1 [shape = 'u32[72,128]{1,0:T(1,128)}', space=vmem, size = 0x9000, scoped, tag = 'internal scratch']
  #allocation2 [shape = 'bf16[1,18,18,128]{3,2,1,0:T(8,128)(2,1)}', space=vmem, size = 0x1b000, scoped, tag = 'scratch operand']
  %s0 = inlined_call_operand.vmem [shape: bf16[2,16,16,128], index: 0, kind: input, shape index: {}]
  %s1 = inlined_call_operand.vmem [shape: f32[1,128], index: 1, kind: input, shape index: {}]
  %s2 = inlined_call_operand.vmem [shape: f32[1,128], index: 2, kind: input, shape index: {}]
  %s3 = inlined_call_operand.vmem [shape: bf16[1152,128], index: 3, kind: input, shape index: {}]
  %s4 = inlined_call_operand.vmem [shape: bf16[2,16,16,128], index: 4, kind: output, shape index: {0}]
  %s5 = inlined_call_operand.vmem [shape: f32[2,1,256], index: 5, kind: output, shape index: {1}]
  %6 = xla_tuple %s4, %s5
  %s7 = sld [smem:[#allocation0]]
  $region57: #{bottleneck_forward.5} parent=0
    _
  %s9 = ssub.s32 1, %s7
  %s10 = scalar_select 0, %s9, %s7
  loop: start=0, step=1, limit=4
  $region2: #{bottleneck_forward.5} parent=0 // loop_pre_header
    _
  $region3: #{bottleneck_forward.5} parent=0 // loop_header
    %s12 = sphi 0, %s16
    %p13 = scmp.ge.s32.totalorder %s12, 4
    %s22 = sphi 0, %s24
    %s25 = sphi 0, %s22
    %s26 = sphi 0, %s25
    %s42 = sphi 0, %s26
    %s46 = sphi 0, %s46
    %s48 = sphi 0, %s46
    %s49 = sphi 0, %s48
    %s63 = sphi 0, %s49
    %s67 = sphi 0, %s67
    %s69 = sphi 0, %s67
    %s70 = sphi 0, %s69
    %s84 = sphi 0, %s70
    %s88 = sphi 0, %s88
    %s90 = sphi 0, %s88
    %s91 = sphi 0, %s90
    %s105 = sphi 0, %s91
    %s111 = sphi 0, %s113
    %s114 = sphi 0, %s111
    %s115 = sphi 0, %s114
    %s131 = sphi 0, %s115
    %s137 = sphi 0, %s139
    %s140 = sphi 0, %s137
    %s141 = sphi 0, %s140
    %s157 = sphi 0, %s141
  $region4: #{bottleneck_forward.5} parent=0 // loop_header_branch
    %15 = sbr.rel (%p13) target = $region8
  $region5: #{bottleneck_forward.5} parent=0 // loop_body
    %s17 = ssub.s32 %s12, 1
    %s18 = ssub.s32 %s12, 2
    %s19 = sadd.s32 %s12, 1
    %s20 = ssub.s32 %s12, %s19
    %p21 = scmp.eq.s32.totalorder %s20, 0
    %s23 = sadd.s32 %s22, 1
    %s24 = scalar_select %p21, %s22, %s23
    %p27 = pneg %p21
    %p28 = scmp.eq.s32.totalorder %s12, 1
    %p29 = por %p27, %p28
    %p30 = scmp.ne.s32.totalorder %s22, %s25
    %p31 = scmp.eq.s32.totalorder %s12, 0
    %p32 = por %p30, %p31
    %p33 = scmp.ne.s32.totalorder %s22, %s25
    %p34 = scmp.eq.s32.totalorder %s17, 1
    %p35 = por %p33, %p34
    %p36 = scmp.ne.s32.totalorder %s25, %s26
    %p37 = scmp.eq.s32.totalorder %s17, 0
    %p38 = por %p36, %p37
    %p39 = scmp.ne.s32.totalorder %s25, %s26
    %p40 = scmp.eq.s32.totalorder %s18, 1
    %p41 = por %p39, %p40
    %p43 = scmp.ne.s32.totalorder %s26, %s42
    %p44 = scmp.eq.s32.totalorder %s18, 0
    %p45 = por %p43, %p44
    %s47 = sadd.s32 %s46, 1
    %p50 = scmp.eq.s32.totalorder %s12, 1
    %p51 = scmp.ne.s32.totalorder %s46, %s48
    %p52 = scmp.eq.s32.totalorder %s12, 0
    %p53 = por %p51, %p52
    %p54 = scmp.ne.s32.totalorder %s46, %s48
    %p55 = scmp.eq.s32.totalorder %s17, 1
    %p56 = por %p54, %p55
    %p57 = scmp.ne.s32.totalorder %s48, %s49
    %p58 = scmp.eq.s32.totalorder %s17, 0
    %p59 = por %p57, %p58
    %p60 = scmp.ne.s32.totalorder %s48, %s49
    %p61 = scmp.eq.s32.totalorder %s18, 1
    %p62 = por %p60, %p61
    %p64 = scmp.ne.s32.totalorder %s49, %s63
    %p65 = scmp.eq.s32.totalorder %s18, 0
    %p66 = por %p64, %p65
    %s68 = sadd.s32 %s67, 1
    %p71 = scmp.eq.s32.totalorder %s12, 1
    %p72 = scmp.ne.s32.totalorder %s67, %s69
    %p73 = scmp.eq.s32.totalorder %s12, 0
    %p74 = por %p72, %p73
    %p75 = scmp.ne.s32.totalorder %s67, %s69
    %p76 = scmp.eq.s32.totalorder %s17, 1
    %p77 = por %p75, %p76
    %p78 = scmp.ne.s32.totalorder %s69, %s70
    %p79 = scmp.eq.s32.totalorder %s17, 0
    %p80 = por %p78, %p79
    %p81 = scmp.ne.s32.totalorder %s69, %s70
    %p82 = scmp.eq.s32.totalorder %s18, 1
    %p83 = por %p81, %p82
    %p85 = scmp.ne.s32.totalorder %s70, %s84
    %p86 = scmp.eq.s32.totalorder %s18, 0
    %p87 = por %p85, %p86
    %s89 = sadd.s32 %s88, 1
    %p92 = scmp.eq.s32.totalorder %s12, 1
    %p93 = scmp.ne.s32.totalorder %s88, %s90
    %p94 = scmp.eq.s32.totalorder %s12, 0
    %p95 = por %p93, %p94
    %p96 = scmp.ne.s32.totalorder %s88, %s90
    %p97 = scmp.eq.s32.totalorder %s17, 1
    %p98 = por %p96, %p97
    %p99 = scmp.ne.s32.totalorder %s90, %s91
    %p100 = scmp.eq.s32.totalorder %s17, 0
    %p101 = por %p99, %p100
    %p102 = scmp.ne.s32.totalorder %s90, %s91
    %p103 = scmp.eq.s32.totalorder %s18, 1
    %p104 = por %p102, %p103
    %p106 = scmp.ne.s32.totalorder %s91, %s105
    %p107 = scmp.eq.s32.totalorder %s18, 0
    %p108 = por %p106, %p107
    %s109 = ssub.s32 %s12, %s19
    %p110 = scmp.eq.s32.totalorder %s109, 0
    %s112 = sadd.s32 %s111, 1
    %s113 = scalar_select %p110, %s111, %s112
    %p116 = pneg %p110
    %p117 = scmp.eq.s32.totalorder %s12, 1
    %p118 = por %p116, %p117
    %p119 = scmp.ne.s32.totalorder %s111, %s114
    %p120 = scmp.eq.s32.totalorder %s12, 0
    %p121 = por %p119, %p120
    %p122 = scmp.ne.s32.totalorder %s111, %s114
    %p123 = scmp.eq.s32.totalorder %s17, 1
    %p124 = por %p122, %p123
    %p125 = scmp.ne.s32.totalorder %s114, %s115
    %p126 = scmp.eq.s32.totalorder %s17, 0
    %p127 = por %p125, %p126
    %p128 = scmp.ne.s32.totalorder %s114, %s115
    %p129 = scmp.eq.s32.totalorder %s18, 1
    %p130 = por %p128, %p129
    %p132 = scmp.ne.s32.totalorder %s115, %s131
    %p133 = scmp.eq.s32.totalorder %s18, 0
    %p134 = por %p132, %p133
    %s135 = ssub.s32 %s12, %s19
    %p136 = scmp.eq.s32.totalorder %s135, 0
    %s138 = sadd.s32 %s137, 1
    %s139 = scalar_select %p136, %s137, %s138
    %p142 = pneg %p136
    %p143 = scmp.eq.s32.totalorder %s12, 1
    %p144 = por %p142, %p143
    %p145 = scmp.ne.s32.totalorder %s137, %s140
    %p146 = scmp.eq.s32.totalorder %s12, 0
    %p147 = por %p145, %p146
    %p148 = scmp.ne.s32.totalorder %s137, %s140
    %p149 = scmp.eq.s32.totalorder %s17, 1
    %p150 = por %p148, %p149
    %p151 = scmp.ne.s32.totalorder %s140, %s141
    %p152 = scmp.eq.s32.totalorder %s17, 0
    %p153 = por %p151, %p152
    %p154 = scmp.ne.s32.totalorder %s140, %s141
    %p155 = scmp.eq.s32.totalorder %s18, 1
    %p156 = por %p154, %p155
    %p158 = scmp.ne.s32.totalorder %s141, %s157
    %p159 = scmp.eq.s32.totalorder %s18, 0
    %p160 = por %p158, %p159
    %p161 = scmp.le.s32.totalorder 1, %s12
    %p162 = scmp.lt.s32.totalorder %s12, 3
    %p163 = pnand %p161, %p162
    %p164 = pneg %p163
    // Predicated region
    $region9: #{bottleneck_forward.5} parent=5 // pred_check
      _
    $region10: #{bottleneck_forward.5} parent=5 // pred_check_branch
      %166 = sbr.rel (%p163) target = $region12
    $region11: #{bottleneck_forward.5} parent=5 // pred_region
      %s167 = ssub.s32 %s12, 1
      // Predicated region
      $region13: #{bottleneck_forward.5} parent=11 // pred_check
        %p168 = pneg %p59
      $region14: #{bottleneck_forward.5} parent=11 // pred_check_branch
        %170 = sbr.rel (%p168) target = $region16
      $region15: #{bottleneck_forward.5} parent=11 // pred_region
        _
      $region16: #{bottleneck_forward.5} parent=11 // pred_fallthru
        _
      // Predicated region
      $region17: #{bottleneck_forward.5} parent=11 // pred_check
        %p171 = pneg %p80
      $region18: #{bottleneck_forward.5} parent=11 // pred_check_branch
        %173 = sbr.rel (%p171) target = $region20
      $region19: #{bottleneck_forward.5} parent=11 // pred_region
        _
      $region20: #{bottleneck_forward.5} parent=11 // pred_fallthru
        _
      // Predicated region
      $region21: #{bottleneck_forward.5} parent=11 // pred_check
        %p174 = pneg %p101
      $region22: #{bottleneck_forward.5} parent=11 // pred_check_branch
        %176 = sbr.rel (%p174) target = $region24
      $region23: #{bottleneck_forward.5} parent=11 // pred_region
        _
      $region24: #{bottleneck_forward.5} parent=11 // pred_fallthru
        _
    $region12: #{bottleneck_forward.5} parent=5 // pred_fallthru
      _
    %p177 = scmp.lt.s32.totalorder %s12, 2
    // Predicated region
    $region25: #{bottleneck_forward.5} parent=5 // pred_check
      %p178 = pneg %p177
    $region26: #{bottleneck_forward.5} parent=5 // pred_check_branch
      %180 = sbr.rel (%p178) target = $region28
    $region27: #{bottleneck_forward.5} parent=5 // pred_region
      // Predicated region
      $region29: #{bottleneck_forward.5} parent=27 // pred_check
        %p181 = pneg %p32
      $region30: #{bottleneck_forward.5} parent=27 // pred_check_branch
        %183 = sbr.rel (%p181) target = $region32
      $region31: #{bottleneck_forward.5} parent=27 // pred_region
        %p184 = scmp.lt.s32.totalorder %s12, 1
        %s185 = scalar_select %p184, %s12, 1
        %s186 = smul.addr %s185, 32
        %s187 = smul.addr %s186, 4
        %s188 = scalar_lea.vmem %s0, %s187
      $region32: #{bottleneck_forward.5} parent=27 // pred_fallthru
        _
    $region28: #{bottleneck_forward.5} parent=5 // pred_fallthru
      _
    %p189 = scmp.le.s32.totalorder 1, %s12
    %p190 = scmp.lt.s32.totalorder %s12, 3
    %p191 = pnand %p189, %p190
    %p192 = pneg %p191
    // Predicated region
    $region33: #{bottleneck_forward.5} parent=5 // pred_check
      _
    $region34: #{bottleneck_forward.5} parent=5 // pred_check_branch
      %194 = sbr.rel (%p191) target = $region36
    $region35: #{bottleneck_forward.5} parent=5 // pred_region
      %s195 = ssub.s32 %s12, 1
      %p196 = scmp.lt.s32.totalorder %s17, 1
      %s197 = scalar_select %p196, %s17, 1
      %s198 = smul.addr %s197, 32
      %s199 = smul.addr %s198, 4
      %s200 = scalar_lea.vmem %s0, %s199
      %p201 = pneg %p38
      %p202 = pneg %p35
      %p203 = pneg %p59
      %p204 = pneg %p56
      %p205 = pneg %p80
      %p206 = pneg %p77
      %p207 = pneg %p101
      %p208 = pneg %p98
      %p209 = pneg %p127
      %p210 = pneg %p124
      %p211 = scmp.lt.s32.totalorder %s17, 1
      %s212 = scalar_select %p211, %s17, 1
      %s213 = smul.addr %s212, 32
      %s214 = smul.addr %s213, 4
      %s215 = scalar_lea.vmem %s4, %s214
      %p216 = pneg %p153
      %p217 = pneg %p150
      %p218 = scmp.lt.s32.totalorder %s17, 1
      %s219 = scalar_select %p218, %s17, 1
      %s220 = smul.addr %s219, 2
      %s221 = scalar_lea.vmem %s5, %s220
      %p222 = scmp.lt.s32.totalorder %s17, 1
      %s223 = scalar_select %p222, %s17, 1
      %s224 = smul.addr %s223, 32
      %s225 = smul.addr %s224, 4
      %s226 = scalar_lea.vmem %s0, %s225
      %p227 = scmp.lt.s32.totalorder %s17, 1
      %s228 = scalar_select %p227, %s17, 1
      %s229 = smul.addr %s228, 32
      %s230 = smul.addr %s229, 4
      %s231 = scalar_lea.vmem %s4, %s230
      %p232 = scmp.lt.s32.totalorder %s17, 1
      %s233 = scalar_select %p232, %s17, 1
      %s234 = smul.addr %s233, 2
      %s235 = scalar_lea.vmem %s5, %s234
      %v237 = vld [vmem:[%s1] sm:$0x1]
      %v238 = vld [vmem:[%s2] sm:$0x1]
      %v239 = vld [vmem:[%s226] sm:$0xf]
      %v240 = vld [vmem:[%s226 + $0x4] sm:$0xf]
      %v241 = vld [vmem:[%s226 + $0x8] sm:$0xf]
      %v242 = vld [vmem:[%s226 + $0xc] sm:$0xf]
      %v243 = vld [vmem:[%s226 + $0x10] sm:$0xf]
      %v244 = vld [vmem:[%s226 + $0x14] sm:$0xf]
      %v245 = vld [vmem:[%s226 + $0x18] sm:$0xf]
      %v246 = vld [vmem:[%s226 + $0x1c] sm:$0xf]
      %v247 = vld [vmem:[%s226 + $0x20] sm:$0xf]
      %v248 = vld [vmem:[%s226 + $0x24] sm:$0xf]
      %v249 = vld [vmem:[%s226 + $0x28] sm:$0xf]
      %v250 = vld [vmem:[%s226 + $0x2c] sm:$0xf]
      %v251 = vld [vmem:[%s226 + $0x30] sm:$0xf]
      %v252 = vld [vmem:[%s226 + $0x34] sm:$0xf]
      %v253 = vld [vmem:[%s226 + $0x38] sm:$0xf]
      %v254 = vld [vmem:[%s226 + $0x3c] sm:$0xf]
      %v255 = vld [vmem:[%s226 + $0x40] sm:$0xf]
      %v256 = vld [vmem:[%s226 + $0x44] sm:$0xf]
      %v257 = vld [vmem:[%s226 + $0x48] sm:$0xf]
      %v258 = vld [vmem:[%s226 + $0x4c] sm:$0xf]
      %v259 = vld [vmem:[%s226 + $0x50] sm:$0xf]
      %v260 = vld [vmem:[%s226 + $0x54] sm:$0xf]
      %v261 = vld [vmem:[%s226 + $0x58] sm:$0xf]
      %v262 = vld [vmem:[%s226 + $0x5c] sm:$0xf]
      %v263 = vld [vmem:[%s226 + $0x60] sm:$0xf]
      %v264 = vld [vmem:[%s226 + $0x64] sm:$0xf]
      %v265 = vld [vmem:[%s226 + $0x68] sm:$0xf]
      %v266 = vld [vmem:[%s226 + $0x6c] sm:$0xf]
      %v267 = vld [vmem:[%s226 + $0x70] sm:$0xf]
      %v268 = vld [vmem:[%s226 + $0x74] sm:$0xf]
      %v269 = vld [vmem:[%s226 + $0x78] sm:$0xf]
      %v270 = vld [vmem:[%s226 + $0x7c] sm:$0xf]
      %v271 = vunpack.c.l.bf16 %v239
      %v272 = vunpack.c.l.bf16 %v240
      %v273 = vunpack.c.l.bf16 %v241
      %v274 = vunpack.c.l.bf16 %v242
      %v275 = vunpack.c.l.bf16 %v243
      %v276 = vunpack.c.l.bf16 %v244
      %v277 = vunpack.c.l.bf16 %v245
      %v278 = vunpack.c.l.bf16 %v246
      %v279 = vunpack.c.l.bf16 %v247
      %v280 = vunpack.c.l.bf16 %v248
      %v281 = vunpack.c.l.bf16 %v249
      %v282 = vunpack.c.l.bf16 %v250
      %v283 = vunpack.c.l.bf16 %v251
      %v284 = vunpack.c.l.bf16 %v252
      %v285 = vunpack.c.l.bf16 %v253
      %v286 = vunpack.c.l.bf16 %v254
      %v287 = vunpack.c.l.bf16 %v255
      %v288 = vunpack.c.l.bf16 %v256
      %v289 = vunpack.c.l.bf16 %v257
      %v290 = vunpack.c.l.bf16 %v258
      %v291 = vunpack.c.l.bf16 %v259
      %v292 = vunpack.c.l.bf16 %v260
      %v293 = vunpack.c.l.bf16 %v261
      %v294 = vunpack.c.l.bf16 %v262
      %v295 = vunpack.c.l.bf16 %v263
      %v296 = vunpack.c.l.bf16 %v264
      %v297 = vunpack.c.l.bf16 %v265
      %v298 = vunpack.c.l.bf16 %v266
      %v299 = vunpack.c.l.bf16 %v267
      %v300 = vunpack.c.l.bf16 %v268
      %v301 = vunpack.c.l.bf16 %v269
      %v302 = vunpack.c.l.bf16 %v270
      %v304 = vperm.slane %v237, 0
      %v306 = vmul.f32 %v271, %v304
      %v307 = vmul.f32 %v272, %v304
      %v308 = vmul.f32 %v273, %v304
      %v309 = vmul.f32 %v274, %v304
      %v310 = vmul.f32 %v275, %v304
      %v311 = vmul.f32 %v276, %v304
      %v312 = vmul.f32 %v277, %v304
      %v313 = vmul.f32 %v278, %v304
      %v314 = vmul.f32 %v279, %v304
      %v315 = vmul.f32 %v280, %v304
      %v316 = vmul.f32 %v281, %v304
      %v317 = vmul.f32 %v282, %v304
      %v318 = vmul.f32 %v283, %v304
      %v319 = vmul.f32 %v284, %v304
      %v320 = vmul.f32 %v285, %v304
      %v321 = vmul.f32 %v286, %v304
      %v322 = vmul.f32 %v287, %v304
      %v323 = vmul.f32 %v288, %v304
      %v324 = vmul.f32 %v289, %v304
      %v325 = vmul.f32 %v290, %v304
      %v326 = vmul.f32 %v291, %v304
      %v327 = vmul.f32 %v292, %v304
      %v328 = vmul.f32 %v293, %v304
      %v329 = vmul.f32 %v294, %v304
      %v330 = vmul.f32 %v295, %v304
      %v331 = vmul.f32 %v296, %v304
      %v332 = vmul.f32 %v297, %v304
      %v333 = vmul.f32 %v298, %v304
      %v334 = vmul.f32 %v299, %v304
      %v335 = vmul.f32 %v300, %v304
      %v336 = vmul.f32 %v301, %v304
      %v337 = vmul.f32 %v302, %v304
      %v339 = vperm.slane %v238, 0
      %v341 = vadd.f32 %v306, %v339
      %v342 = vadd.f32 %v307, %v339
      %v343 = vadd.f32 %v308, %v339
      %v344 = vadd.f32 %v309, %v339
      %v345 = vadd.f32 %v310, %v339
      %v346 = vadd.f32 %v311, %v339
      %v347 = vadd.f32 %v312, %v339
      %v348 = vadd.f32 %v313, %v339
      %v349 = vadd.f32 %v314, %v339
      %v350 = vadd.f32 %v315, %v339
      %v351 = vadd.f32 %v316, %v339
      %v352 = vadd.f32 %v317, %v339
      %v353 = vadd.f32 %v318, %v339
      %v354 = vadd.f32 %v319, %v339
      %v355 = vadd.f32 %v320, %v339
      %v356 = vadd.f32 %v321, %v339
      %v357 = vadd.f32 %v322, %v339
      %v358 = vadd.f32 %v323, %v339
      %v359 = vadd.f32 %v324, %v339
      %v360 = vadd.f32 %v325, %v339
      %v361 = vadd.f32 %v326, %v339
      %v362 = vadd.f32 %v327, %v339
      %v363 = vadd.f32 %v328, %v339
      %v364 = vadd.f32 %v329, %v339
      %v365 = vadd.f32 %v330, %v339
      %v366 = vadd.f32 %v331, %v339
      %v367 = vadd.f32 %v332, %v339
      %v368 = vadd.f32 %v333, %v339
      %v369 = vadd.f32 %v334, %v339
      %v370 = vadd.f32 %v335, %v339
      %v371 = vadd.f32 %v336, %v339
      %v372 = vadd.f32 %v337, %v339
      %v373 = vmax.f32 %v341, 0.0
      %v374 = vmax.f32 %v342, 0.0
      %v375 = vmax.f32 %v343, 0.0
      %v376 = vmax.f32 %v344, 0.0
      %v377 = vmax.f32 %v345, 0.0
      %v378 = vmax.f32 %v346, 0.0
      %v379 = vmax.f32 %v347, 0.0
      %v380 = vmax.f32 %v348, 0.0
      %v381 = vmax.f32 %v349, 0.0
      %v382 = vmax.f32 %v350, 0.0
      %v383 = vmax.f32 %v351, 0.0
      %v384 = vmax.f32 %v352, 0.0
      %v385 = vmax.f32 %v353, 0.0
      %v386 = vmax.f32 %v354, 0.0
      %v387 = vmax.f32 %v355, 0.0
      %v388 = vmax.f32 %v356, 0.0
      %v389 = vmax.f32 %v357, 0.0
      %v390 = vmax.f32 %v358, 0.0
      %v391 = vmax.f32 %v359, 0.0
      %v392 = vmax.f32 %v360, 0.0
      %v393 = vmax.f32 %v361, 0.0
      %v394 = vmax.f32 %v362, 0.0
      %v395 = vmax.f32 %v363, 0.0
      %v396 = vmax.f32 %v364, 0.0
      %v397 = vmax.f32 %v365, 0.0
      %v398 = vmax.f32 %v366, 0.0
      %v399 = vmax.f32 %v367, 0.0
      %v400 = vmax.f32 %v368, 0.0
      %v401 = vmax.f32 %v369, 0.0
      %v402 = vmax.f32 %v370, 0.0
      %v403 = vmax.f32 %v371, 0.0
      %v404 = vmax.f32 %v372, 0.0
      %v405 = vpack.c.bf16 %v373, %v373
      %v406 = vpack.c.bf16 %v374, %v374
      %v407 = vpack.c.bf16 %v375, %v375
      %v408 = vpack.c.bf16 %v376, %v376
      %v409 = vpack.c.bf16 %v377, %v377
      %v410 = vpack.c.bf16 %v378, %v378
      %v411 = vpack.c.bf16 %v379, %v379
      %v412 = vpack.c.bf16 %v380, %v380
      %v413 = vpack.c.bf16 %v381, %v381
      %v414 = vpack.c.bf16 %v382, %v382
      %v415 = vpack.c.bf16 %v383, %v383
      %v416 = vpack.c.bf16 %v384, %v384
      %v417 = vpack.c.bf16 %v385, %v385
      %v418 = vpack.c.bf16 %v386, %v386
      %v419 = vpack.c.bf16 %v387, %v387
      %v420 = vpack.c.bf16 %v388, %v388
      %v421 = vpack.c.bf16 %v389, %v389
      %v422 = vpack.c.bf16 %v390, %v390
      %v423 = vpack.c.bf16 %v391, %v391
      %v424 = vpack.c.bf16 %v392, %v392
      %v425 = vpack.c.bf16 %v393, %v393
      %v426 = vpack.c.bf16 %v394, %v394
      %v427 = vpack.c.bf16 %v395, %v395
      %v428 = vpack.c.bf16 %v396, %v396
      %v429 = vpack.c.bf16 %v397, %v397
      %v430 = vpack.c.bf16 %v398, %v398
      %v431 = vpack.c.bf16 %v399, %v399
      %v432 = vpack.c.bf16 %v400, %v400
      %v433 = vpack.c.bf16 %v401, %v401
      %v434 = vpack.c.bf16 %v402, %v402
      %v435 = vpack.c.bf16 %v403, %v403
      %v436 = vpack.c.bf16 %v404, %v404
      %437 = vst [vmem:[#allocation2] sm:$0xf] 0
      %438 = vst [vmem:[#allocation2 + $0x4] sm:$0xf] 0
      %439 = vst [vmem:[#allocation2 + $0x8] sm:$0x1] 0
      %s440 = scalar_lea.vmem [#allocation2], 204
      %441 = vst [vmem:[%s440] sm:$0xf] 0
      %442 = vst [vmem:[%s440 + $0x4] sm:$0xf] 0
      %443 = vst [vmem:[%s440 + $0x8] sm:$0x1] 0
      %vm444 = vcmask 1040384
      %vm445 = vsmask.f32 256
      %vm446 = vmand %vm444, %vm445
      %v447 = vld [vmem:[#allocation2] sm:$0x1]
      %v448 = vsel %vm446, 0, %v447
      %449 = vst [vmem:[#allocation2] sm:$0x1] %v448
      %v450 = vld [vmem:[#allocation2 + $0xc] sm:$0x1]
      %v451 = vsel %vm446, 0, %v450
      %452 = vst [vmem:[#allocation2 + $0xc] sm:$0x1] %v451
      %v453 = vld [vmem:[#allocation2 + $0x18] sm:$0x1]
      %v454 = vsel %vm446, 0, %v453
      %455 = vst [vmem:[#allocation2 + $0x18] sm:$0x1] %v454
      %v456 = vld [vmem:[#allocation2 + $0x24] sm:$0x1]
      %v457 = vsel %vm446, 0, %v456
      %458 = vst [vmem:[#allocation2 + $0x24] sm:$0x1] %v457
      %v459 = vld [vmem:[#allocation2 + $0x30] sm:$0x1]
      %v460 = vsel %vm446, 0, %v459
      %461 = vst [vmem:[#allocation2 + $0x30] sm:$0x1] %v460
      %v462 = vld [vmem:[#allocation2 + $0x3c] sm:$0x1]
      %v463 = vsel %vm446, 0, %v462
      %464 = vst [vmem:[#allocation2 + $0x3c] sm:$0x1] %v463
      %v465 = vld [vmem:[#allocation2 + $0x48] sm:$0x1]
      %v466 = vsel %vm446, 0, %v465
      %467 = vst [vmem:[#allocation2 + $0x48] sm:$0x1] %v466
      %v468 = vld [vmem:[#allocation2 + $0x54] sm:$0x1]
      %v469 = vsel %vm446, 0, %v468
      %470 = vst [vmem:[#allocation2 + $0x54] sm:$0x1] %v469
      %v471 = vld [vmem:[#allocation2 + $0x60] sm:$0x1]
      %v472 = vsel %vm446, 0, %v471
      %473 = vst [vmem:[#allocation2 + $0x60] sm:$0x1] %v472
      %v474 = vld [vmem:[#allocation2 + $0x6c] sm:$0x1]
      %v475 = vsel %vm446, 0, %v474
      %476 = vst [vmem:[#allocation2 + $0x6c] sm:$0x1] %v475
      %v477 = vld [vmem:[#allocation2 + $0x78] sm:$0x1]
      %v478 = vsel %vm446, 0, %v477
      %479 = vst [vmem:[#allocation2 + $0x78] sm:$0x1] %v478
      %v480 = vld [vmem:[#allocation2 + $0x84] sm:$0x1]
      %v481 = vsel %vm446, 0, %v480
      %482 = vst [vmem:[#allocation2 + $0x84] sm:$0x1] %v481
      %v483 = vld [vmem:[#allocation2 + $0x90] sm:$0x1]
      %v484 = vsel %vm446, 0, %v483
      %485 = vst [vmem:[#allocation2 + $0x90] sm:$0x1] %v484
      %v486 = vld [vmem:[#allocation2 + $0x9c] sm:$0x1]
      %v487 = vsel %vm446, 0, %v486
      %488 = vst [vmem:[#allocation2 + $0x9c] sm:$0x1] %v487
      %v489 = vld [vmem:[#allocation2 + $0xa8] sm:$0x1]
      %v490 = vsel %vm446, 0, %v489
      %491 = vst [vmem:[#allocation2 + $0xa8] sm:$0x1] %v490
      %v492 = vld [vmem:[#allocation2 + $0xb4] sm:$0x1]
      %v493 = vsel %vm446, 0, %v492
      %494 = vst [vmem:[#allocation2 + $0xb4] sm:$0x1] %v493
      %v495 = vld [vmem:[#allocation2 + $0xc0] sm:$0x1]
      %v496 = vsel %vm446, 0, %v495
      %497 = vst [vmem:[#allocation2 + $0xc0] sm:$0x1] %v496
      %v498 = vld [vmem:[#allocation2 + $0xcc] sm:$0x1]
      %v499 = vsel %vm446, 0, %v498
      %500 = vst [vmem:[#allocation2 + $0xcc] sm:$0x1] %v499
      %vm501 = vsmask.f32 7938
      %vm502 = vmand %vm444, %vm501
      %v503 = vld [vmem:[#allocation2 + $0x8] sm:$0x1]
      %v504 = vsel %vm502, 0, %v503
      %505 = vst [vmem:[#allocation2 + $0x8] sm:$0x1] %v504
      %v506 = vld [vmem:[#allocation2 + $0x14] sm:$0x1]
      %v507 = vsel %vm502, 0, %v506
      %508 = vst [vmem:[#allocation2 + $0x14] sm:$0x1] %v507
      %v509 = vld [vmem:[#allocation2 + $0x20] sm:$0x1]
      %v510 = vsel %vm502, 0, %v509
      %511 = vst [vmem:[#allocation2 + $0x20] sm:$0x1] %v510
      %v512 = vld [vmem:[#allocation2 + $0x2c] sm:$0x1]
      %v513 = vsel %vm502, 0, %v512
      %514 = vst [vmem:[#allocation2 + $0x2c] sm:$0x1] %v513
      %v515 = vld [vmem:[#allocation2 + $0x38] sm:$0x1]
      %v516 = vsel %vm502, 0, %v515
      %517 = vst [vmem:[#allocation2 + $0x38] sm:$0x1] %v516
      %v518 = vld [vmem:[#allocation2 + $0x44] sm:$0x1]
      %v519 = vsel %vm502, 0, %v518
      %520 = vst [vmem:[#allocation2 + $0x44] sm:$0x1] %v519
      %v521 = vld [vmem:[#allocation2 + $0x50] sm:$0x1]
      %v522 = vsel %vm502, 0, %v521
      %523 = vst [vmem:[#allocation2 + $0x50] sm:$0x1] %v522
      %v524 = vld [vmem:[#allocation2 + $0x5c] sm:$0x1]
      %v525 = vsel %vm502, 0, %v524
      %526 = vst [vmem:[#allocation2 + $0x5c] sm:$0x1] %v525
      %v527 = vld [vmem:[#allocation2 + $0x68] sm:$0x1]
      %v528 = vsel %vm502, 0, %v527
      %529 = vst [vmem:[#allocation2 + $0x68] sm:$0x1] %v528
      %v530 = vld [vmem:[#allocation2 + $0x74] sm:$0x1]
      %v531 = vsel %vm502, 0, %v530
      %532 = vst [vmem:[#allocation2 + $0x74] sm:$0x1] %v531
      %v533 = vld [vmem:[#allocation2 + $0x80] sm:$0x1]
      %v534 = vsel %vm502, 0, %v533
      %535 = vst [vmem:[#allocation2 + $0x80] sm:$0x1] %v534
      %v536 = vld [vmem:[#allocation2 + $0x8c] sm:$0x1]
      %v537 = vsel %vm502, 0, %v536
      %538 = vst [vmem:[#allocation2 + $0x8c] sm:$0x1] %v537
      %v539 = vld [vmem:[#allocation2 + $0x98] sm:$0x1]
      %v540 = vsel %vm502, 0, %v539
      %541 = vst [vmem:[#allocation2 + $0x98] sm:$0x1] %v540
      %v542 = vld [vmem:[#allocation2 + $0xa4] sm:$0x1]
      %v543 = vsel %vm502, 0, %v542
      %544 = vst [vmem:[#allocation2 + $0xa4] sm:$0x1] %v543
      %v545 = vld [vmem:[#allocation2 + $0xb0] sm:$0x1]
      %v546 = vsel %vm502, 0, %v545
      %547 = vst [vmem:[#allocation2 + $0xb0] sm:$0x1] %v546
      %v548 = vld [vmem:[#allocation2 + $0xbc] sm:$0x1]
      %v549 = vsel %vm502, 0, %v548
      %550 = vst [vmem:[#allocation2 + $0xbc] sm:$0x1] %v549
      %v551 = vld [vmem:[#allocation2 + $0xc8] sm:$0x1]
      %v552 = vsel %vm502, 0, %v551
      %553 = vst [vmem:[#allocation2 + $0xc8] sm:$0x1] %v552
      %v554 = vld [vmem:[#allocation2 + $0xd4] sm:$0x1]
      %v555 = vsel %vm502, 0, %v554
      %556 = vst [vmem:[#allocation2 + $0xd4] sm:$0x1] %v555
      %vm557 = vsmask.f32 4368
      %vm558 = vmor %vm445, %vm557
      %v560 = vshrl.u32 %v405, 16
      %v562 = vrot.slane %v560, 7
      %v563 = vshll.u32 %v405, 16
      %v565 = vor.u32 %v562, %v563
      %v566 = vrot.slane %v562, 4
      %v568 = vshrl.u32 %v406, 16
      %v570 = vrot.slane %v568, 7
      %v571 = vshll.u32 %v406, 16
      %v573 = vor.u32 %v570, %v571
      %v574 = vsel %vm558, %v566, %v573
      %v575 = vrot.slane %v570, 4
      %v577 = vshrl.u32 %v407, 16
      %v579 = vrot.slane %v577, 7
      %v580 = vshll.u32 %v407, 16
      %v582 = vor.u32 %v579, %v580
      %v583 = vrot.slane %v579, 4
      %v585 = vshrl.u32 %v408, 16
      %v587 = vrot.slane %v585, 7
      %v588 = vshll.u32 %v408, 16
      %v590 = vor.u32 %v587, %v588
      %v591 = vsel %vm558, %v583, %v590
      %v592 = vrot.slane %v587, 4
      %v594 = vshrl.u32 %v409, 16
      %v596 = vrot.slane %v594, 7
      %v597 = vshll.u32 %v409, 16
      %v599 = vor.u32 %v596, %v597
      %v600 = vrot.slane %v596, 4
      %v602 = vshrl.u32 %v410, 16
      %v604 = vrot.slane %v602, 7
      %v605 = vshll.u32 %v410, 16
      %v607 = vor.u32 %v604, %v605
      %v608 = vsel %vm558, %v600, %v607
      %v609 = vrot.slane %v604, 4
      %v611 = vshrl.u32 %v411, 16
      %v613 = vrot.slane %v611, 7
      %v614 = vshll.u32 %v411, 16
      %v616 = vor.u32 %v613, %v614
      %v617 = vrot.slane %v613, 4
      %v619 = vshrl.u32 %v412, 16
      %v621 = vrot.slane %v619, 7
      %v622 = vshll.u32 %v412, 16
      %v624 = vor.u32 %v621, %v622
      %v625 = vsel %vm558, %v617, %v624
      %v626 = vrot.slane %v621, 4
      %v628 = vshrl.u32 %v413, 16
      %v630 = vrot.slane %v628, 7
      %v631 = vshll.u32 %v413, 16
      %v633 = vor.u32 %v630, %v631
      %v634 = vrot.slane %v630, 4
      %v636 = vshrl.u32 %v414, 16
      %v638 = vrot.slane %v636, 7
      %v639 = vshll.u32 %v414, 16
      %v641 = vor.u32 %v638, %v639
      %v642 = vsel %vm558, %v634, %v641
      %v643 = vrot.slane %v638, 4
      %v645 = vshrl.u32 %v415, 16
      %v647 = vrot.slane %v645, 7
      %v648 = vshll.u32 %v415, 16
      %v650 = vor.u32 %v647, %v648
      %v651 = vrot.slane %v647, 4
      %v653 = vshrl.u32 %v416, 16
      %v655 = vrot.slane %v653, 7
      %v656 = vshll.u32 %v416, 16
      %v658 = vor.u32 %v655, %v656
      %v659 = vsel %vm558, %v651, %v658
      %v660 = vrot.slane %v655, 4
      %v662 = vshrl.u32 %v417, 16
      %v664 = vrot.slane %v662, 7
      %v665 = vshll.u32 %v417, 16
      %v667 = vor.u32 %v664, %v665
      %v668 = vrot.slane %v664, 4
      %v670 = vshrl.u32 %v418, 16
      %v672 = vrot.slane %v670, 7
      %v673 = vshll.u32 %v418, 16
      %v675 = vor.u32 %v672, %v673
      %v676 = vsel %vm558, %v668, %v675
      %v677 = vrot.slane %v672, 4
      %v679 = vshrl.u32 %v419, 16
      %v681 = vrot.slane %v679, 7
      %v682 = vshll.u32 %v419, 16
      %v684 = vor.u32 %v681, %v682
      %v685 = vrot.slane %v681, 4
      %v687 = vshrl.u32 %v420, 16
      %v689 = vrot.slane %v687, 7
      %v690 = vshll.u32 %v420, 16
      %v692 = vor.u32 %v689, %v690
      %v693 = vsel %vm558, %v685, %v692
      %v694 = vrot.slane %v689, 4
      %v696 = vshrl.u32 %v421, 16
      %v698 = vrot.slane %v696, 7
      %v699 = vshll.u32 %v421, 16
      %v701 = vor.u32 %v698, %v699
      %v702 = vrot.slane %v698, 4
      %v704 = vshrl.u32 %v422, 16
      %v706 = vrot.slane %v704, 7
      %v707 = vshll.u32 %v422, 16
      %v709 = vor.u32 %v706, %v707
      %v710 = vsel %vm558, %v702, %v709
      %v711 = vrot.slane %v706, 4
      %v713 = vshrl.u32 %v423, 16
      %v715 = vrot.slane %v713, 7
      %v716 = vshll.u32 %v423, 16
      %v718 = vor.u32 %v715, %v716
      %v719 = vrot.slane %v715, 4
      %v721 = vshrl.u32 %v424, 16
      %v723 = vrot.slane %v721, 7
      %v724 = vshll.u32 %v424, 16
      %v726 = vor.u32 %v723, %v724
      %v727 = vsel %vm558, %v719, %v726
      %v728 = vrot.slane %v723, 4
      %v730 = vshrl.u32 %v425, 16
      %v732 = vrot.slane %v730, 7
      %v733 = vshll.u32 %v425, 16
      %v735 = vor.u32 %v732, %v733
      %v736 = vrot.slane %v732, 4
      %v738 = vshrl.u32 %v426, 16
      %v740 = vrot.slane %v738, 7
      %v741 = vshll.u32 %v426, 16
      %v743 = vor.u32 %v740, %v741
      %v744 = vsel %vm558, %v736, %v743
      %v745 = vrot.slane %v740, 4
      %v747 = vshrl.u32 %v427, 16
      %v749 = vrot.slane %v747, 7
      %v750 = vshll.u32 %v427, 16
      %v752 = vor.u32 %v749, %v750
      %v753 = vrot.slane %v749, 4
      %v755 = vshrl.u32 %v428, 16
      %v757 = vrot.slane %v755, 7
      %v758 = vshll.u32 %v428, 16
      %v760 = vor.u32 %v757, %v758
      %v761 = vsel %vm558, %v753, %v760
      %v762 = vrot.slane %v757, 4
      %v764 = vshrl.u32 %v429, 16
      %v766 = vrot.slane %v764, 7
      %v767 = vshll.u32 %v429, 16
      %v769 = vor.u32 %v766, %v767
      %v770 = vrot.slane %v766, 4
      %v772 = vshrl.u32 %v430, 16
      %v774 = vrot.slane %v772, 7
      %v775 = vshll.u32 %v430, 16
      %v777 = vor.u32 %v774, %v775
      %v778 = vsel %vm558, %v770, %v777
      %v779 = vrot.slane %v774, 4
      %v781 = vshrl.u32 %v431, 16
      %v783 = vrot.slane %v781, 7
      %v784 = vshll.u32 %v431, 16
      %v786 = vor.u32 %v783, %v784
      %v787 = vrot.slane %v783, 4
      %v789 = vshrl.u32 %v432, 16
      %v791 = vrot.slane %v789, 7
      %v792 = vshll.u32 %v432, 16
      %v794 = vor.u32 %v791, %v792
      %v795 = vsel %vm558, %v787, %v794
      %v796 = vrot.slane %v791, 4
      %v798 = vshrl.u32 %v433, 16
      %v800 = vrot.slane %v798, 7
      %v801 = vshll.u32 %v433, 16
      %v803 = vor.u32 %v800, %v801
      %v804 = vrot.slane %v800, 4
      %v806 = vshrl.u32 %v434, 16
      %v808 = vrot.slane %v806, 7
      %v809 = vshll.u32 %v434, 16
      %v811 = vor.u32 %v808, %v809
      %v812 = vsel %vm558, %v804, %v811
      %v813 = vrot.slane %v808, 4
      %v815 = vshrl.u32 %v435, 16
      %v817 = vrot.slane %v815, 7
      %v818 = vshll.u32 %v435, 16
      %v820 = vor.u32 %v817, %v818
      %v821 = vrot.slane %v817, 4
      %v823 = vshrl.u32 %v436, 16
      %v825 = vrot.slane %v823, 7
      %v826 = vshll.u32 %v436, 16
      %v828 = vor.u32 %v825, %v826
      %v829 = vsel %vm558, %v821, %v828
      %v830 = vrot.slane %v825, 4
      %s879 = scalar_lea.vmem [#allocation2], 12
      %vm880 = vcmask 1043456
      %vm881 = vmand %vm880, %vm501
      %v882 = vld [vmem:[%s879] sm:$0xf]
      %v883 = vsel %vm881, %v565, %v882
      %884 = vst [vmem:[%s879] sm:$0xf] %v883
      %885 = vst [vmem:[%s879 + $0x4] sm:$0xf] %v574
      %v886 = vld [vmem:[%s879 + $0x8] sm:$0x1]
      %v887 = vsel %vm446, %v575, %v886
      %888 = vst [vmem:[%s879 + $0x8] sm:$0x1] %v887
      %v889 = vld [vmem:[%s879 + $0xc] sm:$0xf]
      %v890 = vsel %vm881, %v582, %v889
      %891 = vst [vmem:[%s879 + $0xc] sm:$0xf] %v890
      %892 = vst [vmem:[%s879 + $0x10] sm:$0xf] %v591
      %v893 = vld [vmem:[%s879 + $0x14] sm:$0x1]
      %v894 = vsel %vm446, %v592, %v893
      %895 = vst [vmem:[%s879 + $0x14] sm:$0x1] %v894
      %v896 = vld [vmem:[%s879 + $0x18] sm:$0xf]
      %v897 = vsel %vm881, %v599, %v896
      %898 = vst [vmem:[%s879 + $0x18] sm:$0xf] %v897
      %899 = vst [vmem:[%s879 + $0x1c] sm:$0xf] %v608
      %v900 = vld [vmem:[%s879 + $0x20] sm:$0x1]
      %v901 = vsel %vm446, %v609, %v900
      %902 = vst [vmem:[%s879 + $0x20] sm:$0x1] %v901
      %v903 = vld [vmem:[%s879 + $0x24] sm:$0xf]
      %v904 = vsel %vm881, %v616, %v903
      %905 = vst [vmem:[%s879 + $0x24] sm:$0xf] %v904
      %906 = vst [vmem:[%s879 + $0x28] sm:$0xf] %v625
      %v907 = vld [vmem:[%s879 + $0x2c] sm:$0x1]
      %v908 = vsel %vm446, %v626, %v907
      %909 = vst [vmem:[%s879 + $0x2c] sm:$0x1] %v908
      %v910 = vld [vmem:[%s879 + $0x30] sm:$0xf]
      %v911 = vsel %vm881, %v633, %v910
      %912 = vst [vmem:[%s879 + $0x30] sm:$0xf] %v911
      %913 = vst [vmem:[%s879 + $0x34] sm:$0xf] %v642
      %v914 = vld [vmem:[%s879 + $0x38] sm:$0x1]
      %v915 = vsel %vm446, %v643, %v914
      %916 = vst [vmem:[%s879 + $0x38] sm:$0x1] %v915
      %v917 = vld [vmem:[%s879 + $0x3c] sm:$0xf]
      %v918 = vsel %vm881, %v650, %v917
      %919 = vst [vmem:[%s879 + $0x3c] sm:$0xf] %v918
      %920 = vst [vmem:[%s879 + $0x40] sm:$0xf] %v659
      %v921 = vld [vmem:[%s879 + $0x44] sm:$0x1]
      %v922 = vsel %vm446, %v660, %v921
      %923 = vst [vmem:[%s879 + $0x44] sm:$0x1] %v922
      %v924 = vld [vmem:[%s879 + $0x48] sm:$0xf]
      %v925 = vsel %vm881, %v667, %v924
      %926 = vst [vmem:[%s879 + $0x48] sm:$0xf] %v925
      %927 = vst [vmem:[%s879 + $0x4c] sm:$0xf] %v676
      %v928 = vld [vmem:[%s879 + $0x50] sm:$0x1]
      %v929 = vsel %vm446, %v677, %v928
      %930 = vst [vmem:[%s879 + $0x50] sm:$0x1] %v929
      %v931 = vld [vmem:[%s879 + $0x54] sm:$0xf]
      %v932 = vsel %vm881, %v684, %v931
      %933 = vst [vmem:[%s879 + $0x54] sm:$0xf] %v932
      %934 = vst [vmem:[%s879 + $0x58] sm:$0xf] %v693
      %v935 = vld [vmem:[%s879 + $0x5c] sm:$0x1]
      %v936 = vsel %vm446, %v694, %v935
      %937 = vst [vmem:[%s879 + $0x5c] sm:$0x1] %v936
      %v938 = vld [vmem:[%s879 + $0x60] sm:$0xf]
      %v939 = vsel %vm881, %v701, %v938
      %940 = vst [vmem:[%s879 + $0x60] sm:$0xf] %v939
      %941 = vst [vmem:[%s879 + $0x64] sm:$0xf] %v710
      %v942 = vld [vmem:[%s879 + $0x68] sm:$0x1]
      %v943 = vsel %vm446, %v711, %v942
      %944 = vst [vmem:[%s879 + $0x68] sm:$0x1] %v943
      %v945 = vld [vmem:[%s879 + $0x6c] sm:$0xf]
      %v946 = vsel %vm881, %v718, %v945
      %947 = vst [vmem:[%s879 + $0x6c] sm:$0xf] %v946
      %948 = vst [vmem:[%s879 + $0x70] sm:$0xf] %v727
      %v949 = vld [vmem:[%s879 + $0x74] sm:$0x1]
      %v950 = vsel %vm446, %v728, %v949
      %951 = vst [vmem:[%s879 + $0x74] sm:$0x1] %v950
      %v952 = vld [vmem:[%s879 + $0x78] sm:$0xf]
      %v953 = vsel %vm881, %v735, %v952
      %954 = vst [vmem:[%s879 + $0x78] sm:$0xf] %v953
      %955 = vst [vmem:[%s879 + $0x7c] sm:$0xf] %v744
      %v956 = vld [vmem:[%s879 + $0x80] sm:$0x1]
      %v957 = vsel %vm446, %v745, %v956
      %958 = vst [vmem:[%s879 + $0x80] sm:$0x1] %v957
      %v959 = vld [vmem:[%s879 + $0x84] sm:$0xf]
      %v960 = vsel %vm881, %v752, %v959
      %961 = vst [vmem:[%s879 + $0x84] sm:$0xf] %v960
      %962 = vst [vmem:[%s879 + $0x88] sm:$0xf] %v761
      %v963 = vld [vmem:[%s879 + $0x8c] sm:$0x1]
      %v964 = vsel %vm446, %v762, %v963
      %965 = vst [vmem:[%s879 + $0x8c] sm:$0x1] %v964
      %v966 = vld [vmem:[%s879 + $0x90] sm:$0xf]
      %v967 = vsel %vm881, %v769, %v966
      %968 = vst [vmem:[%s879 + $0x90] sm:$0xf] %v967
      %969 = vst [vmem:[%s879 + $0x94] sm:$0xf] %v778
      %v970 = vld [vmem:[%s879 + $0x98] sm:$0x1]
      %v971 = vsel %vm446, %v779, %v970
      %972 = vst [vmem:[%s879 + $0x98] sm:$0x1] %v971
      %v973 = vld [vmem:[%s879 + $0x9c] sm:$0xf]
      %v974 = vsel %vm881, %v786, %v973
      %975 = vst [vmem:[%s879 + $0x9c] sm:$0xf] %v974
      %976 = vst [vmem:[%s879 + $0xa0] sm:$0xf] %v795
      %v977 = vld [vmem:[%s879 + $0xa4] sm:$0x1]
      %v978 = vsel %vm446, %v796, %v977
      %979 = vst [vmem:[%s879 + $0xa4] sm:$0x1] %v978
      %v980 = vld [vmem:[%s879 + $0xa8] sm:$0xf]
      %v981 = vsel %vm881, %v803, %v980
      %982 = vst [vmem:[%s879 + $0xa8] sm:$0xf] %v981
      %983 = vst [vmem:[%s879 + $0xac] sm:$0xf] %v812
      %v984 = vld [vmem:[%s879 + $0xb0] sm:$0x1]
      %v985 = vsel %vm446, %v813, %v984
      %986 = vst [vmem:[%s879 + $0xb0] sm:$0x1] %v985
      %v987 = vld [vmem:[%s879 + $0xb4] sm:$0xf]
      %v988 = vsel %vm881, %v820, %v987
      %989 = vst [vmem:[%s879 + $0xb4] sm:$0xf] %v988
      %990 = vst [vmem:[%s879 + $0xb8] sm:$0xf] %v829
      %v991 = vld [vmem:[%s879 + $0xbc] sm:$0x1]
      %v992 = vsel %vm446, %v830, %v991
      %993 = vst [vmem:[%s879 + $0xbc] sm:$0x1] %v992
      %v994 = vld [vmem:[#allocation2] sm:$0xf]
      %v995 = vld [vmem:[#allocation2 + $0x4] sm:$0xf]
      %v996 = vld [vmem:[#allocation2 + $0xc] sm:$0xf]
      %v997 = vld [vmem:[#allocation2 + $0x10] sm:$0xf]
      %v998 = vld [vmem:[#allocation2 + $0x18] sm:$0xf]
      %v999 = vld [vmem:[#allocation2 + $0x1c] sm:$0xf]
      %v1000 = vld [vmem:[#allocation2 + $0x24] sm:$0xf]
      %v1001 = vld [vmem:[#allocation2 + $0x28] sm:$0xf]
      %v1002 = vld [vmem:[#allocation2 + $0x30] sm:$0xf]
      %v1003 = vld [vmem:[#allocation2 + $0x34] sm:$0xf]
      %v1004 = vld [vmem:[#allocation2 + $0x3c] sm:$0xf]
      %v1005 = vld [vmem:[#allocation2 + $0x40] sm:$0xf]
      %v1006 = vld [vmem:[#allocation2 + $0x48] sm:$0xf]
      %v1007 = vld [vmem:[#allocation2 + $0x4c] sm:$0xf]
      %v1008 = vld [vmem:[#allocation2 + $0x54] sm:$0xf]
      %v1009 = vld [vmem:[#allocation2 + $0x58] sm:$0xf]
      %v1010 = vld [vmem:[#allocation2 + $0x60] sm:$0xf]
      %v1011 = vld [vmem:[#allocation2 + $0x64] sm:$0xf]
      %v1012 = vld [vmem:[#allocation2 + $0x6c] sm:$0xf]
      %v1013 = vld [vmem:[#allocation2 + $0x70] sm:$0xf]
      %v1014 = vld [vmem:[#allocation2 + $0x78] sm:$0xf]
      %v1015 = vld [vmem:[#allocation2 + $0x7c] sm:$0xf]
      %v1016 = vld [vmem:[#allocation2 + $0x84] sm:$0xf]
      %v1017 = vld [vmem:[#allocation2 + $0x88] sm:$0xf]
      %v1018 = vld [vmem:[#allocation2 + $0x90] sm:$0xf]
      %v1019 = vld [vmem:[#allocation2 + $0x94] sm:$0xf]
      %v1020 = vld [vmem:[#allocation2 + $0x9c] sm:$0xf]
      %v1021 = vld [vmem:[#allocation2 + $0xa0] sm:$0xf]
      %v1022 = vld [vmem:[#allocation2 + $0xa8] sm:$0xf]
      %v1023 = vld [vmem:[#allocation2 + $0xac] sm:$0xf]
      %v1024 = vld [vmem:[#allocation2 + $0xb4] sm:$0xf]
      %v1025 = vld [vmem:[#allocation2 + $0xb8] sm:$0xf]
      %v1026 = vld [vmem:[%s3] sm:$0xf]
      %v1027 = vld [vmem:[%s3 + $0x4] sm:$0xf]
      %v1028 = vld [vmem:[%s3 + $0x8] sm:$0xf]
      %v1029 = vld [vmem:[%s3 + $0xc] sm:$0xf]
      %v1030 = vld [vmem:[%s3 + $0x10] sm:$0xf]
      %v1031 = vld [vmem:[%s3 + $0x14] sm:$0xf]
      %v1032 = vld [vmem:[%s3 + $0x18] sm:$0xf]
      %v1033 = vld [vmem:[%s3 + $0x1c] sm:$0xf]
      %v1034 = vld [vmem:[%s3 + $0x20] sm:$0xf]
      %v1035 = vld [vmem:[%s3 + $0x24] sm:$0xf]
      %v1036 = vld [vmem:[%s3 + $0x28] sm:$0xf]
      %v1037 = vld [vmem:[%s3 + $0x2c] sm:$0xf]
      %v1038 = vld [vmem:[%s3 + $0x30] sm:$0xf]
      %v1039 = vld [vmem:[%s3 + $0x34] sm:$0xf]
      %v1040 = vld [vmem:[%s3 + $0x38] sm:$0xf]
      %v1041 = vld [vmem:[%s3 + $0x3c] sm:$0xf]
      %v1042 = vld [vmem:[#allocation2 + $0x8] sm:$0x1]
      %v1043 = vld [vmem:[#allocation2 + $0x14] sm:$0x1]
      %v1044 = vld [vmem:[#allocation2 + $0x20] sm:$0x1]
      %v1045 = vld [vmem:[#allocation2 + $0x2c] sm:$0x1]
      %v1046 = vld [vmem:[#allocation2 + $0x38] sm:$0x1]
      %v1047 = vld [vmem:[#allocation2 + $0x44] sm:$0x1]
      %v1048 = vld [vmem:[#allocation2 + $0x50] sm:$0x1]
      %v1049 = vld [vmem:[#allocation2 + $0x5c] sm:$0x1]
      %v1050 = vld [vmem:[#allocation2 + $0x68] sm:$0x1]
      %v1051 = vld [vmem:[#allocation2 + $0x74] sm:$0x1]
      %v1052 = vld [vmem:[#allocation2 + $0x80] sm:$0x1]
      %v1053 = vld [vmem:[#allocation2 + $0x8c] sm:$0x1]
      %v1054 = vld [vmem:[#allocation2 + $0x98] sm:$0x1]
      %v1055 = vld [vmem:[#allocation2 + $0xa4] sm:$0x1]
      %v1056 = vld [vmem:[#allocation2 + $0xb0] sm:$0x1]
      %v1057 = vld [vmem:[#allocation2 + $0xbc] sm:$0x1]
      %vm1058 = vsmask.f32 3328
      %vm1059 = vsmask.f32 7440
      %vm1060 = vmor %vm1058, %vm1059
      %v1062 = vshrl.u32 %v994, 16
      %v1064 = vrot.slane %v1062, 4
      %v1065 = vshll.u32 %v994, 16
      %v1067 = vrot.slane %v1065, 5
      %v1068 = vor.u32 %v1064, %v1067
      %v1069 = vrot.slane %v1068, 4
      %v1071 = vshll.u32 %v995, 16
      %v1073 = vrot.slane %v1071, 5
      %v1074 = vsel %vm1060, %v1069, %v1073
      %v1075 = vshrl.u32 %v995, 16
      %v1077 = vrot.slane %v1075, 4
      %v1078 = vor.u32 %v1077, %v1073
      %v1079 = vrot.slane %v1078, 4
      %v1081 = vshll.u32 %v1042, 16
      %v1083 = vrot.slane %v1081, 5
      %v1084 = vsel %vm1060, %v1079, %v1083
      %v1086 = vshrl.u32 %v996, 16
      %v1088 = vrot.slane %v1086, 4
      %v1089 = vshll.u32 %v996, 16
      %v1091 = vrot.slane %v1089, 5
      %v1092 = vor.u32 %v1088, %v1091
      %v1093 = vrot.slane %v1092, 4
      %v1095 = vshll.u32 %v997, 16
      %v1097 = vrot.slane %v1095, 5
      %v1098 = vsel %vm1060, %v1093, %v1097
      %v1099 = vshrl.u32 %v997, 16
      %v1101 = vrot.slane %v1099, 4
      %v1102 = vor.u32 %v1101, %v1097
      %v1103 = vrot.slane %v1102, 4
      %v1105 = vshll.u32 %v1043, 16
      %v1107 = vrot.slane %v1105, 5
      %v1108 = vsel %vm1060, %v1103, %v1107
      %v1110 = vshrl.u32 %v998, 16
      %v1112 = vrot.slane %v1110, 4
      %v1113 = vshll.u32 %v998, 16
      %v1115 = vrot.slane %v1113, 5
      %v1116 = vor.u32 %v1112, %v1115
      %v1117 = vrot.slane %v1116, 4
      %v1119 = vshll.u32 %v999, 16
      %v1121 = vrot.slane %v1119, 5
      %v1122 = vsel %vm1060, %v1117, %v1121
      %v1123 = vshrl.u32 %v999, 16
      %v1125 = vrot.slane %v1123, 4
      %v1126 = vor.u32 %v1125, %v1121
      %v1127 = vrot.slane %v1126, 4
      %v1129 = vshll.u32 %v1044, 16
      %v1131 = vrot.slane %v1129, 5
      %v1132 = vsel %vm1060, %v1127, %v1131
      %v1134 = vshrl.u32 %v1000, 16
      %v1136 = vrot.slane %v1134, 4
      %v1137 = vshll.u32 %v1000, 16
      %v1139 = vrot.slane %v1137, 5
      %v1140 = vor.u32 %v1136, %v1139
      %v1141 = vrot.slane %v1140, 4
      %v1143 = vshll.u32 %v1001, 16
      %v1145 = vrot.slane %v1143, 5
      %v1146 = vsel %vm1060, %v1141, %v1145
      %v1147 = vshrl.u32 %v1001, 16
      %v1149 = vrot.slane %v1147, 4
      %v1150 = vor.u32 %v1149, %v1145
      %v1151 = vrot.slane %v1150, 4
      %v1153 = vshll.u32 %v1045, 16
      %v1155 = vrot.slane %v1153, 5
      %v1156 = vsel %vm1060, %v1151, %v1155
      %v1158 = vshrl.u32 %v1002, 16
      %v1160 = vrot.slane %v1158, 4
      %v1161 = vshll.u32 %v1002, 16
      %v1163 = vrot.slane %v1161, 5
      %v1164 = vor.u32 %v1160, %v1163
      %v1165 = vrot.slane %v1164, 4
      %v1167 = vshll.u32 %v1003, 16
      %v1169 = vrot.slane %v1167, 5
      %v1170 = vsel %vm1060, %v1165, %v1169
      %v1171 = vshrl.u32 %v1003, 16
      %v1173 = vrot.slane %v1171, 4
      %v1174 = vor.u32 %v1173, %v1169
      %v1175 = vrot.slane %v1174, 4
      %v1177 = vshll.u32 %v1046, 16
      %v1179 = vrot.slane %v1177, 5
      %v1180 = vsel %vm1060, %v1175, %v1179
      %v1182 = vshrl.u32 %v1004, 16
      %v1184 = vrot.slane %v1182, 4
      %v1185 = vshll.u32 %v1004, 16
      %v1187 = vrot.slane %v1185, 5
      %v1188 = vor.u32 %v1184, %v1187
      %v1189 = vrot.slane %v1188, 4
      %v1191 = vshll.u32 %v1005, 16
      %v1193 = vrot.slane %v1191, 5
      %v1194 = vsel %vm1060, %v1189, %v1193
      %v1195 = vshrl.u32 %v1005, 16
      %v1197 = vrot.slane %v1195, 4
      %v1198 = vor.u32 %v1197, %v1193
      %v1199 = vrot.slane %v1198, 4
      %v1201 = vshll.u32 %v1047, 16
      %v1203 = vrot.slane %v1201, 5
      %v1204 = vsel %vm1060, %v1199, %v1203
      %v1206 = vshrl.u32 %v1006, 16
      %v1208 = vrot.slane %v1206, 4
      %v1209 = vshll.u32 %v1006, 16
      %v1211 = vrot.slane %v1209, 5
      %v1212 = vor.u32 %v1208, %v1211
      %v1213 = vrot.slane %v1212, 4
      %v1215 = vshll.u32 %v1007, 16
      %v1217 = vrot.slane %v1215, 5
      %v1218 = vsel %vm1060, %v1213, %v1217
      %v1219 = vshrl.u32 %v1007, 16
      %v1221 = vrot.slane %v1219, 4
      %v1222 = vor.u32 %v1221, %v1217
      %v1223 = vrot.slane %v1222, 4
      %v1225 = vshll.u32 %v1048, 16
      %v1227 = vrot.slane %v1225, 5
      %v1228 = vsel %vm1060, %v1223, %v1227
      %v1230 = vshrl.u32 %v1008, 16
      %v1232 = vrot.slane %v1230, 4
      %v1233 = vshll.u32 %v1008, 16
      %v1235 = vrot.slane %v1233, 5
      %v1236 = vor.u32 %v1232, %v1235
      %v1237 = vrot.slane %v1236, 4
      %v1239 = vshll.u32 %v1009, 16
      %v1241 = vrot.slane %v1239, 5
      %v1242 = vsel %vm1060, %v1237, %v1241
      %v1243 = vshrl.u32 %v1009, 16
      %v1245 = vrot.slane %v1243, 4
      %v1246 = vor.u32 %v1245, %v1241
      %v1247 = vrot.slane %v1246, 4
      %v1249 = vshll.u32 %v1049, 16
      %v1251 = vrot.slane %v1249, 5
      %v1252 = vsel %vm1060, %v1247, %v1251
      %v1254 = vshrl.u32 %v1010, 16
      %v1256 = vrot.slane %v1254, 4
      %v1257 = vshll.u32 %v1010, 16
      %v1259 = vrot.slane %v1257, 5
      %v1260 = vor.u32 %v1256, %v1259
      %v1261 = vrot.slane %v1260, 4
      %v1263 = vshll.u32 %v1011, 16
      %v1265 = vrot.slane %v1263, 5
      %v1266 = vsel %vm1060, %v1261, %v1265
      %v1267 = vshrl.u32 %v1011, 16
      %v1269 = vrot.slane %v1267, 4
      %v1270 = vor.u32 %v1269, %v1265
      %v1271 = vrot.slane %v1270, 4
      %v1273 = vshll.u32 %v1050, 16
      %v1275 = vrot.slane %v1273, 5
      %v1276 = vsel %vm1060, %v1271, %v1275
      %v1278 = vshrl.u32 %v1012, 16
      %v1280 = vrot.slane %v1278, 4
      %v1281 = vshll.u32 %v1012, 16
      %v1283 = vrot.slane %v1281, 5
      %v1284 = vor.u32 %v1280, %v1283
      %v1285 = vrot.slane %v1284, 4
      %v1287 = vshll.u32 %v1013, 16
      %v1289 = vrot.slane %v1287, 5
      %v1290 = vsel %vm1060, %v1285, %v1289
      %v1291 = vshrl.u32 %v1013, 16
      %v1293 = vrot.slane %v1291, 4
      %v1294 = vor.u32 %v1293, %v1289
      %v1295 = vrot.slane %v1294, 4
      %v1297 = vshll.u32 %v1051, 16
      %v1299 = vrot.slane %v1297, 5
      %v1300 = vsel %vm1060, %v1295, %v1299
      %v1302 = vshrl.u32 %v1014, 16
      %v1304 = vrot.slane %v1302, 4
      %v1305 = vshll.u32 %v1014, 16
      %v1307 = vrot.slane %v1305, 5
      %v1308 = vor.u32 %v1304, %v1307
      %v1309 = vrot.slane %v1308, 4
      %v1311 = vshll.u32 %v1015, 16
      %v1313 = vrot.slane %v1311, 5
      %v1314 = vsel %vm1060, %v1309, %v1313
      %v1315 = vshrl.u32 %v1015, 16
      %v1317 = vrot.slane %v1315, 4
      %v1318 = vor.u32 %v1317, %v1313
      %v1319 = vrot.slane %v1318, 4
      %v1321 = vshll.u32 %v1052, 16
      %v1323 = vrot.slane %v1321, 5
      %v1324 = vsel %vm1060, %v1319, %v1323
      %v1326 = vshrl.u32 %v1016, 16
      %v1328 = vrot.slane %v1326, 4
      %v1329 = vshll.u32 %v1016, 16
      %v1331 = vrot.slane %v1329, 5
      %v1332 = vor.u32 %v1328, %v1331
      %v1333 = vrot.slane %v1332, 4
      %v1335 = vshll.u32 %v1017, 16
      %v1337 = vrot.slane %v1335, 5
      %v1338 = vsel %vm1060, %v1333, %v1337
      %v1339 = vshrl.u32 %v1017, 16
      %v1341 = vrot.slane %v1339, 4
      %v1342 = vor.u32 %v1341, %v1337
      %v1343 = vrot.slane %v1342, 4
      %v1345 = vshll.u32 %v1053, 16
      %v1347 = vrot.slane %v1345, 5
      %v1348 = vsel %vm1060, %v1343, %v1347
      %v1350 = vshrl.u32 %v1018, 16
      %v1352 = vrot.slane %v1350, 4
      %v1353 = vshll.u32 %v1018, 16
      %v1355 = vrot.slane %v1353, 5
      %v1356 = vor.u32 %v1352, %v1355
      %v1357 = vrot.slane %v1356, 4
      %v1359 = vshll.u32 %v1019, 16
      %v1361 = vrot.slane %v1359, 5
      %v1362 = vsel %vm1060, %v1357, %v1361
      %v1363 = vshrl.u32 %v1019, 16
      %v1365 = vrot.slane %v1363, 4
      %v1366 = vor.u32 %v1365, %v1361
      %v1367 = vrot.slane %v1366, 4
      %v1369 = vshll.u32 %v1054, 16
      %v1371 = vrot.slane %v1369, 5
      %v1372 = vsel %vm1060, %v1367, %v1371
      %v1374 = vshrl.u32 %v1020, 16
      %v1376 = vrot.slane %v1374, 4
      %v1377 = vshll.u32 %v1020, 16
      %v1379 = vrot.slane %v1377, 5
      %v1380 = vor.u32 %v1376, %v1379
      %v1381 = vrot.slane %v1380, 4
      %v1383 = vshll.u32 %v1021, 16
      %v1385 = vrot.slane %v1383, 5
      %v1386 = vsel %vm1060, %v1381, %v1385
      %v1387 = vshrl.u32 %v1021, 16
      %v1389 = vrot.slane %v1387, 4
      %v1390 = vor.u32 %v1389, %v1385
      %v1391 = vrot.slane %v1390, 4
      %v1393 = vshll.u32 %v1055, 16
      %v1395 = vrot.slane %v1393, 5
      %v1396 = vsel %vm1060, %v1391, %v1395
      %v1398 = vshrl.u32 %v1022, 16
      %v1400 = vrot.slane %v1398, 4
      %v1401 = vshll.u32 %v1022, 16
      %v1403 = vrot.slane %v1401, 5
      %v1404 = vor.u32 %v1400, %v1403
      %v1405 = vrot.slane %v1404, 4
      %v1407 = vshll.u32 %v1023, 16
      %v1409 = vrot.slane %v1407, 5
      %v1410 = vsel %vm1060, %v1405, %v1409
      %v1411 = vshrl.u32 %v1023, 16
      %v1413 = vrot.slane %v1411, 4
      %v1414 = vor.u32 %v1413, %v1409
      %v1415 = vrot.slane %v1414, 4
      %v1417 = vshll.u32 %v1056, 16
      %v1419 = vrot.slane %v1417, 5
      %v1420 = vsel %vm1060, %v1415, %v1419
      %v1422 = vshrl.u32 %v1024, 16
      %v1424 = vrot.slane %v1422, 4
      %v1425 = vshll.u32 %v1024, 16
      %v1427 = vrot.slane %v1425, 5
      %v1428 = vor.u32 %v1424, %v1427
      %v1429 = vrot.slane %v1428, 4
      %v1431 = vshll.u32 %v1025, 16
      %v1433 = vrot.slane %v1431, 5
      %v1434 = vsel %vm1060, %v1429, %v1433
      %v1435 = vshrl.u32 %v1025, 16
      %v1437 = vrot.slane %v1435, 4
      %v1438 = vor.u32 %v1437, %v1433
      %v1439 = vrot.slane %v1438, 4
      %v1441 = vshll.u32 %v1057, 16
      %v1443 = vrot.slane %v1441, 5
      %v1444 = vsel %vm1060, %v1439, %v1443
      %v1445 = vld [vmem:[%s3 + $0x40] sm:$0xf]
      %v1446 = vld [vmem:[%s3 + $0x44] sm:$0xf]
      %v1447 = vld [vmem:[%s3 + $0x48] sm:$0xf]
      %v1448 = vld [vmem:[%s3 + $0x4c] sm:$0xf]
      %v1449 = vld [vmem:[%s3 + $0x50] sm:$0xf]
      %v1450 = vld [vmem:[%s3 + $0x54] sm:$0xf]
      %v1451 = vld [vmem:[%s3 + $0x58] sm:$0xf]
      %v1452 = vld [vmem:[%s3 + $0x5c] sm:$0xf]
      %v1453 = vld [vmem:[%s3 + $0x60] sm:$0xf]
      %v1454 = vld [vmem:[%s3 + $0x64] sm:$0xf]
      %v1455 = vld [vmem:[%s3 + $0x68] sm:$0xf]
      %v1456 = vld [vmem:[%s3 + $0x6c] sm:$0xf]
      %v1457 = vld [vmem:[%s3 + $0x70] sm:$0xf]
      %v1458 = vld [vmem:[%s3 + $0x74] sm:$0xf]
      %v1459 = vld [vmem:[%s3 + $0x78] sm:$0xf]
      %v1460 = vld [vmem:[%s3 + $0x7c] sm:$0xf]
      %v1461 = vunpack.c.l.b16 %v1074
      %v1462 = vunpack.c.l.b16 %v1084
      %v1463 = vunpack.c.l.b16 %v1098
      %v1464 = vunpack.c.l.b16 %v1108
      %v1465 = vunpack.c.l.b16 %v1122
      %v1466 = vunpack.c.l.b16 %v1132
      %v1467 = vunpack.c.l.b16 %v1146
      %v1468 = vunpack.c.l.b16 %v1156
      %v1469 = vunpack.c.l.b16 %v1170
      %v1470 = vunpack.c.l.b16 %v1180
      %v1471 = vunpack.c.l.b16 %v1194
      %v1472 = vunpack.c.l.b16 %v1204
      %v1473 = vunpack.c.l.b16 %v1218
      %v1474 = vunpack.c.l.b16 %v1228
      %v1475 = vunpack.c.l.b16 %v1242
      %v1476 = vunpack.c.l.b16 %v1252
      %v1477 = vunpack.c.l.b16 %v1266
      %v1478 = vunpack.c.l.b16 %v1276
      %v1479 = vunpack.c.l.b16 %v1290
      %v1480 = vunpack.c.l.b16 %v1300
      %v1481 = vunpack.c.l.b16 %v1314
      %v1482 = vunpack.c.l.b16 %v1324
      %v1483 = vunpack.c.l.b16 %v1338
      %v1484 = vunpack.c.l.b16 %v1348
      %v1485 = vunpack.c.l.b16 %v1362
      %v1486 = vunpack.c.l.b16 %v1372
      %v1487 = vunpack.c.l.b16 %v1386
      %v1488 = vunpack.c.l.b16 %v1396
      %v1489 = vunpack.c.l.b16 %v1410
      %v1490 = vunpack.c.l.b16 %v1420
      %v1491 = vunpack.c.l.b16 %v1434
      %v1492 = vunpack.c.l.b16 %v1444
      %v1493 = vpack.c.b16 %v1462, %v1461
      %v1494 = vpack.c.b16 %v1464, %v1463
      %v1495 = vpack.c.b16 %v1466, %v1465
      %v1496 = vpack.c.b16 %v1468, %v1467
      %v1497 = vpack.c.b16 %v1470, %v1469
      %v1498 = vpack.c.b16 %v1472, %v1471
      %v1499 = vpack.c.b16 %v1474, %v1473
      %v1500 = vpack.c.b16 %v1476, %v1475
      %v1501 = vpack.c.b16 %v1478, %v1477
      %v1502 = vpack.c.b16 %v1480, %v1479
      %v1503 = vpack.c.b16 %v1482, %v1481
      %v1504 = vpack.c.b16 %v1484, %v1483
      %v1505 = vpack.c.b16 %v1486, %v1485
      %v1506 = vpack.c.b16 %v1488, %v1487
      %v1507 = vpack.c.b16 %v1490, %v1489
      %v1508 = vpack.c.b16 %v1492, %v1491
      %v1541 = vunpack.c.l.b16 %v1445
      %v1542 = vunpack.c.l.b16 %v1446
      %v1543 = vunpack.c.l.b16 %v1447
      %v1544 = vunpack.c.l.b16 %v1448
      %v1545 = vunpack.c.l.b16 %v1449
      %v1546 = vunpack.c.l.b16 %v1450
      %v1547 = vunpack.c.l.b16 %v1451
      %v1548 = vunpack.c.l.b16 %v1452
      %v1549 = vunpack.c.l.b16 %v1453
      %v1550 = vunpack.c.l.b16 %v1454
      %v1551 = vunpack.c.l.b16 %v1455
      %v1552 = vunpack.c.l.b16 %v1456
      %v1553 = vunpack.c.l.b16 %v1457
      %v1554 = vunpack.c.l.b16 %v1458
      %v1555 = vunpack.c.l.b16 %v1459
      %v1556 = vunpack.c.l.b16 %v1460
      %v1557 = vpack.c.b16 %v1542, %v1541
      %v1558 = vpack.c.b16 %v1544, %v1543
      %v1559 = vpack.c.b16 %v1546, %v1545
      %v1560 = vpack.c.b16 %v1548, %v1547
      %v1561 = vpack.c.b16 %v1550, %v1549
      %v1562 = vpack.c.b16 %v1552, %v1551
      %v1563 = vpack.c.b16 %v1554, %v1553
      %v1564 = vpack.c.b16 %v1556, %v1555
      %1573 = vmatpush.bf16.msra.mxu0 %v1564
      %1574 = vmatpush.bf16.msra.mxu0 %v1563
      %1575 = vmatpush.bf16.msra.mxu0 %v1562
      %1576 = vmatpush.bf16.msra.mxu0 %v1561
      %1577 = vmatpush.bf16.msra.mxu0 %v1560
      %1578 = vmatpush.bf16.msra.mxu0 %v1559
      %1579 = vmatpush.bf16.msra.mxu0 %v1558
      %1580 = vmatpush.bf16.msra.mxu0 %v1557
      %1581 = vmatmul.bf16.gmra.mxu0 %v1493
      %v1582 = vpop.f32.mrf.mxu0
      %v1583 = vadd.f32 0.0, %v1582
      %v1584 = vpop.f32.mrf.mxu0
      %v1585 = vadd.f32 0.0, %v1584
      %1586 = vmatmul.bf16.gmra.mxu0 %v1494
      %v1587 = vpop.f32.mrf.mxu0
      %v1588 = vadd.f32 0.0, %v1587
      %v1589 = vpop.f32.mrf.mxu0
      %v1590 = vadd.f32 0.0, %v1589
      %1591 = vmatmul.bf16.gmra.mxu0 %v1495
      %v1592 = vpop.f32.mrf.mxu0
      %v1593 = vadd.f32 0.0, %v1592
      %v1594 = vpop.f32.mrf.mxu0
      %v1595 = vadd.f32 0.0, %v1594
      %1596 = vmatmul.bf16.gmra.mxu0 %v1496
      %v1597 = vpop.f32.mrf.mxu0
      %v1598 = vadd.f32 0.0, %v1597
      %v1599 = vpop.f32.mrf.mxu0
      %v1600 = vadd.f32 0.0, %v1599
      %1601 = vmatmul.bf16.gmra.mxu0 %v1497
      %v1602 = vpop.f32.mrf.mxu0
      %v1603 = vadd.f32 0.0, %v1602
      %v1604 = vpop.f32.mrf.mxu0
      %v1605 = vadd.f32 0.0, %v1604
      %1606 = vmatmul.bf16.gmra.mxu0 %v1498
      %v1607 = vpop.f32.mrf.mxu0
      %v1608 = vadd.f32 0.0, %v1607
      %v1609 = vpop.f32.mrf.mxu0
      %v1610 = vadd.f32 0.0, %v1609
      %1611 = vmatmul.bf16.gmra.mxu0 %v1499
      %v1612 = vpop.f32.mrf.mxu0
      %v1613 = vadd.f32 0.0, %v1612
      %v1614 = vpop.f32.mrf.mxu0
      %v1615 = vadd.f32 0.0, %v1614
      %1616 = vmatmul.bf16.gmra.mxu0 %v1500
      %v1617 = vpop.f32.mrf.mxu0
      %v1618 = vadd.f32 0.0, %v1617
      %v1619 = vpop.f32.mrf.mxu0
      %v1620 = vadd.f32 0.0, %v1619
      %1621 = vmatmul.bf16.gmra.mxu0 %v1501
      %v1622 = vpop.f32.mrf.mxu0
      %v1623 = vadd.f32 0.0, %v1622
      %v1624 = vpop.f32.mrf.mxu0
      %v1625 = vadd.f32 0.0, %v1624
      %1626 = vmatmul.bf16.gmra.mxu0 %v1502
      %v1627 = vpop.f32.mrf.mxu0
      %v1628 = vadd.f32 0.0, %v1627
      %v1629 = vpop.f32.mrf.mxu0
      %v1630 = vadd.f32 0.0, %v1629
      %1631 = vmatmul.bf16.gmra.mxu0 %v1503
      %v1632 = vpop.f32.mrf.mxu0
      %v1633 = vadd.f32 0.0, %v1632
      %v1634 = vpop.f32.mrf.mxu0
      %v1635 = vadd.f32 0.0, %v1634
      %1636 = vmatmul.bf16.gmra.mxu0 %v1504
      %v1637 = vpop.f32.mrf.mxu0
      %v1638 = vadd.f32 0.0, %v1637
      %v1639 = vpop.f32.mrf.mxu0
      %v1640 = vadd.f32 0.0, %v1639
      %1641 = vmatmul.bf16.gmra.mxu0 %v1505
      %v1642 = vpop.f32.mrf.mxu0
      %v1643 = vadd.f32 0.0, %v1642
      %v1644 = vpop.f32.mrf.mxu0
      %v1645 = vadd.f32 0.0, %v1644
      %1646 = vmatmul.bf16.gmra.mxu0 %v1506
      %v1647 = vpop.f32.mrf.mxu0
      %v1648 = vadd.f32 0.0, %v1647
      %v1649 = vpop.f32.mrf.mxu0
      %v1650 = vadd.f32 0.0, %v1649
      %1651 = vmatmul.bf16.gmra.mxu0 %v1507
      %v1652 = vpop.f32.mrf.mxu0
      %v1653 = vadd.f32 0.0, %v1652
      %v1654 = vpop.f32.mrf.mxu0
      %v1655 = vadd.f32 0.0, %v1654
      %1656 = vmatmul.bf16.gmra.mxu0 %v1508
      %v1657 = vpop.f32.mrf.mxu0
      %v1658 = vadd.f32 0.0, %v1657
      %v1659 = vpop.f32.mrf.mxu0
      %v1660 = vadd.f32 0.0, %v1659
      %1661 = vdwg.mxu0
      %v1694 = vunpack.c.l.b16 %v994
      %v1695 = vunpack.c.l.b16 %v995
      %v1696 = vunpack.c.l.b16 %v996
      %v1697 = vunpack.c.l.b16 %v997
      %v1698 = vunpack.c.l.b16 %v998
      %v1699 = vunpack.c.l.b16 %v999
      %v1700 = vunpack.c.l.b16 %v1000
      %v1701 = vunpack.c.l.b16 %v1001
      %v1702 = vunpack.c.l.b16 %v1002
      %v1703 = vunpack.c.l.b16 %v1003
      %v1704 = vunpack.c.l.b16 %v1004
      %v1705 = vunpack.c.l.b16 %v1005
      %v1706 = vunpack.c.l.b16 %v1006
      %v1707 = vunpack.c.l.b16 %v1007
      %v1708 = vunpack.c.l.b16 %v1008
      %v1709 = vunpack.c.l.b16 %v1009
      %v1710 = vunpack.c.l.b16 %v1010
      %v1711 = vunpack.c.l.b16 %v1011
      %v1712 = vunpack.c.l.b16 %v1012
      %v1713 = vunpack.c.l.b16 %v1013
      %v1714 = vunpack.c.l.b16 %v1014
      %v1715 = vunpack.c.l.b16 %v1015
      %v1716 = vunpack.c.l.b16 %v1016
      %v1717 = vunpack.c.l.b16 %v1017
      %v1718 = vunpack.c.l.b16 %v1018
      %v1719 = vunpack.c.l.b16 %v1019
      %v1720 = vunpack.c.l.b16 %v1020
      %v1721 = vunpack.c.l.b16 %v1021
      %v1722 = vunpack.c.l.b16 %v1022
      %v1723 = vunpack.c.l.b16 %v1023
      %v1724 = vunpack.c.l.b16 %v1024
      %v1725 = vunpack.c.l.b16 %v1025
      %v1726 = vpack.c.b16 %v1695, %v1694
      %v1727 = vpack.c.b16 %v1697, %v1696
      %v1728 = vpack.c.b16 %v1699, %v1698
      %v1729 = vpack.c.b16 %v1701, %v1700
      %v1730 = vpack.c.b16 %v1703, %v1702
      %v1731 = vpack.c.b16 %v1705, %v1704
      %v1732 = vpack.c.b16 %v1707, %v1706
      %v1733 = vpack.c.b16 %v1709, %v1708
      %v1734 = vpack.c.b16 %v1711, %v1710
      %v1735 = vpack.c.b16 %v1713, %v1712
      %v1736 = vpack.c.b16 %v1715, %v1714
      %v1737 = vpack.c.b16 %v1717, %v1716
      %v1738 = vpack.c.b16 %v1719, %v1718
      %v1739 = vpack.c.b16 %v1721, %v1720
      %v1740 = vpack.c.b16 %v1723, %v1722
      %v1741 = vpack.c.b16 %v1725, %v1724
      %v1774 = vunpack.c.l.b16 %v1026
      %v1775 = vunpack.c.l.b16 %v1027
      %v1776 = vunpack.c.l.b16 %v1028
      %v1777 = vunpack.c.l.b16 %v1029
      %v1778 = vunpack.c.l.b16 %v1030
      %v1779 = vunpack.c.l.b16 %v1031
      %v1780 = vunpack.c.l.b16 %v1032
      %v1781 = vunpack.c.l.b16 %v1033
      %v1782 = vunpack.c.l.b16 %v1034
      %v1783 = vunpack.c.l.b16 %v1035
      %v1784 = vunpack.c.l.b16 %v1036
      %v1785 = vunpack.c.l.b16 %v1037
      %v1786 = vunpack.c.l.b16 %v1038
      %v1787 = vunpack.c.l.b16 %v1039
      %v1788 = vunpack.c.l.b16 %v1040
      %v1789 = vunpack.c.l.b16 %v1041
      %v1790 = vpack.c.b16 %v1775, %v1774
      %v1791 = vpack.c.b16 %v1777, %v1776
      %v1792 = vpack.c.b16 %v1779, %v1778
      %v1793 = vpack.c.b16 %v1781, %v1780
      %v1794 = vpack.c.b16 %v1783, %v1782
      %v1795 = vpack.c.b16 %v1785, %v1784
      %v1796 = vpack.c.b16 %v1787, %v1786
      %v1797 = vpack.c.b16 %v1789, %v1788
      %1806 = vmatpush.bf16.msra.mxu0 %v1797
      %1807 = vmatpush.bf16.msra.mxu0 %v1796
      %1808 = vmatpush.bf16.msra.mxu0 %v1795
      %1809 = vmatpush.bf16.msra.mxu0 %v1794
      %1810 = vmatpush.bf16.msra.mxu0 %v1793
      %1811 = vmatpush.bf16.msra.mxu0 %v1792
      %1812 = vmatpush.bf16.msra.mxu0 %v1791
      %1813 = vmatpush.bf16.msra.mxu0 %v1790
      %1814 = vmatmul.bf16.gmra.mxu0 %v1726
      %v1815 = vpop.f32.mrf.mxu0
      %v1816 = vadd.f32 %v1583, %v1815
      %v1817 = vpop.f32.mrf.mxu0
      %v1818 = vadd.f32 %v1585, %v1817
      %1819 = vmatmul.bf16.gmra.mxu0 %v1727
      %v1820 = vpop.f32.mrf.mxu0
      %v1821 = vadd.f32 %v1588, %v1820
      %v1822 = vpop.f32.mrf.mxu0
      %v1823 = vadd.f32 %v1590, %v1822
      %1824 = vmatmul.bf16.gmra.mxu0 %v1728
      %v1825 = vpop.f32.mrf.mxu0
      %v1826 = vadd.f32 %v1593, %v1825
      %v1827 = vpop.f32.mrf.mxu0
      %v1828 = vadd.f32 %v1595, %v1827
      %1829 = vmatmul.bf16.gmra.mxu0 %v1729
      %v1830 = vpop.f32.mrf.mxu0
      %v1831 = vadd.f32 %v1598, %v1830
      %v1832 = vpop.f32.mrf.mxu0
      %v1833 = vadd.f32 %v1600, %v1832
      %1834 = vmatmul.bf16.gmra.mxu0 %v1730
      %v1835 = vpop.f32.mrf.mxu0
      %v1836 = vadd.f32 %v1603, %v1835
      %v1837 = vpop.f32.mrf.mxu0
      %v1838 = vadd.f32 %v1605, %v1837
      %1839 = vmatmul.bf16.gmra.mxu0 %v1731
      %v1840 = vpop.f32.mrf.mxu0
      %v1841 = vadd.f32 %v1608, %v1840
      %v1842 = vpop.f32.mrf.mxu0
      %v1843 = vadd.f32 %v1610, %v1842
      %1844 = vmatmul.bf16.gmra.mxu0 %v1732
      %v1845 = vpop.f32.mrf.mxu0
      %v1846 = vadd.f32 %v1613, %v1845
      %v1847 = vpop.f32.mrf.mxu0
      %v1848 = vadd.f32 %v1615, %v1847
      %1849 = vmatmul.bf16.gmra.mxu0 %v1733
      %v1850 = vpop.f32.mrf.mxu0
      %v1851 = vadd.f32 %v1618, %v1850
      %v1852 = vpop.f32.mrf.mxu0
      %v1853 = vadd.f32 %v1620, %v1852
      %1854 = vmatmul.bf16.gmra.mxu0 %v1734
      %v1855 = vpop.f32.mrf.mxu0
      %v1856 = vadd.f32 %v1623, %v1855
      %v1857 = vpop.f32.mrf.mxu0
      %v1858 = vadd.f32 %v1625, %v1857
      %1859 = vmatmul.bf16.gmra.mxu0 %v1735
      %v1860 = vpop.f32.mrf.mxu0
      %v1861 = vadd.f32 %v1628, %v1860
      %v1862 = vpop.f32.mrf.mxu0
      %v1863 = vadd.f32 %v1630, %v1862
      %1864 = vmatmul.bf16.gmra.mxu0 %v1736
      %v1865 = vpop.f32.mrf.mxu0
      %v1866 = vadd.f32 %v1633, %v1865
      %v1867 = vpop.f32.mrf.mxu0
      %v1868 = vadd.f32 %v1635, %v1867
      %1869 = vmatmul.bf16.gmra.mxu0 %v1737
      %v1870 = vpop.f32.mrf.mxu0
      %v1871 = vadd.f32 %v1638, %v1870
      %v1872 = vpop.f32.mrf.mxu0
      %v1873 = vadd.f32 %v1640, %v1872
      %1874 = vmatmul.bf16.gmra.mxu0 %v1738
      %v1875 = vpop.f32.mrf.mxu0
      %v1876 = vadd.f32 %v1643, %v1875
      %v1877 = vpop.f32.mrf.mxu0
      %v1878 = vadd.f32 %v1645, %v1877
      %1879 = vmatmul.bf16.gmra.mxu0 %v1739
      %v1880 = vpop.f32.mrf.mxu0
      %v1881 = vadd.f32 %v1648, %v1880
      %v1882 = vpop.f32.mrf.mxu0
      %v1883 = vadd.f32 %v1650, %v1882
      %1884 = vmatmul.bf16.gmra.mxu0 %v1740
      %v1885 = vpop.f32.mrf.mxu0
      %v1886 = vadd.f32 %v1653, %v1885
      %v1887 = vpop.f32.mrf.mxu0
      %v1888 = vadd.f32 %v1655, %v1887
      %1889 = vmatmul.bf16.gmra.mxu0 %v1741
      %v1890 = vpop.f32.mrf.mxu0
      %v1891 = vadd.f32 %v1658, %v1890
      %v1892 = vpop.f32.mrf.mxu0
      %v1893 = vadd.f32 %v1660, %v1892
      %1894 = vdwg.mxu0
      %v1895 = vld [vmem:[#allocation2] sm:$0xe]
      %v1896 = vld [vmem:[#allocation2 + $0xc] sm:$0xe]
      %v1897 = vld [vmem:[#allocation2 + $0x18] sm:$0xe]
      %v1898 = vld [vmem:[#allocation2 + $0x24] sm:$0xe]
      %v1899 = vld [vmem:[#allocation2 + $0x30] sm:$0xe]
      %v1900 = vld [vmem:[#allocation2 + $0x3c] sm:$0xe]
      %v1901 = vld [vmem:[#allocation2 + $0x48] sm:$0xe]
      %v1902 = vld [vmem:[#allocation2 + $0x54] sm:$0xe]
      %v1903 = vld [vmem:[#allocation2 + $0x60] sm:$0xe]
      %v1904 = vld [vmem:[#allocation2 + $0x6c] sm:$0xe]
      %v1905 = vld [vmem:[#allocation2 + $0x78] sm:$0xe]
      %v1906 = vld [vmem:[#allocation2 + $0x84] sm:$0xe]
      %v1907 = vld [vmem:[#allocation2 + $0x90] sm:$0xe]
      %v1908 = vld [vmem:[#allocation2 + $0x9c] sm:$0xe]
      %v1909 = vld [vmem:[#allocation2 + $0xa8] sm:$0xe]
      %v1910 = vld [vmem:[#allocation2 + $0xb4] sm:$0xe]
      %vm1943 = vcmask 1042432
      %vm1944 = vcmask 1046532
      %vm1945 = vmor %vm1943, %vm1944
      %v1946 = vrot.slane %v1895, 5
      %v1947 = vrot.slane %v1946, 4
      %v1948 = vrot.slane %v995, 5
      %v1949 = vsel %vm1945, %v1947, %v1948
      %v1950 = vrot.slane %v1948, 4
      %v1951 = vrot.slane %v1042, 5
      %v1952 = vsel %vm1945, %v1950, %v1951
      %v1953 = vrot.slane %v1896, 5
      %v1954 = vrot.slane %v1953, 4
      %v1955 = vrot.slane %v997, 5
      %v1956 = vsel %vm1945, %v1954, %v1955
      %v1957 = vrot.slane %v1955, 4
      %v1958 = vrot.slane %v1043, 5
      %v1959 = vsel %vm1945, %v1957, %v1958
      %v1960 = vrot.slane %v1897, 5
      %v1961 = vrot.slane %v1960, 4
      %v1962 = vrot.slane %v999, 5
      %v1963 = vsel %vm1945, %v1961, %v1962
      %v1964 = vrot.slane %v1962, 4
      %v1965 = vrot.slane %v1044, 5
      %v1966 = vsel %vm1945, %v1964, %v1965
      %v1967 = vrot.slane %v1898, 5
      %v1968 = vrot.slane %v1967, 4
      %v1969 = vrot.slane %v1001, 5
      %v1970 = vsel %vm1945, %v1968, %v1969
      %v1971 = vrot.slane %v1969, 4
      %v1972 = vrot.slane %v1045, 5
      %v1973 = vsel %vm1945, %v1971, %v1972
      %v1974 = vrot.slane %v1899, 5
      %v1975 = vrot.slane %v1974, 4
      %v1976 = vrot.slane %v1003, 5
      %v1977 = vsel %vm1945, %v1975, %v1976
      %v1978 = vrot.slane %v1976, 4
      %v1979 = vrot.slane %v1046, 5
      %v1980 = vsel %vm1945, %v1978, %v1979
      %v1981 = vrot.slane %v1900, 5
      %v1982 = vrot.slane %v1981, 4
      %v1983 = vrot.slane %v1005, 5
      %v1984 = vsel %vm1945, %v1982, %v1983
      %v1985 = vrot.slane %v1983, 4
      %v1986 = vrot.slane %v1047, 5
      %v1987 = vsel %vm1945, %v1985, %v1986
      %v1988 = vrot.slane %v1901, 5
      %v1989 = vrot.slane %v1988, 4
      %v1990 = vrot.slane %v1007, 5
      %v1991 = vsel %vm1945, %v1989, %v1990
      %v1992 = vrot.slane %v1990, 4
      %v1993 = vrot.slane %v1048, 5
      %v1994 = vsel %vm1945, %v1992, %v1993
      %v1995 = vrot.slane %v1902, 5
      %v1996 = vrot.slane %v1995, 4
      %v1997 = vrot.slane %v1009, 5
      %v1998 = vsel %vm1945, %v1996, %v1997
      %v1999 = vrot.slane %v1997, 4
      %v2000 = vrot.slane %v1049, 5
      %v2001 = vsel %vm1945, %v1999, %v2000
      %v2002 = vrot.slane %v1903, 5
      %v2003 = vrot.slane %v2002, 4
      %v2004 = vrot.slane %v1011, 5
      %v2005 = vsel %vm1945, %v2003, %v2004
      %v2006 = vrot.slane %v2004, 4
      %v2007 = vrot.slane %v1050, 5
      %v2008 = vsel %vm1945, %v2006, %v2007
      %v2009 = vrot.slane %v1904, 5
      %v2010 = vrot.slane %v2009, 4
      %v2011 = vrot.slane %v1013, 5
      %v2012 = vsel %vm1945, %v2010, %v2011
      %v2013 = vrot.slane %v2011, 4
      %v2014 = vrot.slane %v1051, 5
      %v2015 = vsel %vm1945, %v2013, %v2014
      %v2016 = vrot.slane %v1905, 5
      %v2017 = vrot.slane %v2016, 4
      %v2018 = vrot.slane %v1015, 5
      %v2019 = vsel %vm1945, %v2017, %v2018
      %v2020 = vrot.slane %v2018, 4
      %v2021 = vrot.slane %v1052, 5
      %v2022 = vsel %vm1945, %v2020, %v2021
      %v2023 = vrot.slane %v1906, 5
      %v2024 = vrot.slane %v2023, 4
      %v2025 = vrot.slane %v1017, 5
      %v2026 = vsel %vm1945, %v2024, %v2025
      %v2027 = vrot.slane %v2025, 4
      %v2028 = vrot.slane %v1053, 5
      %v2029 = vsel %vm1945, %v2027, %v2028
      %v2030 = vrot.slane %v1907, 5
      %v2031 = vrot.slane %v2030, 4
      %v2032 = vrot.slane %v1019, 5
      %v2033 = vsel %vm1945, %v2031, %v2032
      %v2034 = vrot.slane %v2032, 4
      %v2035 = vrot.slane %v1054, 5
      %v2036 = vsel %vm1945, %v2034, %v2035
      %v2037 = vrot.slane %v1908, 5
      %v2038 = vrot.slane %v2037, 4
      %v2039 = vrot.slane %v1021, 5
      %v2040 = vsel %vm1945, %v2038, %v2039
      %v2041 = vrot.slane %v2039, 4
      %v2042 = vrot.slane %v1055, 5
      %v2043 = vsel %vm1945, %v2041, %v2042
      %v2044 = vrot.slane %v1909, 5
      %v2045 = vrot.slane %v2044, 4
      %v2046 = vrot.slane %v1023, 5
      %v2047 = vsel %vm1945, %v2045, %v2046
      %v2048 = vrot.slane %v2046, 4
      %v2049 = vrot.slane %v1056, 5
      %v2050 = vsel %vm1945, %v2048, %v2049
      %v2051 = vrot.slane %v1910, 5
      %v2052 = vrot.slane %v2051, 4
      %v2053 = vrot.slane %v1025, 5
      %v2054 = vsel %vm1945, %v2052, %v2053
      %v2055 = vrot.slane %v2053, 4
      %v2056 = vrot.slane %v1057, 5
      %v2057 = vsel %vm1945, %v2055, %v2056
      %v2058 = vld [vmem:[%s3 + $0x80] sm:$0xf]
      %v2059 = vld [vmem:[%s3 + $0x84] sm:$0xf]
      %v2060 = vld [vmem:[%s3 + $0x88] sm:$0xf]
      %v2061 = vld [vmem:[%s3 + $0x8c] sm:$0xf]
      %v2062 = vld [vmem:[%s3 + $0x90] sm:$0xf]
      %v2063 = vld [vmem:[%s3 + $0x94] sm:$0xf]
      %v2064 = vld [vmem:[%s3 + $0x98] sm:$0xf]
      %v2065 = vld [vmem:[%s3 + $0x9c] sm:$0xf]
      %v2066 = vld [vmem:[%s3 + $0xa0] sm:$0xf]
      %v2067 = vld [vmem:[%s3 + $0xa4] sm:$0xf]
      %v2068 = vld [vmem:[%s3 + $0xa8] sm:$0xf]
      %v2069 = vld [vmem:[%s3 + $0xac] sm:$0xf]
      %v2070 = vld [vmem:[%s3 + $0xb0] sm:$0xf]
      %v2071 = vld [vmem:[%s3 + $0xb4] sm:$0xf]
      %v2072 = vld [vmem:[%s3 + $0xb8] sm:$0xf]
      %v2073 = vld [vmem:[%s3 + $0xbc] sm:$0xf]
      %v2074 = vunpack.c.l.b16 %v1949
      %v2075 = vunpack.c.l.b16 %v1952
      %v2076 = vunpack.c.l.b16 %v1956
      %v2077 = vunpack.c.l.b16 %v1959
      %v2078 = vunpack.c.l.b16 %v1963
      %v2079 = vunpack.c.l.b16 %v1966
      %v2080 = vunpack.c.l.b16 %v1970
      %v2081 = vunpack.c.l.b16 %v1973
      %v2082 = vunpack.c.l.b16 %v1977
      %v2083 = vunpack.c.l.b16 %v1980
      %v2084 = vunpack.c.l.b16 %v1984
      %v2085 = vunpack.c.l.b16 %v1987
      %v2086 = vunpack.c.l.b16 %v1991
      %v2087 = vunpack.c.l.b16 %v1994
      %v2088 = vunpack.c.l.b16 %v1998
      %v2089 = vunpack.c.l.b16 %v2001
      %v2090 = vunpack.c.l.b16 %v2005
      %v2091 = vunpack.c.l.b16 %v2008
      %v2092 = vunpack.c.l.b16 %v2012
      %v2093 = vunpack.c.l.b16 %v2015
      %v2094 = vunpack.c.l.b16 %v2019
      %v2095 = vunpack.c.l.b16 %v2022
      %v2096 = vunpack.c.l.b16 %v2026
      %v2097 = vunpack.c.l.b16 %v2029
      %v2098 = vunpack.c.l.b16 %v2033
      %v2099 = vunpack.c.l.b16 %v2036
      %v2100 = vunpack.c.l.b16 %v2040
      %v2101 = vunpack.c.l.b16 %v2043
      %v2102 = vunpack.c.l.b16 %v2047
      %v2103 = vunpack.c.l.b16 %v2050
      %v2104 = vunpack.c.l.b16 %v2054
      %v2105 = vunpack.c.l.b16 %v2057
      %v2106 = vpack.c.b16 %v2075, %v2074
      %v2107 = vpack.c.b16 %v2077, %v2076
      %v2108 = vpack.c.b16 %v2079, %v2078
      %v2109 = vpack.c.b16 %v2081, %v2080
      %v2110 = vpack.c.b16 %v2083, %v2082
      %v2111 = vpack.c.b16 %v2085, %v2084
      %v2112 = vpack.c.b16 %v2087, %v2086
      %v2113 = vpack.c.b16 %v2089, %v2088
      %v2114 = vpack.c.b16 %v2091, %v2090
      %v2115 = vpack.c.b16 %v2093, %v2092
      %v2116 = vpack.c.b16 %v2095, %v2094
      %v2117 = vpack.c.b16 %v2097, %v2096
      %v2118 = vpack.c.b16 %v2099, %v2098
      %v2119 = vpack.c.b16 %v2101, %v2100
      %v2120 = vpack.c.b16 %v2103, %v2102
      %v2121 = vpack.c.b16 %v2105, %v2104
      %v2154 = vunpack.c.l.b16 %v2058
      %v2155 = vunpack.c.l.b16 %v2059
      %v2156 = vunpack.c.l.b16 %v2060
      %v2157 = vunpack.c.l.b16 %v2061
      %v2158 = vunpack.c.l.b16 %v2062
      %v2159 = vunpack.c.l.b16 %v2063
      %v2160 = vunpack.c.l.b16 %v2064
      %v2161 = vunpack.c.l.b16 %v2065
      %v2162 = vunpack.c.l.b16 %v2066
      %v2163 = vunpack.c.l.b16 %v2067
      %v2164 = vunpack.c.l.b16 %v2068
      %v2165 = vunpack.c.l.b16 %v2069
      %v2166 = vunpack.c.l.b16 %v2070
      %v2167 = vunpack.c.l.b16 %v2071
      %v2168 = vunpack.c.l.b16 %v2072
      %v2169 = vunpack.c.l.b16 %v2073
      %v2170 = vpack.c.b16 %v2155, %v2154
      %v2171 = vpack.c.b16 %v2157, %v2156
      %v2172 = vpack.c.b16 %v2159, %v2158
      %v2173 = vpack.c.b16 %v2161, %v2160
      %v2174 = vpack.c.b16 %v2163, %v2162
      %v2175 = vpack.c.b16 %v2165, %v2164
      %v2176 = vpack.c.b16 %v2167, %v2166
      %v2177 = vpack.c.b16 %v2169, %v2168
      %2186 = vmatpush.bf16.msra.mxu0 %v2177
      %2187 = vmatpush.bf16.msra.mxu0 %v2176
      %2188 = vmatpush.bf16.msra.mxu0 %v2175
      %2189 = vmatpush.bf16.msra.mxu0 %v2174
      %2190 = vmatpush.bf16.msra.mxu0 %v2173
      %2191 = vmatpush.bf16.msra.mxu0 %v2172
      %2192 = vmatpush.bf16.msra.mxu0 %v2171
      %2193 = vmatpush.bf16.msra.mxu0 %v2170
      %2194 = vmatmul.bf16.gmra.mxu0 %v2106
      %v2195 = vpop.f32.mrf.mxu0
      %v2196 = vadd.f32 0.0, %v2195
      %v2197 = vpop.f32.mrf.mxu0
      %v2198 = vadd.f32 0.0, %v2197
      %2199 = vmatmul.bf16.gmra.mxu0 %v2107
      %v2200 = vpop.f32.mrf.mxu0
      %v2201 = vadd.f32 0.0, %v2200
      %v2202 = vpop.f32.mrf.mxu0
      %v2203 = vadd.f32 0.0, %v2202
      %2204 = vmatmul.bf16.gmra.mxu0 %v2108
      %v2205 = vpop.f32.mrf.mxu0
      %v2206 = vadd.f32 0.0, %v2205
      %v2207 = vpop.f32.mrf.mxu0
      %v2208 = vadd.f32 0.0, %v2207
      %2209 = vmatmul.bf16.gmra.mxu0 %v2109
      %v2210 = vpop.f32.mrf.mxu0
      %v2211 = vadd.f32 0.0, %v2210
      %v2212 = vpop.f32.mrf.mxu0
      %v2213 = vadd.f32 0.0, %v2212
      %2214 = vmatmul.bf16.gmra.mxu0 %v2110
      %v2215 = vpop.f32.mrf.mxu0
      %v2216 = vadd.f32 0.0, %v2215
      %v2217 = vpop.f32.mrf.mxu0
      %v2218 = vadd.f32 0.0, %v2217
      %2219 = vmatmul.bf16.gmra.mxu0 %v2111
      %v2220 = vpop.f32.mrf.mxu0
      %v2221 = vadd.f32 0.0, %v2220
      %v2222 = vpop.f32.mrf.mxu0
      %v2223 = vadd.f32 0.0, %v2222
      %2224 = vmatmul.bf16.gmra.mxu0 %v2112
      %v2225 = vpop.f32.mrf.mxu0
      %v2226 = vadd.f32 0.0, %v2225
      %v2227 = vpop.f32.mrf.mxu0
      %v2228 = vadd.f32 0.0, %v2227
      %2229 = vmatmul.bf16.gmra.mxu0 %v2113
      %v2230 = vpop.f32.mrf.mxu0
      %v2231 = vadd.f32 0.0, %v2230
      %v2232 = vpop.f32.mrf.mxu0
      %v2233 = vadd.f32 0.0, %v2232
      %2234 = vmatmul.bf16.gmra.mxu0 %v2114
      %v2235 = vpop.f32.mrf.mxu0
      %v2236 = vadd.f32 0.0, %v2235
      %v2237 = vpop.f32.mrf.mxu0
      %v2238 = vadd.f32 0.0, %v2237
      %2239 = vmatmul.bf16.gmra.mxu0 %v2115
      %v2240 = vpop.f32.mrf.mxu0
      %v2241 = vadd.f32 0.0, %v2240
      %v2242 = vpop.f32.mrf.mxu0
      %v2243 = vadd.f32 0.0, %v2242
      %2244 = vmatmul.bf16.gmra.mxu0 %v2116
      %v2245 = vpop.f32.mrf.mxu0
      %v2246 = vadd.f32 0.0, %v2245
      %v2247 = vpop.f32.mrf.mxu0
      %v2248 = vadd.f32 0.0, %v2247
      %2249 = vmatmul.bf16.gmra.mxu0 %v2117
      %v2250 = vpop.f32.mrf.mxu0
      %v2251 = vadd.f32 0.0, %v2250
      %v2252 = vpop.f32.mrf.mxu0
      %v2253 = vadd.f32 0.0, %v2252
      %2254 = vmatmul.bf16.gmra.mxu0 %v2118
      %v2255 = vpop.f32.mrf.mxu0
      %v2256 = vadd.f32 0.0, %v2255
      %v2257 = vpop.f32.mrf.mxu0
      %v2258 = vadd.f32 0.0, %v2257
      %2259 = vmatmul.bf16.gmra.mxu0 %v2119
      %v2260 = vpop.f32.mrf.mxu0
      %v2261 = vadd.f32 0.0, %v2260
      %v2262 = vpop.f32.mrf.mxu0
      %v2263 = vadd.f32 0.0, %v2262
      %2264 = vmatmul.bf16.gmra.mxu0 %v2120
      %v2265 = vpop.f32.mrf.mxu0
      %v2266 = vadd.f32 0.0, %v2265
      %v2267 = vpop.f32.mrf.mxu0
      %v2268 = vadd.f32 0.0, %v2267
      %2269 = vmatmul.bf16.gmra.mxu0 %v2121
      %v2270 = vpop.f32.mrf.mxu0
      %v2271 = vadd.f32 0.0, %v2270
      %v2272 = vpop.f32.mrf.mxu0
      %v2273 = vadd.f32 0.0, %v2272
      %2274 = vdwg.mxu0
      %v2275 = vadd.f32 %v1816, %v2196
      %v2276 = vadd.f32 %v1818, %v2198
      %v2277 = vadd.f32 %v1821, %v2201
      %v2278 = vadd.f32 %v1823, %v2203
      %v2279 = vadd.f32 %v1826, %v2206
      %v2280 = vadd.f32 %v1828, %v2208
      %v2281 = vadd.f32 %v1831, %v2211
      %v2282 = vadd.f32 %v1833, %v2213
      %v2283 = vadd.f32 %v1836, %v2216
      %v2284 = vadd.f32 %v1838, %v2218
      %v2285 = vadd.f32 %v1841, %v2221
      %v2286 = vadd.f32 %v1843, %v2223
      %v2287 = vadd.f32 %v1846, %v2226
      %v2288 = vadd.f32 %v1848, %v2228
      %v2289 = vadd.f32 %v1851, %v2231
      %v2290 = vadd.f32 %v1853, %v2233
      %v2291 = vadd.f32 %v1856, %v2236
      %v2292 = vadd.f32 %v1858, %v2238
      %v2293 = vadd.f32 %v1861, %v2241
      %v2294 = vadd.f32 %v1863, %v2243
      %v2295 = vadd.f32 %v1866, %v2246
      %v2296 = vadd.f32 %v1868, %v2248
      %v2297 = vadd.f32 %v1871, %v2251
      %v2298 = vadd.f32 %v1873, %v2253
      %v2299 = vadd.f32 %v1876, %v2256
      %v2300 = vadd.f32 %v1878, %v2258
      %v2301 = vadd.f32 %v1881, %v2261
      %v2302 = vadd.f32 %v1883, %v2263
      %v2303 = vadd.f32 %v1886, %v2266
      %v2304 = vadd.f32 %v1888, %v2268
      %v2305 = vadd.f32 %v1891, %v2271
      %v2306 = vadd.f32 %v1893, %v2273
      %v2307 = vld [vmem:[%s879] sm:$0xf]
      %v2308 = vld [vmem:[%s879 + $0x4] sm:$0xf]
      %v2309 = vld [vmem:[%s879 + $0xc] sm:$0xf]
      %v2310 = vld [vmem:[%s879 + $0x10] sm:$0xf]
      %v2311 = vld [vmem:[%s879 + $0x18] sm:$0xf]
      %v2312 = vld [vmem:[%s879 + $0x1c] sm:$0xf]
      %v2313 = vld [vmem:[%s879 + $0x24] sm:$0xf]
      %v2314 = vld [vmem:[%s879 + $0x28] sm:$0xf]
      %v2315 = vld [vmem:[%s879 + $0x30] sm:$0xf]
      %v2316 = vld [vmem:[%s879 + $0x34] sm:$0xf]
      %v2317 = vld [vmem:[%s879 + $0x3c] sm:$0xf]
      %v2318 = vld [vmem:[%s879 + $0x40] sm:$0xf]
      %v2319 = vld [vmem:[%s879 + $0x48] sm:$0xf]
      %v2320 = vld [vmem:[%s879 + $0x4c] sm:$0xf]
      %v2321 = vld [vmem:[%s879 + $0x54] sm:$0xf]
      %v2322 = vld [vmem:[%s879 + $0x58] sm:$0xf]
      %v2323 = vld [vmem:[%s879 + $0x60] sm:$0xf]
      %v2324 = vld [vmem:[%s879 + $0x64] sm:$0xf]
      %v2325 = vld [vmem:[%s879 + $0x6c] sm:$0xf]
      %v2326 = vld [vmem:[%s879 + $0x70] sm:$0xf]
      %v2327 = vld [vmem:[%s879 + $0x78] sm:$0xf]
      %v2328 = vld [vmem:[%s879 + $0x7c] sm:$0xf]
      %v2329 = vld [vmem:[%s879 + $0x84] sm:$0xf]
      %v2330 = vld [vmem:[%s879 + $0x88] sm:$0xf]
      %v2331 = vld [vmem:[%s879 + $0x90] sm:$0xf]
      %v2332 = vld [vmem:[%s879 + $0x94] sm:$0xf]
      %v2333 = vld [vmem:[%s879 + $0x9c] sm:$0xf]
      %v2334 = vld [vmem:[%s879 + $0xa0] sm:$0xf]
      %v2335 = vld [vmem:[%s879 + $0xa8] sm:$0xf]
      %v2336 = vld [vmem:[%s879 + $0xac] sm:$0xf]
      %v2337 = vld [vmem:[%s879 + $0xb4] sm:$0xf]
      %v2338 = vld [vmem:[%s879 + $0xb8] sm:$0xf]
      %v2339 = vld [vmem:[%s3 + $0xc0] sm:$0xf]
      %v2340 = vld [vmem:[%s3 + $0xc4] sm:$0xf]
      %v2341 = vld [vmem:[%s3 + $0xc8] sm:$0xf]
      %v2342 = vld [vmem:[%s3 + $0xcc] sm:$0xf]
      %v2343 = vld [vmem:[%s3 + $0xd0] sm:$0xf]
      %v2344 = vld [vmem:[%s3 + $0xd4] sm:$0xf]
      %v2345 = vld [vmem:[%s3 + $0xd8] sm:$0xf]
      %v2346 = vld [vmem:[%s3 + $0xdc] sm:$0xf]
      %v2347 = vld [vmem:[%s3 + $0xe0] sm:$0xf]
      %v2348 = vld [vmem:[%s3 + $0xe4] sm:$0xf]
      %v2349 = vld [vmem:[%s3 + $0xe8] sm:$0xf]
      %v2350 = vld [vmem:[%s3 + $0xec] sm:$0xf]
      %v2351 = vld [vmem:[%s3 + $0xf0] sm:$0xf]
      %v2352 = vld [vmem:[%s3 + $0xf4] sm:$0xf]
      %v2353 = vld [vmem:[%s3 + $0xf8] sm:$0xf]
      %v2354 = vld [vmem:[%s3 + $0xfc] sm:$0xf]
      %v2387 = vunpack.c.l.b16 %v2307
      %v2388 = vunpack.c.l.b16 %v2308
      %v2389 = vunpack.c.l.b16 %v2309
      %v2390 = vunpack.c.l.b16 %v2310
      %v2391 = vunpack.c.l.b16 %v2311
      %v2392 = vunpack.c.l.b16 %v2312
      %v2393 = vunpack.c.l.b16 %v2313
      %v2394 = vunpack.c.l.b16 %v2314
      %v2395 = vunpack.c.l.b16 %v2315
      %v2396 = vunpack.c.l.b16 %v2316
      %v2397 = vunpack.c.l.b16 %v2317
      %v2398 = vunpack.c.l.b16 %v2318
      %v2399 = vunpack.c.l.b16 %v2319
      %v2400 = vunpack.c.l.b16 %v2320
      %v2401 = vunpack.c.l.b16 %v2321
      %v2402 = vunpack.c.l.b16 %v2322
      %v2403 = vunpack.c.l.b16 %v2323
      %v2404 = vunpack.c.l.b16 %v2324
      %v2405 = vunpack.c.l.b16 %v2325
      %v2406 = vunpack.c.l.b16 %v2326
      %v2407 = vunpack.c.l.b16 %v2327
      %v2408 = vunpack.c.l.b16 %v2328
      %v2409 = vunpack.c.l.b16 %v2329
      %v2410 = vunpack.c.l.b16 %v2330
      %v2411 = vunpack.c.l.b16 %v2331
      %v2412 = vunpack.c.l.b16 %v2332
      %v2413 = vunpack.c.l.b16 %v2333
      %v2414 = vunpack.c.l.b16 %v2334
      %v2415 = vunpack.c.l.b16 %v2335
      %v2416 = vunpack.c.l.b16 %v2336
      %v2417 = vunpack.c.l.b16 %v2337
      %v2418 = vunpack.c.l.b16 %v2338
      %v2419 = vpack.c.b16 %v2388, %v2387
      %v2420 = vpack.c.b16 %v2390, %v2389
      %v2421 = vpack.c.b16 %v2392, %v2391
      %v2422 = vpack.c.b16 %v2394, %v2393
      %v2423 = vpack.c.b16 %v2396, %v2395
      %v2424 = vpack.c.b16 %v2398, %v2397
      %v2425 = vpack.c.b16 %v2400, %v2399
      %v2426 = vpack.c.b16 %v2402, %v2401
      %v2427 = vpack.c.b16 %v2404, %v2403
      %v2428 = vpack.c.b16 %v2406, %v2405
      %v2429 = vpack.c.b16 %v2408, %v2407
      %v2430 = vpack.c.b16 %v2410, %v2409
      %v2431 = vpack.c.b16 %v2412, %v2411
      %v2432 = vpack.c.b16 %v2414, %v2413
      %v2433 = vpack.c.b16 %v2416, %v2415
      %v2434 = vpack.c.b16 %v2418, %v2417
      %v2467 = vunpack.c.l.b16 %v2339
      %v2468 = vunpack.c.l.b16 %v2340
      %v2469 = vunpack.c.l.b16 %v2341
      %v2470 = vunpack.c.l.b16 %v2342
      %v2471 = vunpack.c.l.b16 %v2343
      %v2472 = vunpack.c.l.b16 %v2344
      %v2473 = vunpack.c.l.b16 %v2345
      %v2474 = vunpack.c.l.b16 %v2346
      %v2475 = vunpack.c.l.b16 %v2347
      %v2476 = vunpack.c.l.b16 %v2348
      %v2477 = vunpack.c.l.b16 %v2349
      %v2478 = vunpack.c.l.b16 %v2350
      %v2479 = vunpack.c.l.b16 %v2351
      %v2480 = vunpack.c.l.b16 %v2352
      %v2481 = vunpack.c.l.b16 %v2353
      %v2482 = vunpack.c.l.b16 %v2354
      %v2483 = vpack.c.b16 %v2468, %v2467
      %v2484 = vpack.c.b16 %v2470, %v2469
      %v2485 = vpack.c.b16 %v2472, %v2471
      %v2486 = vpack.c.b16 %v2474, %v2473
      %v2487 = vpack.c.b16 %v2476, %v2475
      %v2488 = vpack.c.b16 %v2478, %v2477
      %v2489 = vpack.c.b16 %v2480, %v2479
      %v2490 = vpack.c.b16 %v2482, %v2481
      %2499 = vmatpush.bf16.msra.mxu0 %v2490
      %2500 = vmatpush.bf16.msra.mxu0 %v2489
      %2501 = vmatpush.bf16.msra.mxu0 %v2488
      %2502 = vmatpush.bf16.msra.mxu0 %v2487
      %2503 = vmatpush.bf16.msra.mxu0 %v2486
      %2504 = vmatpush.bf16.msra.mxu0 %v2485
      %2505 = vmatpush.bf16.msra.mxu0 %v2484
      %2506 = vmatpush.bf16.msra.mxu0 %v2483
      %2507 = vmatmul.bf16.gmra.mxu0 %v2419
      %v2508 = vpop.f32.mrf.mxu0
      %v2509 = vadd.f32 0.0, %v2508
      %v2510 = vpop.f32.mrf.mxu0
      %v2511 = vadd.f32 0.0, %v2510
      %2512 = vmatmul.bf16.gmra.mxu0 %v2420
      %v2513 = vpop.f32.mrf.mxu0
      %v2514 = vadd.f32 0.0, %v2513
      %v2515 = vpop.f32.mrf.mxu0
      %v2516 = vadd.f32 0.0, %v2515
      %2517 = vmatmul.bf16.gmra.mxu0 %v2421
      %v2518 = vpop.f32.mrf.mxu0
      %v2519 = vadd.f32 0.0, %v2518
      %v2520 = vpop.f32.mrf.mxu0
      %v2521 = vadd.f32 0.0, %v2520
      %2522 = vmatmul.bf16.gmra.mxu0 %v2422
      %v2523 = vpop.f32.mrf.mxu0
      %v2524 = vadd.f32 0.0, %v2523
      %v2525 = vpop.f32.mrf.mxu0
      %v2526 = vadd.f32 0.0, %v2525
      %2527 = vmatmul.bf16.gmra.mxu0 %v2423
      %v2528 = vpop.f32.mrf.mxu0
      %v2529 = vadd.f32 0.0, %v2528
      %v2530 = vpop.f32.mrf.mxu0
      %v2531 = vadd.f32 0.0, %v2530
      %2532 = vmatmul.bf16.gmra.mxu0 %v2424
      %v2533 = vpop.f32.mrf.mxu0
      %v2534 = vadd.f32 0.0, %v2533
      %v2535 = vpop.f32.mrf.mxu0
      %v2536 = vadd.f32 0.0, %v2535
      %2537 = vmatmul.bf16.gmra.mxu0 %v2425
      %v2538 = vpop.f32.mrf.mxu0
      %v2539 = vadd.f32 0.0, %v2538
      %v2540 = vpop.f32.mrf.mxu0
      %v2541 = vadd.f32 0.0, %v2540
      %2542 = vmatmul.bf16.gmra.mxu0 %v2426
      %v2543 = vpop.f32.mrf.mxu0
      %v2544 = vadd.f32 0.0, %v2543
      %v2545 = vpop.f32.mrf.mxu0
      %v2546 = vadd.f32 0.0, %v2545
      %2547 = vmatmul.bf16.gmra.mxu0 %v2427
      %v2548 = vpop.f32.mrf.mxu0
      %v2549 = vadd.f32 0.0, %v2548
      %v2550 = vpop.f32.mrf.mxu0
      %v2551 = vadd.f32 0.0, %v2550
      %2552 = vmatmul.bf16.gmra.mxu0 %v2428
      %v2553 = vpop.f32.mrf.mxu0
      %v2554 = vadd.f32 0.0, %v2553
      %v2555 = vpop.f32.mrf.mxu0
      %v2556 = vadd.f32 0.0, %v2555
      %2557 = vmatmul.bf16.gmra.mxu0 %v2429
      %v2558 = vpop.f32.mrf.mxu0
      %v2559 = vadd.f32 0.0, %v2558
      %v2560 = vpop.f32.mrf.mxu0
      %v2561 = vadd.f32 0.0, %v2560
      %2562 = vmatmul.bf16.gmra.mxu0 %v2430
      %v2563 = vpop.f32.mrf.mxu0
      %v2564 = vadd.f32 0.0, %v2563
      %v2565 = vpop.f32.mrf.mxu0
      %v2566 = vadd.f32 0.0, %v2565
      %2567 = vmatmul.bf16.gmra.mxu0 %v2431
      %v2568 = vpop.f32.mrf.mxu0
      %v2569 = vadd.f32 0.0, %v2568
      %v2570 = vpop.f32.mrf.mxu0
      %v2571 = vadd.f32 0.0, %v2570
      %2572 = vmatmul.bf16.gmra.mxu0 %v2432
      %v2573 = vpop.f32.mrf.mxu0
      %v2574 = vadd.f32 0.0, %v2573
      %v2575 = vpop.f32.mrf.mxu0
      %v2576 = vadd.f32 0.0, %v2575
      %2577 = vmatmul.bf16.gmra.mxu0 %v2433
      %v2578 = vpop.f32.mrf.mxu0
      %v2579 = vadd.f32 0.0, %v2578
      %v2580 = vpop.f32.mrf.mxu0
      %v2581 = vadd.f32 0.0, %v2580
      %2582 = vmatmul.bf16.gmra.mxu0 %v2434
      %v2583 = vpop.f32.mrf.mxu0
      %v2584 = vadd.f32 0.0, %v2583
      %v2585 = vpop.f32.mrf.mxu0
      %v2586 = vadd.f32 0.0, %v2585
      %2587 = vdwg.mxu0
      %v2588 = vadd.f32 %v2275, %v2509
      %v2589 = vadd.f32 %v2276, %v2511
      %v2590 = vadd.f32 %v2277, %v2514
      %v2591 = vadd.f32 %v2278, %v2516
      %v2592 = vadd.f32 %v2279, %v2519
      %v2593 = vadd.f32 %v2280, %v2521
      %v2594 = vadd.f32 %v2281, %v2524
      %v2595 = vadd.f32 %v2282, %v2526
      %v2596 = vadd.f32 %v2283, %v2529
      %v2597 = vadd.f32 %v2284, %v2531
      %v2598 = vadd.f32 %v2285, %v2534
      %v2599 = vadd.f32 %v2286, %v2536
      %v2600 = vadd.f32 %v2287, %v2539
      %v2601 = vadd.f32 %v2288, %v2541
      %v2602 = vadd.f32 %v2289, %v2544
      %v2603 = vadd.f32 %v2290, %v2546
      %v2604 = vadd.f32 %v2291, %v2549
      %v2605 = vadd.f32 %v2292, %v2551
      %v2606 = vadd.f32 %v2293, %v2554
      %v2607 = vadd.f32 %v2294, %v2556
      %v2608 = vadd.f32 %v2295, %v2559
      %v2609 = vadd.f32 %v2296, %v2561
      %v2610 = vadd.f32 %v2297, %v2564
      %v2611 = vadd.f32 %v2298, %v2566
      %v2612 = vadd.f32 %v2299, %v2569
      %v2613 = vadd.f32 %v2300, %v2571
      %v2614 = vadd.f32 %v2301, %v2574
      %v2615 = vadd.f32 %v2302, %v2576
      %v2616 = vadd.f32 %v2303, %v2579
      %v2617 = vadd.f32 %v2304, %v2581
      %v2618 = vadd.f32 %v2305, %v2584
      %v2619 = vadd.f32 %v2306, %v2586
      %v2620 = vld [vmem:[%s879] sm:$0xf]
      %v2621 = vld [vmem:[%s879 + $0x4] sm:$0xf]
      %v2622 = vld [vmem:[%s879 + $0x8] sm:$0x1]
      %v2623 = vld [vmem:[%s879 + $0xc] sm:$0xf]
      %v2624 = vld [vmem:[%s879 + $0x10] sm:$0xf]
      %v2625 = vld [vmem:[%s879 + $0x14] sm:$0x1]
      %v2626 = vld [vmem:[%s879 + $0x18] sm:$0xf]
      %v2627 = vld [vmem:[%s879 + $0x1c] sm:$0xf]
      %v2628 = vld [vmem:[%s879 + $0x20] sm:$0x1]
      %v2629 = vld [vmem:[%s879 + $0x24] sm:$0xf]
      %v2630 = vld [vmem:[%s879 + $0x28] sm:$0xf]
      %v2631 = vld [vmem:[%s879 + $0x2c] sm:$0x1]
      %v2632 = vld [vmem:[%s879 + $0x30] sm:$0xf]
      %v2633 = vld [vmem:[%s879 + $0x34] sm:$0xf]
      %v2634 = vld [vmem:[%s879 + $0x38] sm:$0x1]
      %v2635 = vld [vmem:[%s879 + $0x3c] sm:$0xf]
      %v2636 = vld [vmem:[%s879 + $0x40] sm:$0xf]
      %v2637 = vld [vmem:[%s879 + $0x44] sm:$0x1]
      %v2638 = vld [vmem:[%s879 + $0x48] sm:$0xf]
      %v2639 = vld [vmem:[%s879 + $0x4c] sm:$0xf]
      %v2640 = vld [vmem:[%s879 + $0x50] sm:$0x1]
      %v2641 = vld [vmem:[%s879 + $0x54] sm:$0xf]
      %v2642 = vld [vmem:[%s879 + $0x58] sm:$0xf]
      %v2643 = vld [vmem:[%s879 + $0x5c] sm:$0x1]
      %v2644 = vld [vmem:[%s879 + $0x60] sm:$0xf]
      %v2645 = vld [vmem:[%s879 + $0x64] sm:$0xf]
      %v2646 = vld [vmem:[%s879 + $0x68] sm:$0x1]
      %v2647 = vld [vmem:[%s879 + $0x6c] sm:$0xf]
      %v2648 = vld [vmem:[%s879 + $0x70] sm:$0xf]
      %v2649 = vld [vmem:[%s879 + $0x74] sm:$0x1]
      %v2650 = vld [vmem:[%s879 + $0x78] sm:$0xf]
      %v2651 = vld [vmem:[%s879 + $0x7c] sm:$0xf]
      %v2652 = vld [vmem:[%s879 + $0x80] sm:$0x1]
      %v2653 = vld [vmem:[%s879 + $0x84] sm:$0xf]
      %v2654 = vld [vmem:[%s879 + $0x88] sm:$0xf]
      %v2655 = vld [vmem:[%s879 + $0x8c] sm:$0x1]
      %v2656 = vld [vmem:[%s879 + $0x90] sm:$0xf]
      %v2657 = vld [vmem:[%s879 + $0x94] sm:$0xf]
      %v2658 = vld [vmem:[%s879 + $0x98] sm:$0x1]
      %v2659 = vld [vmem:[%s879 + $0x9c] sm:$0xf]
      %v2660 = vld [vmem:[%s879 + $0xa0] sm:$0xf]
      %v2661 = vld [vmem:[%s879 + $0xa4] sm:$0x1]
      %v2662 = vld [vmem:[%s879 + $0xa8] sm:$0xf]
      %v2663 = vld [vmem:[%s879 + $0xac] sm:$0xf]
      %v2664 = vld [vmem:[%s879 + $0xb0] sm:$0x1]
      %v2665 = vld [vmem:[%s879 + $0xb4] sm:$0xf]
      %v2666 = vld [vmem:[%s879 + $0xb8] sm:$0xf]
      %v2667 = vld [vmem:[%s879 + $0xbc] sm:$0x1]
      %v2669 = vshrl.u32 %v2620, 16
      %v2671 = vrot.slane %v2669, 4
      %v2672 = vshll.u32 %v2620, 16
      %v2674 = vrot.slane %v2672, 5
      %v2675 = vor.u32 %v2671, %v2674
      %v2676 = vrot.slane %v2675, 4
      %v2678 = vshll.u32 %v2621, 16
      %v2680 = vrot.slane %v2678, 5
      %v2681 = vsel %vm1060, %v2676, %v2680
      %v2682 = vshrl.u32 %v2621, 16
      %v2684 = vrot.slane %v2682, 4
      %v2685 = vor.u32 %v2684, %v2680
      %v2686 = vrot.slane %v2685, 4
      %v2688 = vshll.u32 %v2622, 16
      %v2690 = vrot.slane %v2688, 5
      %v2691 = vsel %vm1060, %v2686, %v2690
      %v2693 = vshrl.u32 %v2623, 16
      %v2695 = vrot.slane %v2693, 4
      %v2696 = vshll.u32 %v2623, 16
      %v2698 = vrot.slane %v2696, 5
      %v2699 = vor.u32 %v2695, %v2698
      %v2700 = vrot.slane %v2699, 4
      %v2702 = vshll.u32 %v2624, 16
      %v2704 = vrot.slane %v2702, 5
      %v2705 = vsel %vm1060, %v2700, %v2704
      %v2706 = vshrl.u32 %v2624, 16
      %v2708 = vrot.slane %v2706, 4
      %v2709 = vor.u32 %v2708, %v2704
      %v2710 = vrot.slane %v2709, 4
      %v2712 = vshll.u32 %v2625, 16
      %v2714 = vrot.slane %v2712, 5
      %v2715 = vsel %vm1060, %v2710, %v2714
      %v2717 = vshrl.u32 %v2626, 16
      %v2719 = vrot.slane %v2717, 4
      %v2720 = vshll.u32 %v2626, 16
      %v2722 = vrot.slane %v2720, 5
      %v2723 = vor.u32 %v2719, %v2722
      %v2724 = vrot.slane %v2723, 4
      %v2726 = vshll.u32 %v2627, 16
      %v2728 = vrot.slane %v2726, 5
      %v2729 = vsel %vm1060, %v2724, %v2728
      %v2730 = vshrl.u32 %v2627, 16
      %v2732 = vrot.slane %v2730, 4
      %v2733 = vor.u32 %v2732, %v2728
      %v2734 = vrot.slane %v2733, 4
      %v2736 = vshll.u32 %v2628, 16
      %v2738 = vrot.slane %v2736, 5
      %v2739 = vsel %vm1060, %v2734, %v2738
      %v2741 = vshrl.u32 %v2629, 16
      %v2743 = vrot.slane %v2741, 4
      %v2744 = vshll.u32 %v2629, 16
      %v2746 = vrot.slane %v2744, 5
      %v2747 = vor.u32 %v2743, %v2746
      %v2748 = vrot.slane %v2747, 4
      %v2750 = vshll.u32 %v2630, 16
      %v2752 = vrot.slane %v2750, 5
      %v2753 = vsel %vm1060, %v2748, %v2752
      %v2754 = vshrl.u32 %v2630, 16
      %v2756 = vrot.slane %v2754, 4
      %v2757 = vor.u32 %v2756, %v2752
      %v2758 = vrot.slane %v2757, 4
      %v2760 = vshll.u32 %v2631, 16
      %v2762 = vrot.slane %v2760, 5
      %v2763 = vsel %vm1060, %v2758, %v2762
      %v2765 = vshrl.u32 %v2632, 16
      %v2767 = vrot.slane %v2765, 4
      %v2768 = vshll.u32 %v2632, 16
      %v2770 = vrot.slane %v2768, 5
      %v2771 = vor.u32 %v2767, %v2770
      %v2772 = vrot.slane %v2771, 4
      %v2774 = vshll.u32 %v2633, 16
      %v2776 = vrot.slane %v2774, 5
      %v2777 = vsel %vm1060, %v2772, %v2776
      %v2778 = vshrl.u32 %v2633, 16
      %v2780 = vrot.slane %v2778, 4
      %v2781 = vor.u32 %v2780, %v2776
      %v2782 = vrot.slane %v2781, 4
      %v2784 = vshll.u32 %v2634, 16
      %v2786 = vrot.slane %v2784, 5
      %v2787 = vsel %vm1060, %v2782, %v2786
      %v2789 = vshrl.u32 %v2635, 16
      %v2791 = vrot.slane %v2789, 4
      %v2792 = vshll.u32 %v2635, 16
      %v2794 = vrot.slane %v2792, 5
      %v2795 = vor.u32 %v2791, %v2794
      %v2796 = vrot.slane %v2795, 4
      %v2798 = vshll.u32 %v2636, 16
      %v2800 = vrot.slane %v2798, 5
      %v2801 = vsel %vm1060, %v2796, %v2800
      %v2802 = vshrl.u32 %v2636, 16
      %v2804 = vrot.slane %v2802, 4
      %v2805 = vor.u32 %v2804, %v2800
      %v2806 = vrot.slane %v2805, 4
      %v2808 = vshll.u32 %v2637, 16
      %v2810 = vrot.slane %v2808, 5
      %v2811 = vsel %vm1060, %v2806, %v2810
      %v2813 = vshrl.u32 %v2638, 16
      %v2815 = vrot.slane %v2813, 4
      %v2816 = vshll.u32 %v2638, 16
      %v2818 = vrot.slane %v2816, 5
      %v2819 = vor.u32 %v2815, %v2818
      %v2820 = vrot.slane %v2819, 4
      %v2822 = vshll.u32 %v2639, 16
      %v2824 = vrot.slane %v2822, 5
      %v2825 = vsel %vm1060, %v2820, %v2824
      %v2826 = vshrl.u32 %v2639, 16
      %v2828 = vrot.slane %v2826, 4
      %v2829 = vor.u32 %v2828, %v2824
      %v2830 = vrot.slane %v2829, 4
      %v2832 = vshll.u32 %v2640, 16
      %v2834 = vrot.slane %v2832, 5
      %v2835 = vsel %vm1060, %v2830, %v2834
      %v2837 = vshrl.u32 %v2641, 16
      %v2839 = vrot.slane %v2837, 4
      %v2840 = vshll.u32 %v2641, 16
      %v2842 = vrot.slane %v2840, 5
      %v2843 = vor.u32 %v2839, %v2842
      %v2844 = vrot.slane %v2843, 4
      %v2846 = vshll.u32 %v2642, 16
      %v2848 = vrot.slane %v2846, 5
      %v2849 = vsel %vm1060, %v2844, %v2848
      %v2850 = vshrl.u32 %v2642, 16
      %v2852 = vrot.slane %v2850, 4
      %v2853 = vor.u32 %v2852, %v2848
      %v2854 = vrot.slane %v2853, 4
      %v2856 = vshll.u32 %v2643, 16
      %v2858 = vrot.slane %v2856, 5
      %v2859 = vsel %vm1060, %v2854, %v2858
      %v2861 = vshrl.u32 %v2644, 16
      %v2863 = vrot.slane %v2861, 4
      %v2864 = vshll.u32 %v2644, 16
      %v2866 = vrot.slane %v2864, 5
      %v2867 = vor.u32 %v2863, %v2866
      %v2868 = vrot.slane %v2867, 4
      %v2870 = vshll.u32 %v2645, 16
      %v2872 = vrot.slane %v2870, 5
      %v2873 = vsel %vm1060, %v2868, %v2872
      %v2874 = vshrl.u32 %v2645, 16
      %v2876 = vrot.slane %v2874, 4
      %v2877 = vor.u32 %v2876, %v2872
      %v2878 = vrot.slane %v2877, 4
      %v2880 = vshll.u32 %v2646, 16
      %v2882 = vrot.slane %v2880, 5
      %v2883 = vsel %vm1060, %v2878, %v2882
      %v2885 = vshrl.u32 %v2647, 16
      %v2887 = vrot.slane %v2885, 4
      %v2888 = vshll.u32 %v2647, 16
      %v2890 = vrot.slane %v2888, 5
      %v2891 = vor.u32 %v2887, %v2890
      %v2892 = vrot.slane %v2891, 4
      %v2894 = vshll.u32 %v2648, 16
      %v2896 = vrot.slane %v2894, 5
      %v2897 = vsel %vm1060, %v2892, %v2896
      %v2898 = vshrl.u32 %v2648, 16
      %v2900 = vrot.slane %v2898, 4
      %v2901 = vor.u32 %v2900, %v2896
      %v2902 = vrot.slane %v2901, 4
      %v2904 = vshll.u32 %v2649, 16
      %v2906 = vrot.slane %v2904, 5
      %v2907 = vsel %vm1060, %v2902, %v2906
      %v2909 = vshrl.u32 %v2650, 16
      %v2911 = vrot.slane %v2909, 4
      %v2912 = vshll.u32 %v2650, 16
      %v2914 = vrot.slane %v2912, 5
      %v2915 = vor.u32 %v2911, %v2914
      %v2916 = vrot.slane %v2915, 4
      %v2918 = vshll.u32 %v2651, 16
      %v2920 = vrot.slane %v2918, 5
      %v2921 = vsel %vm1060, %v2916, %v2920
      %v2922 = vshrl.u32 %v2651, 16
      %v2924 = vrot.slane %v2922, 4
      %v2925 = vor.u32 %v2924, %v2920
      %v2926 = vrot.slane %v2925, 4
      %v2928 = vshll.u32 %v2652, 16
      %v2930 = vrot.slane %v2928, 5
      %v2931 = vsel %vm1060, %v2926, %v2930
      %v2933 = vshrl.u32 %v2653, 16
      %v2935 = vrot.slane %v2933, 4
      %v2936 = vshll.u32 %v2653, 16
      %v2938 = vrot.slane %v2936, 5
      %v2939 = vor.u32 %v2935, %v2938
      %v2940 = vrot.slane %v2939, 4
      %v2942 = vshll.u32 %v2654, 16
      %v2944 = vrot.slane %v2942, 5
      %v2945 = vsel %vm1060, %v2940, %v2944
      %v2946 = vshrl.u32 %v2654, 16
      %v2948 = vrot.slane %v2946, 4
      %v2949 = vor.u32 %v2948, %v2944
      %v2950 = vrot.slane %v2949, 4
      %v2952 = vshll.u32 %v2655, 16
      %v2954 = vrot.slane %v2952, 5
      %v2955 = vsel %vm1060, %v2950, %v2954
      %v2957 = vshrl.u32 %v2656, 16
      %v2959 = vrot.slane %v2957, 4
      %v2960 = vshll.u32 %v2656, 16
      %v2962 = vrot.slane %v2960, 5
      %v2963 = vor.u32 %v2959, %v2962
      %v2964 = vrot.slane %v2963, 4
      %v2966 = vshll.u32 %v2657, 16
      %v2968 = vrot.slane %v2966, 5
      %v2969 = vsel %vm1060, %v2964, %v2968
      %v2970 = vshrl.u32 %v2657, 16
      %v2972 = vrot.slane %v2970, 4
      %v2973 = vor.u32 %v2972, %v2968
      %v2974 = vrot.slane %v2973, 4
      %v2976 = vshll.u32 %v2658, 16
      %v2978 = vrot.slane %v2976, 5
      %v2979 = vsel %vm1060, %v2974, %v2978
      %v2981 = vshrl.u32 %v2659, 16
      %v2983 = vrot.slane %v2981, 4
      %v2984 = vshll.u32 %v2659, 16
      %v2986 = vrot.slane %v2984, 5
      %v2987 = vor.u32 %v2983, %v2986
      %v2988 = vrot.slane %v2987, 4
      %v2990 = vshll.u32 %v2660, 16
      %v2992 = vrot.slane %v2990, 5
      %v2993 = vsel %vm1060, %v2988, %v2992
      %v2994 = vshrl.u32 %v2660, 16
      %v2996 = vrot.slane %v2994, 4
      %v2997 = vor.u32 %v2996, %v2992
      %v2998 = vrot.slane %v2997, 4
      %v3000 = vshll.u32 %v2661, 16
      %v3002 = vrot.slane %v3000, 5
      %v3003 = vsel %vm1060, %v2998, %v3002
      %v3005 = vshrl.u32 %v2662, 16
      %v3007 = vrot.slane %v3005, 4
      %v3008 = vshll.u32 %v2662, 16
      %v3010 = vrot.slane %v3008, 5
      %v3011 = vor.u32 %v3007, %v3010
      %v3012 = vrot.slane %v3011, 4
      %v3014 = vshll.u32 %v2663, 16
      %v3016 = vrot.slane %v3014, 5
      %v3017 = vsel %vm1060, %v3012, %v3016
      %v3018 = vshrl.u32 %v2663, 16
      %v3020 = vrot.slane %v3018, 4
      %v3021 = vor.u32 %v3020, %v3016
      %v3022 = vrot.slane %v3021, 4
      %v3024 = vshll.u32 %v2664, 16
      %v3026 = vrot.slane %v3024, 5
      %v3027 = vsel %vm1060, %v3022, %v3026
      %v3029 = vshrl.u32 %v2665, 16
      %v3031 = vrot.slane %v3029, 4
      %v3032 = vshll.u32 %v2665, 16
      %v3034 = vrot.slane %v3032, 5
      %v3035 = vor.u32 %v3031, %v3034
      %v3036 = vrot.slane %v3035, 4
      %v3038 = vshll.u32 %v2666, 16
      %v3040 = vrot.slane %v3038, 5
      %v3041 = vsel %vm1060, %v3036, %v3040
      %v3042 = vshrl.u32 %v2666, 16
      %v3044 = vrot.slane %v3042, 4
      %v3045 = vor.u32 %v3044, %v3040
      %v3046 = vrot.slane %v3045, 4
      %v3048 = vshll.u32 %v2667, 16
      %v3050 = vrot.slane %v3048, 5
      %v3051 = vsel %vm1060, %v3046, %v3050
      %v3052 = vld [vmem:[%s3 + $0x100] sm:$0xf]
      %v3053 = vld [vmem:[%s3 + $0x104] sm:$0xf]
      %v3054 = vld [vmem:[%s3 + $0x108] sm:$0xf]
      %v3055 = vld [vmem:[%s3 + $0x10c] sm:$0xf]
      %v3056 = vld [vmem:[%s3 + $0x110] sm:$0xf]
      %v3057 = vld [vmem:[%s3 + $0x114] sm:$0xf]
      %v3058 = vld [vmem:[%s3 + $0x118] sm:$0xf]
      %v3059 = vld [vmem:[%s3 + $0x11c] sm:$0xf]
      %v3060 = vld [vmem:[%s3 + $0x120] sm:$0xf]
      %v3061 = vld [vmem:[%s3 + $0x124] sm:$0xf]
      %v3062 = vld [vmem:[%s3 + $0x128] sm:$0xf]
      %v3063 = vld [vmem:[%s3 + $0x12c] sm:$0xf]
      %v3064 = vld [vmem:[%s3 + $0x130] sm:$0xf]
      %v3065 = vld [vmem:[%s3 + $0x134] sm:$0xf]
      %v3066 = vld [vmem:[%s3 + $0x138] sm:$0xf]
      %v3067 = vld [vmem:[%s3 + $0x13c] sm:$0xf]
      %v3068 = vunpack.c.l.b16 %v2681
      %v3069 = vunpack.c.l.b16 %v2691
      %v3070 = vunpack.c.l.b16 %v2705
      %v3071 = vunpack.c.l.b16 %v2715
      %v3072 = vunpack.c.l.b16 %v2729
      %v3073 = vunpack.c.l.b16 %v2739
      %v3074 = vunpack.c.l.b16 %v2753
      %v3075 = vunpack.c.l.b16 %v2763
      %v3076 = vunpack.c.l.b16 %v2777
      %v3077 = vunpack.c.l.b16 %v2787
      %v3078 = vunpack.c.l.b16 %v2801
      %v3079 = vunpack.c.l.b16 %v2811
      %v3080 = vunpack.c.l.b16 %v2825
      %v3081 = vunpack.c.l.b16 %v2835
      %v3082 = vunpack.c.l.b16 %v2849
      %v3083 = vunpack.c.l.b16 %v2859
      %v3084 = vunpack.c.l.b16 %v2873
      %v3085 = vunpack.c.l.b16 %v2883
      %v3086 = vunpack.c.l.b16 %v2897
      %v3087 = vunpack.c.l.b16 %v2907
      %v3088 = vunpack.c.l.b16 %v2921
      %v3089 = vunpack.c.l.b16 %v2931
      %v3090 = vunpack.c.l.b16 %v2945
      %v3091 = vunpack.c.l.b16 %v2955
      %v3092 = vunpack.c.l.b16 %v2969
      %v3093 = vunpack.c.l.b16 %v2979
      %v3094 = vunpack.c.l.b16 %v2993
      %v3095 = vunpack.c.l.b16 %v3003
      %v3096 = vunpack.c.l.b16 %v3017
      %v3097 = vunpack.c.l.b16 %v3027
      %v3098 = vunpack.c.l.b16 %v3041
      %v3099 = vunpack.c.l.b16 %v3051
      %v3100 = vpack.c.b16 %v3069, %v3068
      %v3101 = vpack.c.b16 %v3071, %v3070
      %v3102 = vpack.c.b16 %v3073, %v3072
      %v3103 = vpack.c.b16 %v3075, %v3074
      %v3104 = vpack.c.b16 %v3077, %v3076
      %v3105 = vpack.c.b16 %v3079, %v3078
      %v3106 = vpack.c.b16 %v3081, %v3080
      %v3107 = vpack.c.b16 %v3083, %v3082
      %v3108 = vpack.c.b16 %v3085, %v3084
      %v3109 = vpack.c.b16 %v3087, %v3086
      %v3110 = vpack.c.b16 %v3089, %v3088
      %v3111 = vpack.c.b16 %v3091, %v3090
      %v3112 = vpack.c.b16 %v3093, %v3092
      %v3113 = vpack.c.b16 %v3095, %v3094
      %v3114 = vpack.c.b16 %v3097, %v3096
      %v3115 = vpack.c.b16 %v3099, %v3098
      %v3148 = vunpack.c.l.b16 %v3052
      %v3149 = vunpack.c.l.b16 %v3053
      %v3150 = vunpack.c.l.b16 %v3054
      %v3151 = vunpack.c.l.b16 %v3055
      %v3152 = vunpack.c.l.b16 %v3056
      %v3153 = vunpack.c.l.b16 %v3057
      %v3154 = vunpack.c.l.b16 %v3058
      %v3155 = vunpack.c.l.b16 %v3059
      %v3156 = vunpack.c.l.b16 %v3060
      %v3157 = vunpack.c.l.b16 %v3061
      %v3158 = vunpack.c.l.b16 %v3062
      %v3159 = vunpack.c.l.b16 %v3063
      %v3160 = vunpack.c.l.b16 %v3064
      %v3161 = vunpack.c.l.b16 %v3065
      %v3162 = vunpack.c.l.b16 %v3066
      %v3163 = vunpack.c.l.b16 %v3067
      %v3164 = vpack.c.b16 %v3149, %v3148
      %v3165 = vpack.c.b16 %v3151, %v3150
      %v3166 = vpack.c.b16 %v3153, %v3152
      %v3167 = vpack.c.b16 %v3155, %v3154
      %v3168 = vpack.c.b16 %v3157, %v3156
      %v3169 = vpack.c.b16 %v3159, %v3158
      %v3170 = vpack.c.b16 %v3161, %v3160
      %v3171 = vpack.c.b16 %v3163, %v3162
      %3180 = vmatpush.bf16.msra.mxu0 %v3171
      %3181 = vmatpush.bf16.msra.mxu0 %v3170
      %3182 = vmatpush.bf16.msra.mxu0 %v3169
      %3183 = vmatpush.bf16.msra.mxu0 %v3168
      %3184 = vmatpush.bf16.msra.mxu0 %v3167
      %3185 = vmatpush.bf16.msra.mxu0 %v3166
      %3186 = vmatpush.bf16.msra.mxu0 %v3165
      %3187 = vmatpush.bf16.msra.mxu0 %v3164
      %3188 = vmatmul.bf16.gmra.mxu0 %v3100
      %v3189 = vpop.f32.mrf.mxu0
      %v3190 = vadd.f32 0.0, %v3189
      %v3191 = vpop.f32.mrf.mxu0
      %v3192 = vadd.f32 0.0, %v3191
      %3193 = vmatmul.bf16.gmra.mxu0 %v3101
      %v3194 = vpop.f32.mrf.mxu0
      %v3195 = vadd.f32 0.0, %v3194
      %v3196 = vpop.f32.mrf.mxu0
      %v3197 = vadd.f32 0.0, %v3196
      %3198 = vmatmul.bf16.gmra.mxu0 %v3102
      %v3199 = vpop.f32.mrf.mxu0
      %v3200 = vadd.f32 0.0, %v3199
      %v3201 = vpop.f32.mrf.mxu0
      %v3202 = vadd.f32 0.0, %v3201
      %3203 = vmatmul.bf16.gmra.mxu0 %v3103
      %v3204 = vpop.f32.mrf.mxu0
      %v3205 = vadd.f32 0.0, %v3204
      %v3206 = vpop.f32.mrf.mxu0
      %v3207 = vadd.f32 0.0, %v3206
      %3208 = vmatmul.bf16.gmra.mxu0 %v3104
      %v3209 = vpop.f32.mrf.mxu0
      %v3210 = vadd.f32 0.0, %v3209
      %v3211 = vpop.f32.mrf.mxu0
      %v3212 = vadd.f32 0.0, %v3211
      %3213 = vmatmul.bf16.gmra.mxu0 %v3105
      %v3214 = vpop.f32.mrf.mxu0
      %v3215 = vadd.f32 0.0, %v3214
      %v3216 = vpop.f32.mrf.mxu0
      %v3217 = vadd.f32 0.0, %v3216
      %3218 = vmatmul.bf16.gmra.mxu0 %v3106
      %v3219 = vpop.f32.mrf.mxu0
      %v3220 = vadd.f32 0.0, %v3219
      %v3221 = vpop.f32.mrf.mxu0
      %v3222 = vadd.f32 0.0, %v3221
      %3223 = vmatmul.bf16.gmra.mxu0 %v3107
      %v3224 = vpop.f32.mrf.mxu0
      %v3225 = vadd.f32 0.0, %v3224
      %v3226 = vpop.f32.mrf.mxu0
      %v3227 = vadd.f32 0.0, %v3226
      %3228 = vmatmul.bf16.gmra.mxu0 %v3108
      %v3229 = vpop.f32.mrf.mxu0
      %v3230 = vadd.f32 0.0, %v3229
      %v3231 = vpop.f32.mrf.mxu0
      %v3232 = vadd.f32 0.0, %v3231
      %3233 = vmatmul.bf16.gmra.mxu0 %v3109
      %v3234 = vpop.f32.mrf.mxu0
      %v3235 = vadd.f32 0.0, %v3234
      %v3236 = vpop.f32.mrf.mxu0
      %v3237 = vadd.f32 0.0, %v3236
      %3238 = vmatmul.bf16.gmra.mxu0 %v3110
      %v3239 = vpop.f32.mrf.mxu0
      %v3240 = vadd.f32 0.0, %v3239
      %v3241 = vpop.f32.mrf.mxu0
      %v3242 = vadd.f32 0.0, %v3241
      %3243 = vmatmul.bf16.gmra.mxu0 %v3111
      %v3244 = vpop.f32.mrf.mxu0
      %v3245 = vadd.f32 0.0, %v3244
      %v3246 = vpop.f32.mrf.mxu0
      %v3247 = vadd.f32 0.0, %v3246
      %3248 = vmatmul.bf16.gmra.mxu0 %v3112
      %v3249 = vpop.f32.mrf.mxu0
      %v3250 = vadd.f32 0.0, %v3249
      %v3251 = vpop.f32.mrf.mxu0
      %v3252 = vadd.f32 0.0, %v3251
      %3253 = vmatmul.bf16.gmra.mxu0 %v3113
      %v3254 = vpop.f32.mrf.mxu0
      %v3255 = vadd.f32 0.0, %v3254
      %v3256 = vpop.f32.mrf.mxu0
      %v3257 = vadd.f32 0.0, %v3256
      %3258 = vmatmul.bf16.gmra.mxu0 %v3114
      %v3259 = vpop.f32.mrf.mxu0
      %v3260 = vadd.f32 0.0, %v3259
      %v3261 = vpop.f32.mrf.mxu0
      %v3262 = vadd.f32 0.0, %v3261
      %3263 = vmatmul.bf16.gmra.mxu0 %v3115
      %v3264 = vpop.f32.mrf.mxu0
      %v3265 = vadd.f32 0.0, %v3264
      %v3266 = vpop.f32.mrf.mxu0
      %v3267 = vadd.f32 0.0, %v3266
      %3268 = vdwg.mxu0
      %v3269 = vadd.f32 %v2588, %v3190
      %v3270 = vadd.f32 %v2589, %v3192
      %v3271 = vadd.f32 %v2590, %v3195
      %v3272 = vadd.f32 %v2591, %v3197
      %v3273 = vadd.f32 %v2592, %v3200
      %v3274 = vadd.f32 %v2593, %v3202
      %v3275 = vadd.f32 %v2594, %v3205
      %v3276 = vadd.f32 %v2595, %v3207
      %v3277 = vadd.f32 %v2596, %v3210
      %v3278 = vadd.f32 %v2597, %v3212
      %v3279 = vadd.f32 %v2598, %v3215
      %v3280 = vadd.f32 %v2599, %v3217
      %v3281 = vadd.f32 %v2600, %v3220
      %v3282 = vadd.f32 %v2601, %v3222
      %v3283 = vadd.f32 %v2602, %v3225
      %v3284 = vadd.f32 %v2603, %v3227
      %v3285 = vadd.f32 %v2604, %v3230
      %v3286 = vadd.f32 %v2605, %v3232
      %v3287 = vadd.f32 %v2606, %v3235
      %v3288 = vadd.f32 %v2607, %v3237
      %v3289 = vadd.f32 %v2608, %v3240
      %v3290 = vadd.f32 %v2609, %v3242
      %v3291 = vadd.f32 %v2610, %v3245
      %v3292 = vadd.f32 %v2611, %v3247
      %v3293 = vadd.f32 %v2612, %v3250
      %v3294 = vadd.f32 %v2613, %v3252
      %v3295 = vadd.f32 %v2614, %v3255
      %v3296 = vadd.f32 %v2615, %v3257
      %v3297 = vadd.f32 %v2616, %v3260
      %v3298 = vadd.f32 %v2617, %v3262
      %v3299 = vadd.f32 %v2618, %v3265
      %v3300 = vadd.f32 %v2619, %v3267
      %v3301 = vld [vmem:[%s879] sm:$0xe]
      %v3302 = vld [vmem:[%s879 + $0xc] sm:$0xe]
      %v3303 = vld [vmem:[%s879 + $0x18] sm:$0xe]
      %v3304 = vld [vmem:[%s879 + $0x24] sm:$0xe]
      %v3305 = vld [vmem:[%s879 + $0x30] sm:$0xe]
      %v3306 = vld [vmem:[%s879 + $0x3c] sm:$0xe]
      %v3307 = vld [vmem:[%s879 + $0x48] sm:$0xe]
      %v3308 = vld [vmem:[%s879 + $0x54] sm:$0xe]
      %v3309 = vld [vmem:[%s879 + $0x60] sm:$0xe]
      %v3310 = vld [vmem:[%s879 + $0x6c] sm:$0xe]
      %v3311 = vld [vmem:[%s879 + $0x78] sm:$0xe]
      %v3312 = vld [vmem:[%s879 + $0x84] sm:$0xe]
      %v3313 = vld [vmem:[%s879 + $0x90] sm:$0xe]
      %v3314 = vld [vmem:[%s879 + $0x9c] sm:$0xe]
      %v3315 = vld [vmem:[%s879 + $0xa8] sm:$0xe]
      %v3316 = vld [vmem:[%s879 + $0xb4] sm:$0xe]
      %v3365 = vrot.slane %v3301, 5
      %v3366 = vrot.slane %v3365, 4
      %v3367 = vrot.slane %v2621, 5
      %v3368 = vsel %vm1945, %v3366, %v3367
      %v3369 = vrot.slane %v3367, 4
      %v3370 = vrot.slane %v2622, 5
      %v3371 = vsel %vm1945, %v3369, %v3370
      %v3372 = vrot.slane %v3302, 5
      %v3373 = vrot.slane %v3372, 4
      %v3374 = vrot.slane %v2624, 5
      %v3375 = vsel %vm1945, %v3373, %v3374
      %v3376 = vrot.slane %v3374, 4
      %v3377 = vrot.slane %v2625, 5
      %v3378 = vsel %vm1945, %v3376, %v3377
      %v3379 = vrot.slane %v3303, 5
      %v3380 = vrot.slane %v3379, 4
      %v3381 = vrot.slane %v2627, 5
      %v3382 = vsel %vm1945, %v3380, %v3381
      %v3383 = vrot.slane %v3381, 4
      %v3384 = vrot.slane %v2628, 5
      %v3385 = vsel %vm1945, %v3383, %v3384
      %v3386 = vrot.slane %v3304, 5
      %v3387 = vrot.slane %v3386, 4
      %v3388 = vrot.slane %v2630, 5
      %v3389 = vsel %vm1945, %v3387, %v3388
      %v3390 = vrot.slane %v3388, 4
      %v3391 = vrot.slane %v2631, 5
      %v3392 = vsel %vm1945, %v3390, %v3391
      %v3393 = vrot.slane %v3305, 5
      %v3394 = vrot.slane %v3393, 4
      %v3395 = vrot.slane %v2633, 5
      %v3396 = vsel %vm1945, %v3394, %v3395
      %v3397 = vrot.slane %v3395, 4
      %v3398 = vrot.slane %v2634, 5
      %v3399 = vsel %vm1945, %v3397, %v3398
      %v3400 = vrot.slane %v3306, 5
      %v3401 = vrot.slane %v3400, 4
      %v3402 = vrot.slane %v2636, 5
      %v3403 = vsel %vm1945, %v3401, %v3402
      %v3404 = vrot.slane %v3402, 4
      %v3405 = vrot.slane %v2637, 5
      %v3406 = vsel %vm1945, %v3404, %v3405
      %v3407 = vrot.slane %v3307, 5
      %v3408 = vrot.slane %v3407, 4
      %v3409 = vrot.slane %v2639, 5
      %v3410 = vsel %vm1945, %v3408, %v3409
      %v3411 = vrot.slane %v3409, 4
      %v3412 = vrot.slane %v2640, 5
      %v3413 = vsel %vm1945, %v3411, %v3412
      %v3414 = vrot.slane %v3308, 5
      %v3415 = vrot.slane %v3414, 4
      %v3416 = vrot.slane %v2642, 5
      %v3417 = vsel %vm1945, %v3415, %v3416
      %v3418 = vrot.slane %v3416, 4
      %v3419 = vrot.slane %v2643, 5
      %v3420 = vsel %vm1945, %v3418, %v3419
      %v3421 = vrot.slane %v3309, 5
      %v3422 = vrot.slane %v3421, 4
      %v3423 = vrot.slane %v2645, 5
      %v3424 = vsel %vm1945, %v3422, %v3423
      %v3425 = vrot.slane %v3423, 4
      %v3426 = vrot.slane %v2646, 5
      %v3427 = vsel %vm1945, %v3425, %v3426
      %v3428 = vrot.slane %v3310, 5
      %v3429 = vrot.slane %v3428, 4
      %v3430 = vrot.slane %v2648, 5
      %v3431 = vsel %vm1945, %v3429, %v3430
      %v3432 = vrot.slane %v3430, 4
      %v3433 = vrot.slane %v2649, 5
      %v3434 = vsel %vm1945, %v3432, %v3433
      %v3435 = vrot.slane %v3311, 5
      %v3436 = vrot.slane %v3435, 4
      %v3437 = vrot.slane %v2651, 5
      %v3438 = vsel %vm1945, %v3436, %v3437
      %v3439 = vrot.slane %v3437, 4
      %v3440 = vrot.slane %v2652, 5
      %v3441 = vsel %vm1945, %v3439, %v3440
      %v3442 = vrot.slane %v3312, 5
      %v3443 = vrot.slane %v3442, 4
      %v3444 = vrot.slane %v2654, 5
      %v3445 = vsel %vm1945, %v3443, %v3444
      %v3446 = vrot.slane %v3444, 4
      %v3447 = vrot.slane %v2655, 5
      %v3448 = vsel %vm1945, %v3446, %v3447
      %v3449 = vrot.slane %v3313, 5
      %v3450 = vrot.slane %v3449, 4
      %v3451 = vrot.slane %v2657, 5
      %v3452 = vsel %vm1945, %v3450, %v3451
      %v3453 = vrot.slane %v3451, 4
      %v3454 = vrot.slane %v2658, 5
      %v3455 = vsel %vm1945, %v3453, %v3454
      %v3456 = vrot.slane %v3314, 5
      %v3457 = vrot.slane %v3456, 4
      %v3458 = vrot.slane %v2660, 5
      %v3459 = vsel %vm1945, %v3457, %v3458
      %v3460 = vrot.slane %v3458, 4
      %v3461 = vrot.slane %v2661, 5
      %v3462 = vsel %vm1945, %v3460, %v3461
      %v3463 = vrot.slane %v3315, 5
      %v3464 = vrot.slane %v3463, 4
      %v3465 = vrot.slane %v2663, 5
      %v3466 = vsel %vm1945, %v3464, %v3465
      %v3467 = vrot.slane %v3465, 4
      %v3468 = vrot.slane %v2664, 5
      %v3469 = vsel %vm1945, %v3467, %v3468
      %v3470 = vrot.slane %v3316, 5
      %v3471 = vrot.slane %v3470, 4
      %v3472 = vrot.slane %v2666, 5
      %v3473 = vsel %vm1945, %v3471, %v3472
      %v3474 = vrot.slane %v3472, 4
      %v3475 = vrot.slane %v2667, 5
      %v3476 = vsel %vm1945, %v3474, %v3475
      %v3477 = vld [vmem:[%s3 + $0x140] sm:$0xf]
      %v3478 = vld [vmem:[%s3 + $0x144] sm:$0xf]
      %v3479 = vld [vmem:[%s3 + $0x148] sm:$0xf]
      %v3480 = vld [vmem:[%s3 + $0x14c] sm:$0xf]
      %v3481 = vld [vmem:[%s3 + $0x150] sm:$0xf]
      %v3482 = vld [vmem:[%s3 + $0x154] sm:$0xf]
      %v3483 = vld [vmem:[%s3 + $0x158] sm:$0xf]
      %v3484 = vld [vmem:[%s3 + $0x15c] sm:$0xf]
      %v3485 = vld [vmem:[%s3 + $0x160] sm:$0xf]
      %v3486 = vld [vmem:[%s3 + $0x164] sm:$0xf]
      %v3487 = vld [vmem:[%s3 + $0x168] sm:$0xf]
      %v3488 = vld [vmem:[%s3 + $0x16c] sm:$0xf]
      %v3489 = vld [vmem:[%s3 + $0x170] sm:$0xf]
      %v3490 = vld [vmem:[%s3 + $0x174] sm:$0xf]
      %v3491 = vld [vmem:[%s3 + $0x178] sm:$0xf]
      %v3492 = vld [vmem:[%s3 + $0x17c] sm:$0xf]
      %v3493 = vunpack.c.l.b16 %v3368
      %v3494 = vunpack.c.l.b16 %v3371
      %v3495 = vunpack.c.l.b16 %v3375
      %v3496 = vunpack.c.l.b16 %v3378
      %v3497 = vunpack.c.l.b16 %v3382
      %v3498 = vunpack.c.l.b16 %v3385
      %v3499 = vunpack.c.l.b16 %v3389
      %v3500 = vunpack.c.l.b16 %v3392
      %v3501 = vunpack.c.l.b16 %v3396
      %v3502 = vunpack.c.l.b16 %v3399
      %v3503 = vunpack.c.l.b16 %v3403
      %v3504 = vunpack.c.l.b16 %v3406
      %v3505 = vunpack.c.l.b16 %v3410
      %v3506 = vunpack.c.l.b16 %v3413
      %v3507 = vunpack.c.l.b16 %v3417
      %v3508 = vunpack.c.l.b16 %v3420
      %v3509 = vunpack.c.l.b16 %v3424
      %v3510 = vunpack.c.l.b16 %v3427
      %v3511 = vunpack.c.l.b16 %v3431
      %v3512 = vunpack.c.l.b16 %v3434
      %v3513 = vunpack.c.l.b16 %v3438
      %v3514 = vunpack.c.l.b16 %v3441
      %v3515 = vunpack.c.l.b16 %v3445
      %v3516 = vunpack.c.l.b16 %v3448
      %v3517 = vunpack.c.l.b16 %v3452
      %v3518 = vunpack.c.l.b16 %v3455
      %v3519 = vunpack.c.l.b16 %v3459
      %v3520 = vunpack.c.l.b16 %v3462
      %v3521 = vunpack.c.l.b16 %v3466
      %v3522 = vunpack.c.l.b16 %v3469
      %v3523 = vunpack.c.l.b16 %v3473
      %v3524 = vunpack.c.l.b16 %v3476
      %v3525 = vpack.c.b16 %v3494, %v3493
      %v3526 = vpack.c.b16 %v3496, %v3495
      %v3527 = vpack.c.b16 %v3498, %v3497
      %v3528 = vpack.c.b16 %v3500, %v3499
      %v3529 = vpack.c.b16 %v3502, %v3501
      %v3530 = vpack.c.b16 %v3504, %v3503
      %v3531 = vpack.c.b16 %v3506, %v3505
      %v3532 = vpack.c.b16 %v3508, %v3507
      %v3533 = vpack.c.b16 %v3510, %v3509
      %v3534 = vpack.c.b16 %v3512, %v3511
      %v3535 = vpack.c.b16 %v3514, %v3513
      %v3536 = vpack.c.b16 %v3516, %v3515
      %v3537 = vpack.c.b16 %v3518, %v3517
      %v3538 = vpack.c.b16 %v3520, %v3519
      %v3539 = vpack.c.b16 %v3522, %v3521
      %v3540 = vpack.c.b16 %v3524, %v3523
      %v3573 = vunpack.c.l.b16 %v3477
      %v3574 = vunpack.c.l.b16 %v3478
      %v3575 = vunpack.c.l.b16 %v3479
      %v3576 = vunpack.c.l.b16 %v3480
      %v3577 = vunpack.c.l.b16 %v3481
      %v3578 = vunpack.c.l.b16 %v3482
      %v3579 = vunpack.c.l.b16 %v3483
      %v3580 = vunpack.c.l.b16 %v3484
      %v3581 = vunpack.c.l.b16 %v3485
      %v3582 = vunpack.c.l.b16 %v3486
      %v3583 = vunpack.c.l.b16 %v3487
      %v3584 = vunpack.c.l.b16 %v3488
      %v3585 = vunpack.c.l.b16 %v3489
      %v3586 = vunpack.c.l.b16 %v3490
      %v3587 = vunpack.c.l.b16 %v3491
      %v3588 = vunpack.c.l.b16 %v3492
      %v3589 = vpack.c.b16 %v3574, %v3573
      %v3590 = vpack.c.b16 %v3576, %v3575
      %v3591 = vpack.c.b16 %v3578, %v3577
      %v3592 = vpack.c.b16 %v3580, %v3579
      %v3593 = vpack.c.b16 %v3582, %v3581
      %v3594 = vpack.c.b16 %v3584, %v3583
      %v3595 = vpack.c.b16 %v3586, %v3585
      %v3596 = vpack.c.b16 %v3588, %v3587
      %3605 = vmatpush.bf16.msra.mxu0 %v3596
      %3606 = vmatpush.bf16.msra.mxu0 %v3595
      %3607 = vmatpush.bf16.msra.mxu0 %v3594
      %3608 = vmatpush.bf16.msra.mxu0 %v3593
      %3609 = vmatpush.bf16.msra.mxu0 %v3592
      %3610 = vmatpush.bf16.msra.mxu0 %v3591
      %3611 = vmatpush.bf16.msra.mxu0 %v3590
      %3612 = vmatpush.bf16.msra.mxu0 %v3589
      %3613 = vmatmul.bf16.gmra.mxu0 %v3525
      %v3614 = vpop.f32.mrf.mxu0
      %v3615 = vadd.f32 0.0, %v3614
      %v3616 = vpop.f32.mrf.mxu0
      %v3617 = vadd.f32 0.0, %v3616
      %3618 = vmatmul.bf16.gmra.mxu0 %v3526
      %v3619 = vpop.f32.mrf.mxu0
      %v3620 = vadd.f32 0.0, %v3619
      %v3621 = vpop.f32.mrf.mxu0
      %v3622 = vadd.f32 0.0, %v3621
      %3623 = vmatmul.bf16.gmra.mxu0 %v3527
      %v3624 = vpop.f32.mrf.mxu0
      %v3625 = vadd.f32 0.0, %v3624
      %v3626 = vpop.f32.mrf.mxu0
      %v3627 = vadd.f32 0.0, %v3626
      %3628 = vmatmul.bf16.gmra.mxu0 %v3528
      %v3629 = vpop.f32.mrf.mxu0
      %v3630 = vadd.f32 0.0, %v3629
      %v3631 = vpop.f32.mrf.mxu0
      %v3632 = vadd.f32 0.0, %v3631
      %3633 = vmatmul.bf16.gmra.mxu0 %v3529
      %v3634 = vpop.f32.mrf.mxu0
      %v3635 = vadd.f32 0.0, %v3634
      %v3636 = vpop.f32.mrf.mxu0
      %v3637 = vadd.f32 0.0, %v3636
      %3638 = vmatmul.bf16.gmra.mxu0 %v3530
      %v3639 = vpop.f32.mrf.mxu0
      %v3640 = vadd.f32 0.0, %v3639
      %v3641 = vpop.f32.mrf.mxu0
      %v3642 = vadd.f32 0.0, %v3641
      %3643 = vmatmul.bf16.gmra.mxu0 %v3531
      %v3644 = vpop.f32.mrf.mxu0
      %v3645 = vadd.f32 0.0, %v3644
      %v3646 = vpop.f32.mrf.mxu0
      %v3647 = vadd.f32 0.0, %v3646
      %3648 = vmatmul.bf16.gmra.mxu0 %v3532
      %v3649 = vpop.f32.mrf.mxu0
      %v3650 = vadd.f32 0.0, %v3649
      %v3651 = vpop.f32.mrf.mxu0
      %v3652 = vadd.f32 0.0, %v3651
      %3653 = vmatmul.bf16.gmra.mxu0 %v3533
      %v3654 = vpop.f32.mrf.mxu0
      %v3655 = vadd.f32 0.0, %v3654
      %v3656 = vpop.f32.mrf.mxu0
      %v3657 = vadd.f32 0.0, %v3656
      %3658 = vmatmul.bf16.gmra.mxu0 %v3534
      %v3659 = vpop.f32.mrf.mxu0
      %v3660 = vadd.f32 0.0, %v3659
      %v3661 = vpop.f32.mrf.mxu0
      %v3662 = vadd.f32 0.0, %v3661
      %3663 = vmatmul.bf16.gmra.mxu0 %v3535
      %v3664 = vpop.f32.mrf.mxu0
      %v3665 = vadd.f32 0.0, %v3664
      %v3666 = vpop.f32.mrf.mxu0
      %v3667 = vadd.f32 0.0, %v3666
      %3668 = vmatmul.bf16.gmra.mxu0 %v3536
      %v3669 = vpop.f32.mrf.mxu0
      %v3670 = vadd.f32 0.0, %v3669
      %v3671 = vpop.f32.mrf.mxu0
      %v3672 = vadd.f32 0.0, %v3671
      %3673 = vmatmul.bf16.gmra.mxu0 %v3537
      %v3674 = vpop.f32.mrf.mxu0
      %v3675 = vadd.f32 0.0, %v3674
      %v3676 = vpop.f32.mrf.mxu0
      %v3677 = vadd.f32 0.0, %v3676
      %3678 = vmatmul.bf16.gmra.mxu0 %v3538
      %v3679 = vpop.f32.mrf.mxu0
      %v3680 = vadd.f32 0.0, %v3679
      %v3681 = vpop.f32.mrf.mxu0
      %v3682 = vadd.f32 0.0, %v3681
      %3683 = vmatmul.bf16.gmra.mxu0 %v3539
      %v3684 = vpop.f32.mrf.mxu0
      %v3685 = vadd.f32 0.0, %v3684
      %v3686 = vpop.f32.mrf.mxu0
      %v3687 = vadd.f32 0.0, %v3686
      %3688 = vmatmul.bf16.gmra.mxu0 %v3540
      %v3689 = vpop.f32.mrf.mxu0
      %v3690 = vadd.f32 0.0, %v3689
      %v3691 = vpop.f32.mrf.mxu0
      %v3692 = vadd.f32 0.0, %v3691
      %3693 = vdwg.mxu0
      %v3694 = vadd.f32 %v3269, %v3615
      %v3695 = vadd.f32 %v3270, %v3617
      %v3696 = vadd.f32 %v3271, %v3620
      %v3697 = vadd.f32 %v3272, %v3622
      %v3698 = vadd.f32 %v3273, %v3625
      %v3699 = vadd.f32 %v3274, %v3627
      %v3700 = vadd.f32 %v3275, %v3630
      %v3701 = vadd.f32 %v3276, %v3632
      %v3702 = vadd.f32 %v3277, %v3635
      %v3703 = vadd.f32 %v3278, %v3637
      %v3704 = vadd.f32 %v3279, %v3640
      %v3705 = vadd.f32 %v3280, %v3642
      %v3706 = vadd.f32 %v3281, %v3645
      %v3707 = vadd.f32 %v3282, %v3647
      %v3708 = vadd.f32 %v3283, %v3650
      %v3709 = vadd.f32 %v3284, %v3652
      %v3710 = vadd.f32 %v3285, %v3655
      %v3711 = vadd.f32 %v3286, %v3657
      %v3712 = vadd.f32 %v3287, %v3660
      %v3713 = vadd.f32 %v3288, %v3662
      %v3714 = vadd.f32 %v3289, %v3665
      %v3715 = vadd.f32 %v3290, %v3667
      %v3716 = vadd.f32 %v3291, %v3670
      %v3717 = vadd.f32 %v3292, %v3672
      %v3718 = vadd.f32 %v3293, %v3675
      %v3719 = vadd.f32 %v3294, %v3677
      %v3720 = vadd.f32 %v3295, %v3680
      %v3721 = vadd.f32 %v3296, %v3682
      %v3722 = vadd.f32 %v3297, %v3685
      %v3723 = vadd.f32 %v3298, %v3687
      %v3724 = vadd.f32 %v3299, %v3690
      %v3725 = vadd.f32 %v3300, %v3692
      %s3726 = scalar_lea.vmem [#allocation2], 24
      %v3727 = vld [vmem:[%s3726] sm:$0xf]
      %v3728 = vld [vmem:[%s3726 + $0x4] sm:$0xf]
      %v3729 = vld [vmem:[%s3726 + $0xc] sm:$0xf]
      %v3730 = vld [vmem:[%s3726 + $0x10] sm:$0xf]
      %v3731 = vld [vmem:[%s3726 + $0x18] sm:$0xf]
      %v3732 = vld [vmem:[%s3726 + $0x1c] sm:$0xf]
      %v3733 = vld [vmem:[%s3726 + $0x24] sm:$0xf]
      %v3734 = vld [vmem:[%s3726 + $0x28] sm:$0xf]
      %v3735 = vld [vmem:[%s3726 + $0x30] sm:$0xf]
      %v3736 = vld [vmem:[%s3726 + $0x34] sm:$0xf]
      %v3737 = vld [vmem:[%s3726 + $0x3c] sm:$0xf]
      %v3738 = vld [vmem:[%s3726 + $0x40] sm:$0xf]
      %v3739 = vld [vmem:[%s3726 + $0x48] sm:$0xf]
      %v3740 = vld [vmem:[%s3726 + $0x4c] sm:$0xf]
      %v3741 = vld [vmem:[%s3726 + $0x54] sm:$0xf]
      %v3742 = vld [vmem:[%s3726 + $0x58] sm:$0xf]
      %v3743 = vld [vmem:[%s3726 + $0x60] sm:$0xf]
      %v3744 = vld [vmem:[%s3726 + $0x64] sm:$0xf]
      %v3745 = vld [vmem:[%s3726 + $0x6c] sm:$0xf]
      %v3746 = vld [vmem:[%s3726 + $0x70] sm:$0xf]
      %v3747 = vld [vmem:[%s3726 + $0x78] sm:$0xf]
      %v3748 = vld [vmem:[%s3726 + $0x7c] sm:$0xf]
      %v3749 = vld [vmem:[%s3726 + $0x84] sm:$0xf]
      %v3750 = vld [vmem:[%s3726 + $0x88] sm:$0xf]
      %v3751 = vld [vmem:[%s3726 + $0x90] sm:$0xf]
      %v3752 = vld [vmem:[%s3726 + $0x94] sm:$0xf]
      %v3753 = vld [vmem:[%s3726 + $0x9c] sm:$0xf]
      %v3754 = vld [vmem:[%s3726 + $0xa0] sm:$0xf]
      %v3755 = vld [vmem:[%s3726 + $0xa8] sm:$0xf]
      %v3756 = vld [vmem:[%s3726 + $0xac] sm:$0xf]
      %v3757 = vld [vmem:[%s3726 + $0xb4] sm:$0xf]
      %v3758 = vld [vmem:[%s3726 + $0xb8] sm:$0xf]
      %v3759 = vld [vmem:[%s3 + $0x180] sm:$0xf]
      %v3760 = vld [vmem:[%s3 + $0x184] sm:$0xf]
      %v3761 = vld [vmem:[%s3 + $0x188] sm:$0xf]
      %v3762 = vld [vmem:[%s3 + $0x18c] sm:$0xf]
      %v3763 = vld [vmem:[%s3 + $0x190] sm:$0xf]
      %v3764 = vld [vmem:[%s3 + $0x194] sm:$0xf]
      %v3765 = vld [vmem:[%s3 + $0x198] sm:$0xf]
      %v3766 = vld [vmem:[%s3 + $0x19c] sm:$0xf]
      %v3767 = vld [vmem:[%s3 + $0x1a0] sm:$0xf]
      %v3768 = vld [vmem:[%s3 + $0x1a4] sm:$0xf]
      %v3769 = vld [vmem:[%s3 + $0x1a8] sm:$0xf]
      %v3770 = vld [vmem:[%s3 + $0x1ac] sm:$0xf]
      %v3771 = vld [vmem:[%s3 + $0x1b0] sm:$0xf]
      %v3772 = vld [vmem:[%s3 + $0x1b4] sm:$0xf]
      %v3773 = vld [vmem:[%s3 + $0x1b8] sm:$0xf]
      %v3774 = vld [vmem:[%s3 + $0x1bc] sm:$0xf]
      %v3807 = vunpack.c.l.b16 %v3727
      %v3808 = vunpack.c.l.b16 %v3728
      %v3809 = vunpack.c.l.b16 %v3729
      %v3810 = vunpack.c.l.b16 %v3730
      %v3811 = vunpack.c.l.b16 %v3731
      %v3812 = vunpack.c.l.b16 %v3732
      %v3813 = vunpack.c.l.b16 %v3733
      %v3814 = vunpack.c.l.b16 %v3734
      %v3815 = vunpack.c.l.b16 %v3735
      %v3816 = vunpack.c.l.b16 %v3736
      %v3817 = vunpack.c.l.b16 %v3737
      %v3818 = vunpack.c.l.b16 %v3738
      %v3819 = vunpack.c.l.b16 %v3739
      %v3820 = vunpack.c.l.b16 %v3740
      %v3821 = vunpack.c.l.b16 %v3741
      %v3822 = vunpack.c.l.b16 %v3742
      %v3823 = vunpack.c.l.b16 %v3743
      %v3824 = vunpack.c.l.b16 %v3744
      %v3825 = vunpack.c.l.b16 %v3745
      %v3826 = vunpack.c.l.b16 %v3746
      %v3827 = vunpack.c.l.b16 %v3747
      %v3828 = vunpack.c.l.b16 %v3748
      %v3829 = vunpack.c.l.b16 %v3749
      %v3830 = vunpack.c.l.b16 %v3750
      %v3831 = vunpack.c.l.b16 %v3751
      %v3832 = vunpack.c.l.b16 %v3752
      %v3833 = vunpack.c.l.b16 %v3753
      %v3834 = vunpack.c.l.b16 %v3754
      %v3835 = vunpack.c.l.b16 %v3755
      %v3836 = vunpack.c.l.b16 %v3756
      %v3837 = vunpack.c.l.b16 %v3757
      %v3838 = vunpack.c.l.b16 %v3758
      %v3839 = vpack.c.b16 %v3808, %v3807
      %v3840 = vpack.c.b16 %v3810, %v3809
      %v3841 = vpack.c.b16 %v3812, %v3811
      %v3842 = vpack.c.b16 %v3814, %v3813
      %v3843 = vpack.c.b16 %v3816, %v3815
      %v3844 = vpack.c.b16 %v3818, %v3817
      %v3845 = vpack.c.b16 %v3820, %v3819
      %v3846 = vpack.c.b16 %v3822, %v3821
      %v3847 = vpack.c.b16 %v3824, %v3823
      %v3848 = vpack.c.b16 %v3826, %v3825
      %v3849 = vpack.c.b16 %v3828, %v3827
      %v3850 = vpack.c.b16 %v3830, %v3829
      %v3851 = vpack.c.b16 %v3832, %v3831
      %v3852 = vpack.c.b16 %v3834, %v3833
      %v3853 = vpack.c.b16 %v3836, %v3835
      %v3854 = vpack.c.b16 %v3838, %v3837
      %v3887 = vunpack.c.l.b16 %v3759
      %v3888 = vunpack.c.l.b16 %v3760
      %v3889 = vunpack.c.l.b16 %v3761
      %v3890 = vunpack.c.l.b16 %v3762
      %v3891 = vunpack.c.l.b16 %v3763
      %v3892 = vunpack.c.l.b16 %v3764
      %v3893 = vunpack.c.l.b16 %v3765
      %v3894 = vunpack.c.l.b16 %v3766
      %v3895 = vunpack.c.l.b16 %v3767
      %v3896 = vunpack.c.l.b16 %v3768
      %v3897 = vunpack.c.l.b16 %v3769
      %v3898 = vunpack.c.l.b16 %v3770
      %v3899 = vunpack.c.l.b16 %v3771
      %v3900 = vunpack.c.l.b16 %v3772
      %v3901 = vunpack.c.l.b16 %v3773
      %v3902 = vunpack.c.l.b16 %v3774
      %v3903 = vpack.c.b16 %v3888, %v3887
      %v3904 = vpack.c.b16 %v3890, %v3889
      %v3905 = vpack.c.b16 %v3892, %v3891
      %v3906 = vpack.c.b16 %v3894, %v3893
      %v3907 = vpack.c.b16 %v3896, %v3895
      %v3908 = vpack.c.b16 %v3898, %v3897
      %v3909 = vpack.c.b16 %v3900, %v3899
      %v3910 = vpack.c.b16 %v3902, %v3901
      %3919 = vmatpush.bf16.msra.mxu0 %v3910
      %3920 = vmatpush.bf16.msra.mxu0 %v3909
      %3921 = vmatpush.bf16.msra.mxu0 %v3908
      %3922 = vmatpush.bf16.msra.mxu0 %v3907
      %3923 = vmatpush.bf16.msra.mxu0 %v3906
      %3924 = vmatpush.bf16.msra.mxu0 %v3905
      %3925 = vmatpush.bf16.msra.mxu0 %v3904
      %3926 = vmatpush.bf16.msra.mxu0 %v3903
      %3927 = vmatmul.bf16.gmra.mxu0 %v3839
      %v3928 = vpop.f32.mrf.mxu0
      %v3929 = vadd.f32 0.0, %v3928
      %v3930 = vpop.f32.mrf.mxu0
      %v3931 = vadd.f32 0.0, %v3930
      %3932 = vmatmul.bf16.gmra.mxu0 %v3840
      %v3933 = vpop.f32.mrf.mxu0
      %v3934 = vadd.f32 0.0, %v3933
      %v3935 = vpop.f32.mrf.mxu0
      %v3936 = vadd.f32 0.0, %v3935
      %3937 = vmatmul.bf16.gmra.mxu0 %v3841
      %v3938 = vpop.f32.mrf.mxu0
      %v3939 = vadd.f32 0.0, %v3938
      %v3940 = vpop.f32.mrf.mxu0
      %v3941 = vadd.f32 0.0, %v3940
      %3942 = vmatmul.bf16.gmra.mxu0 %v3842
      %v3943 = vpop.f32.mrf.mxu0
      %v3944 = vadd.f32 0.0, %v3943
      %v3945 = vpop.f32.mrf.mxu0
      %v3946 = vadd.f32 0.0, %v3945
      %3947 = vmatmul.bf16.gmra.mxu0 %v3843
      %v3948 = vpop.f32.mrf.mxu0
      %v3949 = vadd.f32 0.0, %v3948
      %v3950 = vpop.f32.mrf.mxu0
      %v3951 = vadd.f32 0.0, %v3950
      %3952 = vmatmul.bf16.gmra.mxu0 %v3844
      %v3953 = vpop.f32.mrf.mxu0
      %v3954 = vadd.f32 0.0, %v3953
      %v3955 = vpop.f32.mrf.mxu0
      %v3956 = vadd.f32 0.0, %v3955
      %3957 = vmatmul.bf16.gmra.mxu0 %v3845
      %v3958 = vpop.f32.mrf.mxu0
      %v3959 = vadd.f32 0.0, %v3958
      %v3960 = vpop.f32.mrf.mxu0
      %v3961 = vadd.f32 0.0, %v3960
      %3962 = vmatmul.bf16.gmra.mxu0 %v3846
      %v3963 = vpop.f32.mrf.mxu0
      %v3964 = vadd.f32 0.0, %v3963
      %v3965 = vpop.f32.mrf.mxu0
      %v3966 = vadd.f32 0.0, %v3965
      %3967 = vmatmul.bf16.gmra.mxu0 %v3847
      %v3968 = vpop.f32.mrf.mxu0
      %v3969 = vadd.f32 0.0, %v3968
      %v3970 = vpop.f32.mrf.mxu0
      %v3971 = vadd.f32 0.0, %v3970
      %3972 = vmatmul.bf16.gmra.mxu0 %v3848
      %v3973 = vpop.f32.mrf.mxu0
      %v3974 = vadd.f32 0.0, %v3973
      %v3975 = vpop.f32.mrf.mxu0
      %v3976 = vadd.f32 0.0, %v3975
      %3977 = vmatmul.bf16.gmra.mxu0 %v3849
      %v3978 = vpop.f32.mrf.mxu0
      %v3979 = vadd.f32 0.0, %v3978
      %v3980 = vpop.f32.mrf.mxu0
      %v3981 = vadd.f32 0.0, %v3980
      %3982 = vmatmul.bf16.gmra.mxu0 %v3850
      %v3983 = vpop.f32.mrf.mxu0
      %v3984 = vadd.f32 0.0, %v3983
      %v3985 = vpop.f32.mrf.mxu0
      %v3986 = vadd.f32 0.0, %v3985
      %3987 = vmatmul.bf16.gmra.mxu0 %v3851
      %v3988 = vpop.f32.mrf.mxu0
      %v3989 = vadd.f32 0.0, %v3988
      %v3990 = vpop.f32.mrf.mxu0
      %v3991 = vadd.f32 0.0, %v3990
      %3992 = vmatmul.bf16.gmra.mxu0 %v3852
      %v3993 = vpop.f32.mrf.mxu0
      %v3994 = vadd.f32 0.0, %v3993
      %v3995 = vpop.f32.mrf.mxu0
      %v3996 = vadd.f32 0.0, %v3995
      %3997 = vmatmul.bf16.gmra.mxu0 %v3853
      %v3998 = vpop.f32.mrf.mxu0
      %v3999 = vadd.f32 0.0, %v3998
      %v4000 = vpop.f32.mrf.mxu0
      %v4001 = vadd.f32 0.0, %v4000
      %4002 = vmatmul.bf16.gmra.mxu0 %v3854
      %v4003 = vpop.f32.mrf.mxu0
      %v4004 = vadd.f32 0.0, %v4003
      %v4005 = vpop.f32.mrf.mxu0
      %v4006 = vadd.f32 0.0, %v4005
      %4007 = vdwg.mxu0
      %v4008 = vadd.f32 %v3694, %v3929
      %v4009 = vadd.f32 %v3695, %v3931
      %v4010 = vadd.f32 %v3696, %v3934
      %v4011 = vadd.f32 %v3697, %v3936
      %v4012 = vadd.f32 %v3698, %v3939
      %v4013 = vadd.f32 %v3699, %v3941
      %v4014 = vadd.f32 %v3700, %v3944
      %v4015 = vadd.f32 %v3701, %v3946
      %v4016 = vadd.f32 %v3702, %v3949
      %v4017 = vadd.f32 %v3703, %v3951
      %v4018 = vadd.f32 %v3704, %v3954
      %v4019 = vadd.f32 %v3705, %v3956
      %v4020 = vadd.f32 %v3706, %v3959
      %v4021 = vadd.f32 %v3707, %v3961
      %v4022 = vadd.f32 %v3708, %v3964
      %v4023 = vadd.f32 %v3709, %v3966
      %v4024 = vadd.f32 %v3710, %v3969
      %v4025 = vadd.f32 %v3711, %v3971
      %v4026 = vadd.f32 %v3712, %v3974
      %v4027 = vadd.f32 %v3713, %v3976
      %v4028 = vadd.f32 %v3714, %v3979
      %v4029 = vadd.f32 %v3715, %v3981
      %v4030 = vadd.f32 %v3716, %v3984
      %v4031 = vadd.f32 %v3717, %v3986
      %v4032 = vadd.f32 %v3718, %v3989
      %v4033 = vadd.f32 %v3719, %v3991
      %v4034 = vadd.f32 %v3720, %v3994
      %v4035 = vadd.f32 %v3721, %v3996
      %v4036 = vadd.f32 %v3722, %v3999
      %v4037 = vadd.f32 %v3723, %v4001
      %v4038 = vadd.f32 %v3724, %v4004
      %v4039 = vadd.f32 %v3725, %v4006
      %v4040 = vld [vmem:[%s3726] sm:$0xf]
      %v4041 = vld [vmem:[%s3726 + $0x4] sm:$0xf]
      %v4042 = vld [vmem:[%s3726 + $0x8] sm:$0x1]
      %v4043 = vld [vmem:[%s3726 + $0xc] sm:$0xf]
      %v4044 = vld [vmem:[%s3726 + $0x10] sm:$0xf]
      %v4045 = vld [vmem:[%s3726 + $0x14] sm:$0x1]
      %v4046 = vld [vmem:[%s3726 + $0x18] sm:$0xf]
      %v4047 = vld [vmem:[%s3726 + $0x1c] sm:$0xf]
      %v4048 = vld [vmem:[%s3726 + $0x20] sm:$0x1]
      %v4049 = vld [vmem:[%s3726 + $0x24] sm:$0xf]
      %v4050 = vld [vmem:[%s3726 + $0x28] sm:$0xf]
      %v4051 = vld [vmem:[%s3726 + $0x2c] sm:$0x1]
      %v4052 = vld [vmem:[%s3726 + $0x30] sm:$0xf]
      %v4053 = vld [vmem:[%s3726 + $0x34] sm:$0xf]
      %v4054 = vld [vmem:[%s3726 + $0x38] sm:$0x1]
      %v4055 = vld [vmem:[%s3726 + $0x3c] sm:$0xf]
      %v4056 = vld [vmem:[%s3726 + $0x40] sm:$0xf]
      %v4057 = vld [vmem:[%s3726 + $0x44] sm:$0x1]
      %v4058 = vld [vmem:[%s3726 + $0x48] sm:$0xf]
      %v4059 = vld [vmem:[%s3726 + $0x4c] sm:$0xf]
      %v4060 = vld [vmem:[%s3726 + $0x50] sm:$0x1]
      %v4061 = vld [vmem:[%s3726 + $0x54] sm:$0xf]
      %v4062 = vld [vmem:[%s3726 + $0x58] sm:$0xf]
      %v4063 = vld [vmem:[%s3726 + $0x5c] sm:$0x1]
      %v4064 = vld [vmem:[%s3726 + $0x60] sm:$0xf]
      %v4065 = vld [vmem:[%s3726 + $0x64] sm:$0xf]
      %v4066 = vld [vmem:[%s3726 + $0x68] sm:$0x1]
      %v4067 = vld [vmem:[%s3726 + $0x6c] sm:$0xf]
      %v4068 = vld [vmem:[%s3726 + $0x70] sm:$0xf]
      %v4069 = vld [vmem:[%s3726 + $0x74] sm:$0x1]
      %v4070 = vld [vmem:[%s3726 + $0x78] sm:$0xf]
      %v4071 = vld [vmem:[%s3726 + $0x7c] sm:$0xf]
      %v4072 = vld [vmem:[%s3726 + $0x80] sm:$0x1]
      %v4073 = vld [vmem:[%s3726 + $0x84] sm:$0xf]
      %v4074 = vld [vmem:[%s3726 + $0x88] sm:$0xf]
      %v4075 = vld [vmem:[%s3726 + $0x8c] sm:$0x1]
      %v4076 = vld [vmem:[%s3726 + $0x90] sm:$0xf]
      %v4077 = vld [vmem:[%s3726 + $0x94] sm:$0xf]
      %v4078 = vld [vmem:[%s3726 + $0x98] sm:$0x1]
      %v4079 = vld [vmem:[%s3726 + $0x9c] sm:$0xf]
      %v4080 = vld [vmem:[%s3726 + $0xa0] sm:$0xf]
      %v4081 = vld [vmem:[%s3726 + $0xa4] sm:$0x1]
      %v4082 = vld [vmem:[%s3726 + $0xa8] sm:$0xf]
      %v4083 = vld [vmem:[%s3726 + $0xac] sm:$0xf]
      %v4084 = vld [vmem:[%s3726 + $0xb0] sm:$0x1]
      %v4085 = vld [vmem:[%s3726 + $0xb4] sm:$0xf]
      %v4086 = vld [vmem:[%s3726 + $0xb8] sm:$0xf]
      %v4087 = vld [vmem:[%s3726 + $0xbc] sm:$0x1]
      %v4089 = vshrl.u32 %v4040, 16
      %v4091 = vrot.slane %v4089, 4
      %v4092 = vshll.u32 %v4040, 16
      %v4094 = vrot.slane %v4092, 5
      %v4095 = vor.u32 %v4091, %v4094
      %v4096 = vrot.slane %v4095, 4
      %v4098 = vshll.u32 %v4041, 16
      %v4100 = vrot.slane %v4098, 5
      %v4101 = vsel %vm1060, %v4096, %v4100
      %v4102 = vshrl.u32 %v4041, 16
      %v4104 = vrot.slane %v4102, 4
      %v4105 = vor.u32 %v4104, %v4100
      %v4106 = vrot.slane %v4105, 4
      %v4108 = vshll.u32 %v4042, 16
      %v4110 = vrot.slane %v4108, 5
      %v4111 = vsel %vm1060, %v4106, %v4110
      %v4113 = vshrl.u32 %v4043, 16
      %v4115 = vrot.slane %v4113, 4
      %v4116 = vshll.u32 %v4043, 16
      %v4118 = vrot.slane %v4116, 5
      %v4119 = vor.u32 %v4115, %v4118
      %v4120 = vrot.slane %v4119, 4
      %v4122 = vshll.u32 %v4044, 16
      %v4124 = vrot.slane %v4122, 5
      %v4125 = vsel %vm1060, %v4120, %v4124
      %v4126 = vshrl.u32 %v4044, 16
      %v4128 = vrot.slane %v4126, 4
      %v4129 = vor.u32 %v4128, %v4124
      %v4130 = vrot.slane %v4129, 4
      %v4132 = vshll.u32 %v4045, 16
      %v4134 = vrot.slane %v4132, 5
      %v4135 = vsel %vm1060, %v4130, %v4134
      %v4137 = vshrl.u32 %v4046, 16
      %v4139 = vrot.slane %v4137, 4
      %v4140 = vshll.u32 %v4046, 16
      %v4142 = vrot.slane %v4140, 5
      %v4143 = vor.u32 %v4139, %v4142
      %v4144 = vrot.slane %v4143, 4
      %v4146 = vshll.u32 %v4047, 16
      %v4148 = vrot.slane %v4146, 5
      %v4149 = vsel %vm1060, %v4144, %v4148
      %v4150 = vshrl.u32 %v4047, 16
      %v4152 = vrot.slane %v4150, 4
      %v4153 = vor.u32 %v4152, %v4148
      %v4154 = vrot.slane %v4153, 4
      %v4156 = vshll.u32 %v4048, 16
      %v4158 = vrot.slane %v4156, 5
      %v4159 = vsel %vm1060, %v4154, %v4158
      %v4161 = vshrl.u32 %v4049, 16
      %v4163 = vrot.slane %v4161, 4
      %v4164 = vshll.u32 %v4049, 16
      %v4166 = vrot.slane %v4164, 5
      %v4167 = vor.u32 %v4163, %v4166
      %v4168 = vrot.slane %v4167, 4
      %v4170 = vshll.u32 %v4050, 16
      %v4172 = vrot.slane %v4170, 5
      %v4173 = vsel %vm1060, %v4168, %v4172
      %v4174 = vshrl.u32 %v4050, 16
      %v4176 = vrot.slane %v4174, 4
      %v4177 = vor.u32 %v4176, %v4172
      %v4178 = vrot.slane %v4177, 4
      %v4180 = vshll.u32 %v4051, 16
      %v4182 = vrot.slane %v4180, 5
      %v4183 = vsel %vm1060, %v4178, %v4182
      %v4185 = vshrl.u32 %v4052, 16
      %v4187 = vrot.slane %v4185, 4
      %v4188 = vshll.u32 %v4052, 16
      %v4190 = vrot.slane %v4188, 5
      %v4191 = vor.u32 %v4187, %v4190
      %v4192 = vrot.slane %v4191, 4
      %v4194 = vshll.u32 %v4053, 16
      %v4196 = vrot.slane %v4194, 5
      %v4197 = vsel %vm1060, %v4192, %v4196
      %v4198 = vshrl.u32 %v4053, 16
      %v4200 = vrot.slane %v4198, 4
      %v4201 = vor.u32 %v4200, %v4196
      %v4202 = vrot.slane %v4201, 4
      %v4204 = vshll.u32 %v4054, 16
      %v4206 = vrot.slane %v4204, 5
      %v4207 = vsel %vm1060, %v4202, %v4206
      %v4209 = vshrl.u32 %v4055, 16
      %v4211 = vrot.slane %v4209, 4
      %v4212 = vshll.u32 %v4055, 16
      %v4214 = vrot.slane %v4212, 5
      %v4215 = vor.u32 %v4211, %v4214
      %v4216 = vrot.slane %v4215, 4
      %v4218 = vshll.u32 %v4056, 16
      %v4220 = vrot.slane %v4218, 5
      %v4221 = vsel %vm1060, %v4216, %v4220
      %v4222 = vshrl.u32 %v4056, 16
      %v4224 = vrot.slane %v4222, 4
      %v4225 = vor.u32 %v4224, %v4220
      %v4226 = vrot.slane %v4225, 4
      %v4228 = vshll.u32 %v4057, 16
      %v4230 = vrot.slane %v4228, 5
      %v4231 = vsel %vm1060, %v4226, %v4230
      %v4233 = vshrl.u32 %v4058, 16
      %v4235 = vrot.slane %v4233, 4
      %v4236 = vshll.u32 %v4058, 16
      %v4238 = vrot.slane %v4236, 5
      %v4239 = vor.u32 %v4235, %v4238
      %v4240 = vrot.slane %v4239, 4
      %v4242 = vshll.u32 %v4059, 16
      %v4244 = vrot.slane %v4242, 5
      %v4245 = vsel %vm1060, %v4240, %v4244
      %v4246 = vshrl.u32 %v4059, 16
      %v4248 = vrot.slane %v4246, 4
      %v4249 = vor.u32 %v4248, %v4244
      %v4250 = vrot.slane %v4249, 4
      %v4252 = vshll.u32 %v4060, 16
      %v4254 = vrot.slane %v4252, 5
      %v4255 = vsel %vm1060, %v4250, %v4254
      %v4257 = vshrl.u32 %v4061, 16
      %v4259 = vrot.slane %v4257, 4
      %v4260 = vshll.u32 %v4061, 16
      %v4262 = vrot.slane %v4260, 5
      %v4263 = vor.u32 %v4259, %v4262
      %v4264 = vrot.slane %v4263, 4
      %v4266 = vshll.u32 %v4062, 16
      %v4268 = vrot.slane %v4266, 5
      %v4269 = vsel %vm1060, %v4264, %v4268
      %v4270 = vshrl.u32 %v4062, 16
      %v4272 = vrot.slane %v4270, 4
      %v4273 = vor.u32 %v4272, %v4268
      %v4274 = vrot.slane %v4273, 4
      %v4276 = vshll.u32 %v4063, 16
      %v4278 = vrot.slane %v4276, 5
      %v4279 = vsel %vm1060, %v4274, %v4278
      %v4281 = vshrl.u32 %v4064, 16
      %v4283 = vrot.slane %v4281, 4
      %v4284 = vshll.u32 %v4064, 16
      %v4286 = vrot.slane %v4284, 5
      %v4287 = vor.u32 %v4283, %v4286
      %v4288 = vrot.slane %v4287, 4
      %v4290 = vshll.u32 %v4065, 16
      %v4292 = vrot.slane %v4290, 5
      %v4293 = vsel %vm1060, %v4288, %v4292
      %v4294 = vshrl.u32 %v4065, 16
      %v4296 = vrot.slane %v4294, 4
      %v4297 = vor.u32 %v4296, %v4292
      %v4298 = vrot.slane %v4297, 4
      %v4300 = vshll.u32 %v4066, 16
      %v4302 = vrot.slane %v4300, 5
      %v4303 = vsel %vm1060, %v4298, %v4302
      %v4305 = vshrl.u32 %v4067, 16
      %v4307 = vrot.slane %v4305, 4
      %v4308 = vshll.u32 %v4067, 16
      %v4310 = vrot.slane %v4308, 5
      %v4311 = vor.u32 %v4307, %v4310
      %v4312 = vrot.slane %v4311, 4
      %v4314 = vshll.u32 %v4068, 16
      %v4316 = vrot.slane %v4314, 5
      %v4317 = vsel %vm1060, %v4312, %v4316
      %v4318 = vshrl.u32 %v4068, 16
      %v4320 = vrot.slane %v4318, 4
      %v4321 = vor.u32 %v4320, %v4316
      %v4322 = vrot.slane %v4321, 4
      %v4324 = vshll.u32 %v4069, 16
      %v4326 = vrot.slane %v4324, 5
      %v4327 = vsel %vm1060, %v4322, %v4326
      %v4329 = vshrl.u32 %v4070, 16
      %v4331 = vrot.slane %v4329, 4
      %v4332 = vshll.u32 %v4070, 16
      %v4334 = vrot.slane %v4332, 5
      %v4335 = vor.u32 %v4331, %v4334
      %v4336 = vrot.slane %v4335, 4
      %v4338 = vshll.u32 %v4071, 16
      %v4340 = vrot.slane %v4338, 5
      %v4341 = vsel %vm1060, %v4336, %v4340
      %v4342 = vshrl.u32 %v4071, 16
      %v4344 = vrot.slane %v4342, 4
      %v4345 = vor.u32 %v4344, %v4340
      %v4346 = vrot.slane %v4345, 4
      %v4348 = vshll.u32 %v4072, 16
      %v4350 = vrot.slane %v4348, 5
      %v4351 = vsel %vm1060, %v4346, %v4350
      %v4353 = vshrl.u32 %v4073, 16
      %v4355 = vrot.slane %v4353, 4
      %v4356 = vshll.u32 %v4073, 16
      %v4358 = vrot.slane %v4356, 5
      %v4359 = vor.u32 %v4355, %v4358
      %v4360 = vrot.slane %v4359, 4
      %v4362 = vshll.u32 %v4074, 16
      %v4364 = vrot.slane %v4362, 5
      %v4365 = vsel %vm1060, %v4360, %v4364
      %v4366 = vshrl.u32 %v4074, 16
      %v4368 = vrot.slane %v4366, 4
      %v4369 = vor.u32 %v4368, %v4364
      %v4370 = vrot.slane %v4369, 4
      %v4372 = vshll.u32 %v4075, 16
      %v4374 = vrot.slane %v4372, 5
      %v4375 = vsel %vm1060, %v4370, %v4374
      %v4377 = vshrl.u32 %v4076, 16
      %v4379 = vrot.slane %v4377, 4
      %v4380 = vshll.u32 %v4076, 16
      %v4382 = vrot.slane %v4380, 5
      %v4383 = vor.u32 %v4379, %v4382
      %v4384 = vrot.slane %v4383, 4
      %v4386 = vshll.u32 %v4077, 16
      %v4388 = vrot.slane %v4386, 5
      %v4389 = vsel %vm1060, %v4384, %v4388
      %v4390 = vshrl.u32 %v4077, 16
      %v4392 = vrot.slane %v4390, 4
      %v4393 = vor.u32 %v4392, %v4388
      %v4394 = vrot.slane %v4393, 4
      %v4396 = vshll.u32 %v4078, 16
      %v4398 = vrot.slane %v4396, 5
      %v4399 = vsel %vm1060, %v4394, %v4398
      %v4401 = vshrl.u32 %v4079, 16
      %v4403 = vrot.slane %v4401, 4
      %v4404 = vshll.u32 %v4079, 16
      %v4406 = vrot.slane %v4404, 5
      %v4407 = vor.u32 %v4403, %v4406
      %v4408 = vrot.slane %v4407, 4
      %v4410 = vshll.u32 %v4080, 16
      %v4412 = vrot.slane %v4410, 5
      %v4413 = vsel %vm1060, %v4408, %v4412
      %v4414 = vshrl.u32 %v4080, 16
      %v4416 = vrot.slane %v4414, 4
      %v4417 = vor.u32 %v4416, %v4412
      %v4418 = vrot.slane %v4417, 4
      %v4420 = vshll.u32 %v4081, 16
      %v4422 = vrot.slane %v4420, 5
      %v4423 = vsel %vm1060, %v4418, %v4422
      %v4425 = vshrl.u32 %v4082, 16
      %v4427 = vrot.slane %v4425, 4
      %v4428 = vshll.u32 %v4082, 16
      %v4430 = vrot.slane %v4428, 5
      %v4431 = vor.u32 %v4427, %v4430
      %v4432 = vrot.slane %v4431, 4
      %v4434 = vshll.u32 %v4083, 16
      %v4436 = vrot.slane %v4434, 5
      %v4437 = vsel %vm1060, %v4432, %v4436
      %v4438 = vshrl.u32 %v4083, 16
      %v4440 = vrot.slane %v4438, 4
      %v4441 = vor.u32 %v4440, %v4436
      %v4442 = vrot.slane %v4441, 4
      %v4444 = vshll.u32 %v4084, 16
      %v4446 = vrot.slane %v4444, 5
      %v4447 = vsel %vm1060, %v4442, %v4446
      %v4449 = vshrl.u32 %v4085, 16
      %v4451 = vrot.slane %v4449, 4
      %v4452 = vshll.u32 %v4085, 16
      %v4454 = vrot.slane %v4452, 5
      %v4455 = vor.u32 %v4451, %v4454
      %v4456 = vrot.slane %v4455, 4
      %v4458 = vshll.u32 %v4086, 16
      %v4460 = vrot.slane %v4458, 5
      %v4461 = vsel %vm1060, %v4456, %v4460
      %v4462 = vshrl.u32 %v4086, 16
      %v4464 = vrot.slane %v4462, 4
      %v4465 = vor.u32 %v4464, %v4460
      %v4466 = vrot.slane %v4465, 4
      %v4468 = vshll.u32 %v4087, 16
      %v4470 = vrot.slane %v4468, 5
      %v4471 = vsel %vm1060, %v4466, %v4470
      %v4472 = vld [vmem:[%s3 + $0x1c0] sm:$0xf]
      %v4473 = vld [vmem:[%s3 + $0x1c4] sm:$0xf]
      %v4474 = vld [vmem:[%s3 + $0x1c8] sm:$0xf]
      %v4475 = vld [vmem:[%s3 + $0x1cc] sm:$0xf]
      %v4476 = vld [vmem:[%s3 + $0x1d0] sm:$0xf]
      %v4477 = vld [vmem:[%s3 + $0x1d4] sm:$0xf]
      %v4478 = vld [vmem:[%s3 + $0x1d8] sm:$0xf]
      %v4479 = vld [vmem:[%s3 + $0x1dc] sm:$0xf]
      %v4480 = vld [vmem:[%s3 + $0x1e0] sm:$0xf]
      %v4481 = vld [vmem:[%s3 + $0x1e4] sm:$0xf]
      %v4482 = vld [vmem:[%s3 + $0x1e8] sm:$0xf]
      %v4483 = vld [vmem:[%s3 + $0x1ec] sm:$0xf]
      %v4484 = vld [vmem:[%s3 + $0x1f0] sm:$0xf]
      %v4485 = vld [vmem:[%s3 + $0x1f4] sm:$0xf]
      %v4486 = vld [vmem:[%s3 + $0x1f8] sm:$0xf]
      %v4487 = vld [vmem:[%s3 + $0x1fc] sm:$0xf]
      %v4488 = vunpack.c.l.b16 %v4101
      %v4489 = vunpack.c.l.b16 %v4111
      %v4490 = vunpack.c.l.b16 %v4125
      %v4491 = vunpack.c.l.b16 %v4135
      %v4492 = vunpack.c.l.b16 %v4149
      %v4493 = vunpack.c.l.b16 %v4159
      %v4494 = vunpack.c.l.b16 %v4173
      %v4495 = vunpack.c.l.b16 %v4183
      %v4496 = vunpack.c.l.b16 %v4197
      %v4497 = vunpack.c.l.b16 %v4207
      %v4498 = vunpack.c.l.b16 %v4221
      %v4499 = vunpack.c.l.b16 %v4231
      %v4500 = vunpack.c.l.b16 %v4245
      %v4501 = vunpack.c.l.b16 %v4255
      %v4502 = vunpack.c.l.b16 %v4269
      %v4503 = vunpack.c.l.b16 %v4279
      %v4504 = vunpack.c.l.b16 %v4293
      %v4505 = vunpack.c.l.b16 %v4303
      %v4506 = vunpack.c.l.b16 %v4317
      %v4507 = vunpack.c.l.b16 %v4327
      %v4508 = vunpack.c.l.b16 %v4341
      %v4509 = vunpack.c.l.b16 %v4351
      %v4510 = vunpack.c.l.b16 %v4365
      %v4511 = vunpack.c.l.b16 %v4375
      %v4512 = vunpack.c.l.b16 %v4389
      %v4513 = vunpack.c.l.b16 %v4399
      %v4514 = vunpack.c.l.b16 %v4413
      %v4515 = vunpack.c.l.b16 %v4423
      %v4516 = vunpack.c.l.b16 %v4437
      %v4517 = vunpack.c.l.b16 %v4447
      %v4518 = vunpack.c.l.b16 %v4461
      %v4519 = vunpack.c.l.b16 %v4471
      %v4520 = vpack.c.b16 %v4489, %v4488
      %v4521 = vpack.c.b16 %v4491, %v4490
      %v4522 = vpack.c.b16 %v4493, %v4492
      %v4523 = vpack.c.b16 %v4495, %v4494
      %v4524 = vpack.c.b16 %v4497, %v4496
      %v4525 = vpack.c.b16 %v4499, %v4498
      %v4526 = vpack.c.b16 %v4501, %v4500
      %v4527 = vpack.c.b16 %v4503, %v4502
      %v4528 = vpack.c.b16 %v4505, %v4504
      %v4529 = vpack.c.b16 %v4507, %v4506
      %v4530 = vpack.c.b16 %v4509, %v4508
      %v4531 = vpack.c.b16 %v4511, %v4510
      %v4532 = vpack.c.b16 %v4513, %v4512
      %v4533 = vpack.c.b16 %v4515, %v4514
      %v4534 = vpack.c.b16 %v4517, %v4516
      %v4535 = vpack.c.b16 %v4519, %v4518
      %v4568 = vunpack.c.l.b16 %v4472
      %v4569 = vunpack.c.l.b16 %v4473
      %v4570 = vunpack.c.l.b16 %v4474
      %v4571 = vunpack.c.l.b16 %v4475
      %v4572 = vunpack.c.l.b16 %v4476
      %v4573 = vunpack.c.l.b16 %v4477
      %v4574 = vunpack.c.l.b16 %v4478
      %v4575 = vunpack.c.l.b16 %v4479
      %v4576 = vunpack.c.l.b16 %v4480
      %v4577 = vunpack.c.l.b16 %v4481
      %v4578 = vunpack.c.l.b16 %v4482
      %v4579 = vunpack.c.l.b16 %v4483
      %v4580 = vunpack.c.l.b16 %v4484
      %v4581 = vunpack.c.l.b16 %v4485
      %v4582 = vunpack.c.l.b16 %v4486
      %v4583 = vunpack.c.l.b16 %v4487
      %v4584 = vpack.c.b16 %v4569, %v4568
      %v4585 = vpack.c.b16 %v4571, %v4570
      %v4586 = vpack.c.b16 %v4573, %v4572
      %v4587 = vpack.c.b16 %v4575, %v4574
      %v4588 = vpack.c.b16 %v4577, %v4576
      %v4589 = vpack.c.b16 %v4579, %v4578
      %v4590 = vpack.c.b16 %v4581, %v4580
      %v4591 = vpack.c.b16 %v4583, %v4582
      %4600 = vmatpush.bf16.msra.mxu0 %v4591
      %4601 = vmatpush.bf16.msra.mxu0 %v4590
      %4602 = vmatpush.bf16.msra.mxu0 %v4589
      %4603 = vmatpush.bf16.msra.mxu0 %v4588
      %4604 = vmatpush.bf16.msra.mxu0 %v4587
      %4605 = vmatpush.bf16.msra.mxu0 %v4586
      %4606 = vmatpush.bf16.msra.mxu0 %v4585
      %4607 = vmatpush.bf16.msra.mxu0 %v4584
      %4608 = vmatmul.bf16.gmra.mxu0 %v4520
      %v4609 = vpop.f32.mrf.mxu0
      %v4610 = vadd.f32 0.0, %v4609
      %v4611 = vpop.f32.mrf.mxu0
      %v4612 = vadd.f32 0.0, %v4611
      %4613 = vmatmul.bf16.gmra.mxu0 %v4521
      %v4614 = vpop.f32.mrf.mxu0
      %v4615 = vadd.f32 0.0, %v4614
      %v4616 = vpop.f32.mrf.mxu0
      %v4617 = vadd.f32 0.0, %v4616
      %4618 = vmatmul.bf16.gmra.mxu0 %v4522
      %v4619 = vpop.f32.mrf.mxu0
      %v4620 = vadd.f32 0.0, %v4619
      %v4621 = vpop.f32.mrf.mxu0
      %v4622 = vadd.f32 0.0, %v4621
      %4623 = vmatmul.bf16.gmra.mxu0 %v4523
      %v4624 = vpop.f32.mrf.mxu0
      %v4625 = vadd.f32 0.0, %v4624
      %v4626 = vpop.f32.mrf.mxu0
      %v4627 = vadd.f32 0.0, %v4626
      %4628 = vmatmul.bf16.gmra.mxu0 %v4524
      %v4629 = vpop.f32.mrf.mxu0
      %v4630 = vadd.f32 0.0, %v4629
      %v4631 = vpop.f32.mrf.mxu0
      %v4632 = vadd.f32 0.0, %v4631
      %4633 = vmatmul.bf16.gmra.mxu0 %v4525
      %v4634 = vpop.f32.mrf.mxu0
      %v4635 = vadd.f32 0.0, %v4634
      %v4636 = vpop.f32.mrf.mxu0
      %v4637 = vadd.f32 0.0, %v4636
      %4638 = vmatmul.bf16.gmra.mxu0 %v4526
      %v4639 = vpop.f32.mrf.mxu0
      %v4640 = vadd.f32 0.0, %v4639
      %v4641 = vpop.f32.mrf.mxu0
      %v4642 = vadd.f32 0.0, %v4641
      %4643 = vmatmul.bf16.gmra.mxu0 %v4527
      %v4644 = vpop.f32.mrf.mxu0
      %v4645 = vadd.f32 0.0, %v4644
      %v4646 = vpop.f32.mrf.mxu0
      %v4647 = vadd.f32 0.0, %v4646
      %4648 = vmatmul.bf16.gmra.mxu0 %v4528
      %v4649 = vpop.f32.mrf.mxu0
      %v4650 = vadd.f32 0.0, %v4649
      %v4651 = vpop.f32.mrf.mxu0
      %v4652 = vadd.f32 0.0, %v4651
      %4653 = vmatmul.bf16.gmra.mxu0 %v4529
      %v4654 = vpop.f32.mrf.mxu0
      %v4655 = vadd.f32 0.0, %v4654
      %v4656 = vpop.f32.mrf.mxu0
      %v4657 = vadd.f32 0.0, %v4656
      %4658 = vmatmul.bf16.gmra.mxu0 %v4530
      %v4659 = vpop.f32.mrf.mxu0
      %v4660 = vadd.f32 0.0, %v4659
      %v4661 = vpop.f32.mrf.mxu0
      %v4662 = vadd.f32 0.0, %v4661
      %4663 = vmatmul.bf16.gmra.mxu0 %v4531
      %v4664 = vpop.f32.mrf.mxu0
      %v4665 = vadd.f32 0.0, %v4664
      %v4666 = vpop.f32.mrf.mxu0
      %v4667 = vadd.f32 0.0, %v4666
      %4668 = vmatmul.bf16.gmra.mxu0 %v4532
      %v4669 = vpop.f32.mrf.mxu0
      %v4670 = vadd.f32 0.0, %v4669
      %v4671 = vpop.f32.mrf.mxu0
      %v4672 = vadd.f32 0.0, %v4671
      %4673 = vmatmul.bf16.gmra.mxu0 %v4533
      %v4674 = vpop.f32.mrf.mxu0
      %v4675 = vadd.f32 0.0, %v4674
      %v4676 = vpop.f32.mrf.mxu0
      %v4677 = vadd.f32 0.0, %v4676
      %4678 = vmatmul.bf16.gmra.mxu0 %v4534
      %v4679 = vpop.f32.mrf.mxu0
      %v4680 = vadd.f32 0.0, %v4679
      %v4681 = vpop.f32.mrf.mxu0
      %v4682 = vadd.f32 0.0, %v4681
      %4683 = vmatmul.bf16.gmra.mxu0 %v4535
      %v4684 = vpop.f32.mrf.mxu0
      %v4685 = vadd.f32 0.0, %v4684
      %v4686 = vpop.f32.mrf.mxu0
      %v4687 = vadd.f32 0.0, %v4686
      %4688 = vdwg.mxu0
      %v4689 = vadd.f32 %v4008, %v4610
      %v4690 = vadd.f32 %v4009, %v4612
      %v4691 = vadd.f32 %v4010, %v4615
      %v4692 = vadd.f32 %v4011, %v4617
      %v4693 = vadd.f32 %v4012, %v4620
      %v4694 = vadd.f32 %v4013, %v4622
      %v4695 = vadd.f32 %v4014, %v4625
      %v4696 = vadd.f32 %v4015, %v4627
      %v4697 = vadd.f32 %v4016, %v4630
      %v4698 = vadd.f32 %v4017, %v4632
      %v4699 = vadd.f32 %v4018, %v4635
      %v4700 = vadd.f32 %v4019, %v4637
      %v4701 = vadd.f32 %v4020, %v4640
      %v4702 = vadd.f32 %v4021, %v4642
      %v4703 = vadd.f32 %v4022, %v4645
      %v4704 = vadd.f32 %v4023, %v4647
      %v4705 = vadd.f32 %v4024, %v4650
      %v4706 = vadd.f32 %v4025, %v4652
      %v4707 = vadd.f32 %v4026, %v4655
      %v4708 = vadd.f32 %v4027, %v4657
      %v4709 = vadd.f32 %v4028, %v4660
      %v4710 = vadd.f32 %v4029, %v4662
      %v4711 = vadd.f32 %v4030, %v4665
      %v4712 = vadd.f32 %v4031, %v4667
      %v4713 = vadd.f32 %v4032, %v4670
      %v4714 = vadd.f32 %v4033, %v4672
      %v4715 = vadd.f32 %v4034, %v4675
      %v4716 = vadd.f32 %v4035, %v4677
      %v4717 = vadd.f32 %v4036, %v4680
      %v4718 = vadd.f32 %v4037, %v4682
      %v4719 = vadd.f32 %v4038, %v4685
      %v4720 = vadd.f32 %v4039, %v4687
      %v4721 = vld [vmem:[%s3726] sm:$0xe]
      %v4722 = vld [vmem:[%s3726 + $0xc] sm:$0xe]
      %v4723 = vld [vmem:[%s3726 + $0x18] sm:$0xe]
      %v4724 = vld [vmem:[%s3726 + $0x24] sm:$0xe]
      %v4725 = vld [vmem:[%s3726 + $0x30] sm:$0xe]
      %v4726 = vld [vmem:[%s3726 + $0x3c] sm:$0xe]
      %v4727 = vld [vmem:[%s3726 + $0x48] sm:$0xe]
      %v4728 = vld [vmem:[%s3726 + $0x54] sm:$0xe]
      %v4729 = vld [vmem:[%s3726 + $0x60] sm:$0xe]
      %v4730 = vld [vmem:[%s3726 + $0x6c] sm:$0xe]
      %v4731 = vld [vmem:[%s3726 + $0x78] sm:$0xe]
      %v4732 = vld [vmem:[%s3726 + $0x84] sm:$0xe]
      %v4733 = vld [vmem:[%s3726 + $0x90] sm:$0xe]
      %v4734 = vld [vmem:[%s3726 + $0x9c] sm:$0xe]
      %v4735 = vld [vmem:[%s3726 + $0xa8] sm:$0xe]
      %v4736 = vld [vmem:[%s3726 + $0xb4] sm:$0xe]
      %v4785 = vrot.slane %v4721, 5
      %v4786 = vrot.slane %v4785, 4
      %v4787 = vrot.slane %v4041, 5
      %v4788 = vsel %vm1945, %v4786, %v4787
      %v4789 = vrot.slane %v4787, 4
      %v4790 = vrot.slane %v4042, 5
      %v4791 = vsel %vm1945, %v4789, %v4790
      %v4792 = vrot.slane %v4722, 5
      %v4793 = vrot.slane %v4792, 4
      %v4794 = vrot.slane %v4044, 5
      %v4795 = vsel %vm1945, %v4793, %v4794
      %v4796 = vrot.slane %v4794, 4
      %v4797 = vrot.slane %v4045, 5
      %v4798 = vsel %vm1945, %v4796, %v4797
      %v4799 = vrot.slane %v4723, 5
      %v4800 = vrot.slane %v4799, 4
      %v4801 = vrot.slane %v4047, 5
      %v4802 = vsel %vm1945, %v4800, %v4801
      %v4803 = vrot.slane %v4801, 4
      %v4804 = vrot.slane %v4048, 5
      %v4805 = vsel %vm1945, %v4803, %v4804
      %v4806 = vrot.slane %v4724, 5
      %v4807 = vrot.slane %v4806, 4
      %v4808 = vrot.slane %v4050, 5
      %v4809 = vsel %vm1945, %v4807, %v4808
      %v4810 = vrot.slane %v4808, 4
      %v4811 = vrot.slane %v4051, 5
      %v4812 = vsel %vm1945, %v4810, %v4811
      %v4813 = vrot.slane %v4725, 5
      %v4814 = vrot.slane %v4813, 4
      %v4815 = vrot.slane %v4053, 5
      %v4816 = vsel %vm1945, %v4814, %v4815
      %v4817 = vrot.slane %v4815, 4
      %v4818 = vrot.slane %v4054, 5
      %v4819 = vsel %vm1945, %v4817, %v4818
      %v4820 = vrot.slane %v4726, 5
      %v4821 = vrot.slane %v4820, 4
      %v4822 = vrot.slane %v4056, 5
      %v4823 = vsel %vm1945, %v4821, %v4822
      %v4824 = vrot.slane %v4822, 4
      %v4825 = vrot.slane %v4057, 5
      %v4826 = vsel %vm1945, %v4824, %v4825
      %v4827 = vrot.slane %v4727, 5
      %v4828 = vrot.slane %v4827, 4
      %v4829 = vrot.slane %v4059, 5
      %v4830 = vsel %vm1945, %v4828, %v4829
      %v4831 = vrot.slane %v4829, 4
      %v4832 = vrot.slane %v4060, 5
      %v4833 = vsel %vm1945, %v4831, %v4832
      %v4834 = vrot.slane %v4728, 5
      %v4835 = vrot.slane %v4834, 4
      %v4836 = vrot.slane %v4062, 5
      %v4837 = vsel %vm1945, %v4835, %v4836
      %v4838 = vrot.slane %v4836, 4
      %v4839 = vrot.slane %v4063, 5
      %v4840 = vsel %vm1945, %v4838, %v4839
      %v4841 = vrot.slane %v4729, 5
      %v4842 = vrot.slane %v4841, 4
      %v4843 = vrot.slane %v4065, 5
      %v4844 = vsel %vm1945, %v4842, %v4843
      %v4845 = vrot.slane %v4843, 4
      %v4846 = vrot.slane %v4066, 5
      %v4847 = vsel %vm1945, %v4845, %v4846
      %v4848 = vrot.slane %v4730, 5
      %v4849 = vrot.slane %v4848, 4
      %v4850 = vrot.slane %v4068, 5
      %v4851 = vsel %vm1945, %v4849, %v4850
      %v4852 = vrot.slane %v4850, 4
      %v4853 = vrot.slane %v4069, 5
      %v4854 = vsel %vm1945, %v4852, %v4853
      %v4855 = vrot.slane %v4731, 5
      %v4856 = vrot.slane %v4855, 4
      %v4857 = vrot.slane %v4071, 5
      %v4858 = vsel %vm1945, %v4856, %v4857
      %v4859 = vrot.slane %v4857, 4
      %v4860 = vrot.slane %v4072, 5
      %v4861 = vsel %vm1945, %v4859, %v4860
      %v4862 = vrot.slane %v4732, 5
      %v4863 = vrot.slane %v4862, 4
      %v4864 = vrot.slane %v4074, 5
      %v4865 = vsel %vm1945, %v4863, %v4864
      %v4866 = vrot.slane %v4864, 4
      %v4867 = vrot.slane %v4075, 5
      %v4868 = vsel %vm1945, %v4866, %v4867
      %v4869 = vrot.slane %v4733, 5
      %v4870 = vrot.slane %v4869, 4
      %v4871 = vrot.slane %v4077, 5
      %v4872 = vsel %vm1945, %v4870, %v4871
      %v4873 = vrot.slane %v4871, 4
      %v4874 = vrot.slane %v4078, 5
      %v4875 = vsel %vm1945, %v4873, %v4874
      %v4876 = vrot.slane %v4734, 5
      %v4877 = vrot.slane %v4876, 4
      %v4878 = vrot.slane %v4080, 5
      %v4879 = vsel %vm1945, %v4877, %v4878
      %v4880 = vrot.slane %v4878, 4
      %v4881 = vrot.slane %v4081, 5
      %v4882 = vsel %vm1945, %v4880, %v4881
      %v4883 = vrot.slane %v4735, 5
      %v4884 = vrot.slane %v4883, 4
      %v4885 = vrot.slane %v4083, 5
      %v4886 = vsel %vm1945, %v4884, %v4885
      %v4887 = vrot.slane %v4885, 4
      %v4888 = vrot.slane %v4084, 5
      %v4889 = vsel %vm1945, %v4887, %v4888
      %v4890 = vrot.slane %v4736, 5
      %v4891 = vrot.slane %v4890, 4
      %v4892 = vrot.slane %v4086, 5
      %v4893 = vsel %vm1945, %v4891, %v4892
      %v4894 = vrot.slane %v4892, 4
      %v4895 = vrot.slane %v4087, 5
      %v4896 = vsel %vm1945, %v4894, %v4895
      %v4897 = vld [vmem:[%s3 + $0x200] sm:$0xf]
      %v4898 = vld [vmem:[%s3 + $0x204] sm:$0xf]
      %v4899 = vld [vmem:[%s3 + $0x208] sm:$0xf]
      %v4900 = vld [vmem:[%s3 + $0x20c] sm:$0xf]
      %v4901 = vld [vmem:[%s3 + $0x210] sm:$0xf]
      %v4902 = vld [vmem:[%s3 + $0x214] sm:$0xf]
      %v4903 = vld [vmem:[%s3 + $0x218] sm:$0xf]
      %v4904 = vld [vmem:[%s3 + $0x21c] sm:$0xf]
      %v4905 = vld [vmem:[%s3 + $0x220] sm:$0xf]
      %v4906 = vld [vmem:[%s3 + $0x224] sm:$0xf]
      %v4907 = vld [vmem:[%s3 + $0x228] sm:$0xf]
      %v4908 = vld [vmem:[%s3 + $0x22c] sm:$0xf]
      %v4909 = vld [vmem:[%s3 + $0x230] sm:$0xf]
      %v4910 = vld [vmem:[%s3 + $0x234] sm:$0xf]
      %v4911 = vld [vmem:[%s3 + $0x238] sm:$0xf]
      %v4912 = vld [vmem:[%s3 + $0x23c] sm:$0xf]
      %v4913 = vunpack.c.l.b16 %v4788
      %v4914 = vunpack.c.l.b16 %v4791
      %v4915 = vunpack.c.l.b16 %v4795
      %v4916 = vunpack.c.l.b16 %v4798
      %v4917 = vunpack.c.l.b16 %v4802
      %v4918 = vunpack.c.l.b16 %v4805
      %v4919 = vunpack.c.l.b16 %v4809
      %v4920 = vunpack.c.l.b16 %v4812
      %v4921 = vunpack.c.l.b16 %v4816
      %v4922 = vunpack.c.l.b16 %v4819
      %v4923 = vunpack.c.l.b16 %v4823
      %v4924 = vunpack.c.l.b16 %v4826
      %v4925 = vunpack.c.l.b16 %v4830
      %v4926 = vunpack.c.l.b16 %v4833
      %v4927 = vunpack.c.l.b16 %v4837
      %v4928 = vunpack.c.l.b16 %v4840
      %v4929 = vunpack.c.l.b16 %v4844
      %v4930 = vunpack.c.l.b16 %v4847
      %v4931 = vunpack.c.l.b16 %v4851
      %v4932 = vunpack.c.l.b16 %v4854
      %v4933 = vunpack.c.l.b16 %v4858
      %v4934 = vunpack.c.l.b16 %v4861
      %v4935 = vunpack.c.l.b16 %v4865
      %v4936 = vunpack.c.l.b16 %v4868
      %v4937 = vunpack.c.l.b16 %v4872
      %v4938 = vunpack.c.l.b16 %v4875
      %v4939 = vunpack.c.l.b16 %v4879
      %v4940 = vunpack.c.l.b16 %v4882
      %v4941 = vunpack.c.l.b16 %v4886
      %v4942 = vunpack.c.l.b16 %v4889
      %v4943 = vunpack.c.l.b16 %v4893
      %v4944 = vunpack.c.l.b16 %v4896
      %v4945 = vpack.c.b16 %v4914, %v4913
      %v4946 = vpack.c.b16 %v4916, %v4915
      %v4947 = vpack.c.b16 %v4918, %v4917
      %v4948 = vpack.c.b16 %v4920, %v4919
      %v4949 = vpack.c.b16 %v4922, %v4921
      %v4950 = vpack.c.b16 %v4924, %v4923
      %v4951 = vpack.c.b16 %v4926, %v4925
      %v4952 = vpack.c.b16 %v4928, %v4927
      %v4953 = vpack.c.b16 %v4930, %v4929
      %v4954 = vpack.c.b16 %v4932, %v4931
      %v4955 = vpack.c.b16 %v4934, %v4933
      %v4956 = vpack.c.b16 %v4936, %v4935
      %v4957 = vpack.c.b16 %v4938, %v4937
      %v4958 = vpack.c.b16 %v4940, %v4939
      %v4959 = vpack.c.b16 %v4942, %v4941
      %v4960 = vpack.c.b16 %v4944, %v4943
      %v4993 = vunpack.c.l.b16 %v4897
      %v4994 = vunpack.c.l.b16 %v4898
      %v4995 = vunpack.c.l.b16 %v4899
      %v4996 = vunpack.c.l.b16 %v4900
      %v4997 = vunpack.c.l.b16 %v4901
      %v4998 = vunpack.c.l.b16 %v4902
      %v4999 = vunpack.c.l.b16 %v4903
      %v5000 = vunpack.c.l.b16 %v4904
      %v5001 = vunpack.c.l.b16 %v4905
      %v5002 = vunpack.c.l.b16 %v4906
      %v5003 = vunpack.c.l.b16 %v4907
      %v5004 = vunpack.c.l.b16 %v4908
      %v5005 = vunpack.c.l.b16 %v4909
      %v5006 = vunpack.c.l.b16 %v4910
      %v5007 = vunpack.c.l.b16 %v4911
      %v5008 = vunpack.c.l.b16 %v4912
      %v5009 = vpack.c.b16 %v4994, %v4993
      %v5010 = vpack.c.b16 %v4996, %v4995
      %v5011 = vpack.c.b16 %v4998, %v4997
      %v5012 = vpack.c.b16 %v5000, %v4999
      %v5013 = vpack.c.b16 %v5002, %v5001
      %v5014 = vpack.c.b16 %v5004, %v5003
      %v5015 = vpack.c.b16 %v5006, %v5005
      %v5016 = vpack.c.b16 %v5008, %v5007
      %5025 = vmatpush.bf16.msra.mxu0 %v5016
      %5026 = vmatpush.bf16.msra.mxu0 %v5015
      %5027 = vmatpush.bf16.msra.mxu0 %v5014
      %5028 = vmatpush.bf16.msra.mxu0 %v5013
      %5029 = vmatpush.bf16.msra.mxu0 %v5012
      %5030 = vmatpush.bf16.msra.mxu0 %v5011
      %5031 = vmatpush.bf16.msra.mxu0 %v5010
      %5032 = vmatpush.bf16.msra.mxu0 %v5009
      %5033 = vmatmul.bf16.gmra.mxu0 %v4945
      %v5034 = vpop.f32.mrf.mxu0
      %v5035 = vadd.f32 0.0, %v5034
      %v5036 = vpop.f32.mrf.mxu0
      %v5037 = vadd.f32 0.0, %v5036
      %5038 = vmatmul.bf16.gmra.mxu0 %v4946
      %v5039 = vpop.f32.mrf.mxu0
      %v5040 = vadd.f32 0.0, %v5039
      %v5041 = vpop.f32.mrf.mxu0
      %v5042 = vadd.f32 0.0, %v5041
      %5043 = vmatmul.bf16.gmra.mxu0 %v4947
      %v5044 = vpop.f32.mrf.mxu0
      %v5045 = vadd.f32 0.0, %v5044
      %v5046 = vpop.f32.mrf.mxu0
      %v5047 = vadd.f32 0.0, %v5046
      %5048 = vmatmul.bf16.gmra.mxu0 %v4948
      %v5049 = vpop.f32.mrf.mxu0
      %v5050 = vadd.f32 0.0, %v5049
      %v5051 = vpop.f32.mrf.mxu0
      %v5052 = vadd.f32 0.0, %v5051
      %5053 = vmatmul.bf16.gmra.mxu0 %v4949
      %v5054 = vpop.f32.mrf.mxu0
      %v5055 = vadd.f32 0.0, %v5054
      %v5056 = vpop.f32.mrf.mxu0
      %v5057 = vadd.f32 0.0, %v5056
      %5058 = vmatmul.bf16.gmra.mxu0 %v4950
      %v5059 = vpop.f32.mrf.mxu0
      %v5060 = vadd.f32 0.0, %v5059
      %v5061 = vpop.f32.mrf.mxu0
      %v5062 = vadd.f32 0.0, %v5061
      %5063 = vmatmul.bf16.gmra.mxu0 %v4951
      %v5064 = vpop.f32.mrf.mxu0
      %v5065 = vadd.f32 0.0, %v5064
      %v5066 = vpop.f32.mrf.mxu0
      %v5067 = vadd.f32 0.0, %v5066
      %5068 = vmatmul.bf16.gmra.mxu0 %v4952
      %v5069 = vpop.f32.mrf.mxu0
      %v5070 = vadd.f32 0.0, %v5069
      %v5071 = vpop.f32.mrf.mxu0
      %v5072 = vadd.f32 0.0, %v5071
      %5073 = vmatmul.bf16.gmra.mxu0 %v4953
      %v5074 = vpop.f32.mrf.mxu0
      %v5075 = vadd.f32 0.0, %v5074
      %v5076 = vpop.f32.mrf.mxu0
      %v5077 = vadd.f32 0.0, %v5076
      %5078 = vmatmul.bf16.gmra.mxu0 %v4954
      %v5079 = vpop.f32.mrf.mxu0
      %v5080 = vadd.f32 0.0, %v5079
      %v5081 = vpop.f32.mrf.mxu0
      %v5082 = vadd.f32 0.0, %v5081
      %5083 = vmatmul.bf16.gmra.mxu0 %v4955
      %v5084 = vpop.f32.mrf.mxu0
      %v5085 = vadd.f32 0.0, %v5084
      %v5086 = vpop.f32.mrf.mxu0
      %v5087 = vadd.f32 0.0, %v5086
      %5088 = vmatmul.bf16.gmra.mxu0 %v4956
      %v5089 = vpop.f32.mrf.mxu0
      %v5090 = vadd.f32 0.0, %v5089
      %v5091 = vpop.f32.mrf.mxu0
      %v5092 = vadd.f32 0.0, %v5091
      %5093 = vmatmul.bf16.gmra.mxu0 %v4957
      %v5094 = vpop.f32.mrf.mxu0
      %v5095 = vadd.f32 0.0, %v5094
      %v5096 = vpop.f32.mrf.mxu0
      %v5097 = vadd.f32 0.0, %v5096
      %5098 = vmatmul.bf16.gmra.mxu0 %v4958
      %v5099 = vpop.f32.mrf.mxu0
      %v5100 = vadd.f32 0.0, %v5099
      %v5101 = vpop.f32.mrf.mxu0
      %v5102 = vadd.f32 0.0, %v5101
      %5103 = vmatmul.bf16.gmra.mxu0 %v4959
      %v5104 = vpop.f32.mrf.mxu0
      %v5105 = vadd.f32 0.0, %v5104
      %v5106 = vpop.f32.mrf.mxu0
      %v5107 = vadd.f32 0.0, %v5106
      %5108 = vmatmul.bf16.gmra.mxu0 %v4960
      %v5109 = vpop.f32.mrf.mxu0
      %v5110 = vadd.f32 0.0, %v5109
      %v5111 = vpop.f32.mrf.mxu0
      %v5112 = vadd.f32 0.0, %v5111
      %5113 = vdwg.mxu0
      %v5114 = vadd.f32 %v4689, %v5035
      %v5115 = vadd.f32 %v4690, %v5037
      %v5116 = vadd.f32 %v4691, %v5040
      %v5117 = vadd.f32 %v4692, %v5042
      %v5118 = vadd.f32 %v4693, %v5045
      %v5119 = vadd.f32 %v4694, %v5047
      %v5120 = vadd.f32 %v4695, %v5050
      %v5121 = vadd.f32 %v4696, %v5052
      %v5122 = vadd.f32 %v4697, %v5055
      %v5123 = vadd.f32 %v4698, %v5057
      %v5124 = vadd.f32 %v4699, %v5060
      %v5125 = vadd.f32 %v4700, %v5062
      %v5126 = vadd.f32 %v4701, %v5065
      %v5127 = vadd.f32 %v4702, %v5067
      %v5128 = vadd.f32 %v4703, %v5070
      %v5129 = vadd.f32 %v4704, %v5072
      %v5130 = vadd.f32 %v4705, %v5075
      %v5131 = vadd.f32 %v4706, %v5077
      %v5132 = vadd.f32 %v4707, %v5080
      %v5133 = vadd.f32 %v4708, %v5082
      %v5134 = vadd.f32 %v4709, %v5085
      %v5135 = vadd.f32 %v4710, %v5087
      %v5136 = vadd.f32 %v4711, %v5090
      %v5137 = vadd.f32 %v4712, %v5092
      %v5138 = vadd.f32 %v4713, %v5095
      %v5139 = vadd.f32 %v4714, %v5097
      %v5140 = vadd.f32 %v4715, %v5100
      %v5141 = vadd.f32 %v4716, %v5102
      %v5142 = vadd.f32 %v4717, %v5105
      %v5143 = vadd.f32 %v4718, %v5107
      %v5144 = vadd.f32 %v4719, %v5110
      %v5145 = vadd.f32 %v4720, %v5112
      %v5146 = vpack.c.bf16 %v5114, %v5114
      %v5147 = vpack.c.bf16 %v5115, %v5115
      %v5148 = vpack.c.bf16 %v5116, %v5116
      %v5149 = vpack.c.bf16 %v5117, %v5117
      %v5150 = vpack.c.bf16 %v5118, %v5118
      %v5151 = vpack.c.bf16 %v5119, %v5119
      %v5152 = vpack.c.bf16 %v5120, %v5120
      %v5153 = vpack.c.bf16 %v5121, %v5121
      %v5154 = vpack.c.bf16 %v5122, %v5122
      %v5155 = vpack.c.bf16 %v5123, %v5123
      %v5156 = vpack.c.bf16 %v5124, %v5124
      %v5157 = vpack.c.bf16 %v5125, %v5125
      %v5158 = vpack.c.bf16 %v5126, %v5126
      %v5159 = vpack.c.bf16 %v5127, %v5127
      %v5160 = vpack.c.bf16 %v5128, %v5128
      %v5161 = vpack.c.bf16 %v5129, %v5129
      %v5162 = vpack.c.bf16 %v5130, %v5130
      %v5163 = vpack.c.bf16 %v5131, %v5131
      %v5164 = vpack.c.bf16 %v5132, %v5132
      %v5165 = vpack.c.bf16 %v5133, %v5133
      %v5166 = vpack.c.bf16 %v5134, %v5134
      %v5167 = vpack.c.bf16 %v5135, %v5135
      %v5168 = vpack.c.bf16 %v5136, %v5136
      %v5169 = vpack.c.bf16 %v5137, %v5137
      %v5170 = vpack.c.bf16 %v5138, %v5138
      %v5171 = vpack.c.bf16 %v5139, %v5139
      %v5172 = vpack.c.bf16 %v5140, %v5140
      %v5173 = vpack.c.bf16 %v5141, %v5141
      %v5174 = vpack.c.bf16 %v5142, %v5142
      %v5175 = vpack.c.bf16 %v5143, %v5143
      %v5176 = vpack.c.bf16 %v5144, %v5144
      %v5177 = vpack.c.bf16 %v5145, %v5145
      %5178 = vst [vmem:[%s231] sm:$0xf] %v5146
      %5179 = vst [vmem:[%s231 + $0x4] sm:$0xf] %v5147
      %5180 = vst [vmem:[%s231 + $0x8] sm:$0xf] %v5148
      %5181 = vst [vmem:[%s231 + $0xc] sm:$0xf] %v5149
      %5182 = vst [vmem:[%s231 + $0x10] sm:$0xf] %v5150
      %5183 = vst [vmem:[%s231 + $0x14] sm:$0xf] %v5151
      %5184 = vst [vmem:[%s231 + $0x18] sm:$0xf] %v5152
      %5185 = vst [vmem:[%s231 + $0x1c] sm:$0xf] %v5153
      %5186 = vst [vmem:[%s231 + $0x20] sm:$0xf] %v5154
      %5187 = vst [vmem:[%s231 + $0x24] sm:$0xf] %v5155
      %5188 = vst [vmem:[%s231 + $0x28] sm:$0xf] %v5156
      %5189 = vst [vmem:[%s231 + $0x2c] sm:$0xf] %v5157
      %5190 = vst [vmem:[%s231 + $0x30] sm:$0xf] %v5158
      %5191 = vst [vmem:[%s231 + $0x34] sm:$0xf] %v5159
      %5192 = vst [vmem:[%s231 + $0x38] sm:$0xf] %v5160
      %5193 = vst [vmem:[%s231 + $0x3c] sm:$0xf] %v5161
      %5194 = vst [vmem:[%s231 + $0x40] sm:$0xf] %v5162
      %5195 = vst [vmem:[%s231 + $0x44] sm:$0xf] %v5163
      %5196 = vst [vmem:[%s231 + $0x48] sm:$0xf] %v5164
      %5197 = vst [vmem:[%s231 + $0x4c] sm:$0xf] %v5165
      %5198 = vst [vmem:[%s231 + $0x50] sm:$0xf] %v5166
      %5199 = vst [vmem:[%s231 + $0x54] sm:$0xf] %v5167
      %5200 = vst [vmem:[%s231 + $0x58] sm:$0xf] %v5168
      %5201 = vst [vmem:[%s231 + $0x5c] sm:$0xf] %v5169
      %5202 = vst [vmem:[%s231 + $0x60] sm:$0xf] %v5170
      %5203 = vst [vmem:[%s231 + $0x64] sm:$0xf] %v5171
      %5204 = vst [vmem:[%s231 + $0x68] sm:$0xf] %v5172
      %5205 = vst [vmem:[%s231 + $0x6c] sm:$0xf] %v5173
      %5206 = vst [vmem:[%s231 + $0x70] sm:$0xf] %v5174
      %5207 = vst [vmem:[%s231 + $0x74] sm:$0xf] %v5175
      %5208 = vst [vmem:[%s231 + $0x78] sm:$0xf] %v5176
      %5209 = vst [vmem:[%s231 + $0x7c] sm:$0xf] %v5177
      %v5210 = vadd.f32 %v5114, %v5115
      %v5211 = vadd.f32 %v5210, %v5116
      %v5212 = vadd.f32 %v5211, %v5117
      %v5213 = vadd.f32 %v5212, %v5118
      %v5214 = vadd.f32 %v5213, %v5119
      %v5215 = vadd.f32 %v5214, %v5120
      %v5216 = vadd.f32 %v5215, %v5121
      %v5217 = vadd.f32 %v5216, %v5122
      %v5218 = vadd.f32 %v5217, %v5123
      %v5219 = vadd.f32 %v5218, %v5124
      %v5220 = vadd.f32 %v5219, %v5125
      %v5221 = vadd.f32 %v5220, %v5126
      %v5222 = vadd.f32 %v5221, %v5127
      %v5223 = vadd.f32 %v5222, %v5128
      %v5224 = vadd.f32 %v5223, %v5129
      %v5225 = vadd.f32 %v5224, %v5130
      %v5226 = vadd.f32 %v5225, %v5131
      %v5227 = vadd.f32 %v5226, %v5132
      %v5228 = vadd.f32 %v5227, %v5133
      %v5229 = vadd.f32 %v5228, %v5134
      %v5230 = vadd.f32 %v5229, %v5135
      %v5231 = vadd.f32 %v5230, %v5136
      %v5232 = vadd.f32 %v5231, %v5137
      %v5233 = vadd.f32 %v5232, %v5138
      %v5234 = vadd.f32 %v5233, %v5139
      %v5235 = vadd.f32 %v5234, %v5140
      %v5236 = vadd.f32 %v5235, %v5141
      %v5237 = vadd.f32 %v5236, %v5142
      %v5238 = vadd.f32 %v5237, %v5143
      %v5239 = vadd.f32 %v5238, %v5144
      %v5240 = vadd.f32 %v5239, %v5145
      %v5241 = vrot.slane %v5240, 4
      %v5242 = vadd.f32 %v5240, %v5241
      %v5243 = vrot.slane %v5242, 2
      %v5244 = vadd.f32 %v5242, %v5243
      %v5245 = vrot.slane %v5244, 1
      %v5246 = vadd.f32 %v5244, %v5245
      %v5247 = vmul.f32 %v5114, %v5114
      %v5248 = vmul.f32 %v5115, %v5115
      %v5249 = vmul.f32 %v5116, %v5116
      %v5250 = vmul.f32 %v5117, %v5117
      %v5251 = vmul.f32 %v5118, %v5118
      %v5252 = vmul.f32 %v5119, %v5119
      %v5253 = vmul.f32 %v5120, %v5120
      %v5254 = vmul.f32 %v5121, %v5121
      %v5255 = vmul.f32 %v5122, %v5122
      %v5256 = vmul.f32 %v5123, %v5123
      %v5257 = vmul.f32 %v5124, %v5124
      %v5258 = vmul.f32 %v5125, %v5125
      %v5259 = vmul.f32 %v5126, %v5126
      %v5260 = vmul.f32 %v5127, %v5127
      %v5261 = vmul.f32 %v5128, %v5128
      %v5262 = vmul.f32 %v5129, %v5129
      %v5263 = vmul.f32 %v5130, %v5130
      %v5264 = vmul.f32 %v5131, %v5131
      %v5265 = vmul.f32 %v5132, %v5132
      %v5266 = vmul.f32 %v5133, %v5133
      %v5267 = vmul.f32 %v5134, %v5134
      %v5268 = vmul.f32 %v5135, %v5135
      %v5269 = vmul.f32 %v5136, %v5136
      %v5270 = vmul.f32 %v5137, %v5137
      %v5271 = vmul.f32 %v5138, %v5138
      %v5272 = vmul.f32 %v5139, %v5139
      %v5273 = vmul.f32 %v5140, %v5140
      %v5274 = vmul.f32 %v5141, %v5141
      %v5275 = vmul.f32 %v5142, %v5142
      %v5276 = vmul.f32 %v5143, %v5143
      %v5277 = vmul.f32 %v5144, %v5144
      %v5278 = vmul.f32 %v5145, %v5145
      %v5279 = vadd.f32 %v5247, %v5248
      %v5280 = vadd.f32 %v5279, %v5249
      %v5281 = vadd.f32 %v5280, %v5250
      %v5282 = vadd.f32 %v5281, %v5251
      %v5283 = vadd.f32 %v5282, %v5252
      %v5284 = vadd.f32 %v5283, %v5253
      %v5285 = vadd.f32 %v5284, %v5254
      %v5286 = vadd.f32 %v5285, %v5255
      %v5287 = vadd.f32 %v5286, %v5256
      %v5288 = vadd.f32 %v5287, %v5257
      %v5289 = vadd.f32 %v5288, %v5258
      %v5290 = vadd.f32 %v5289, %v5259
      %v5291 = vadd.f32 %v5290, %v5260
      %v5292 = vadd.f32 %v5291, %v5261
      %v5293 = vadd.f32 %v5292, %v5262
      %v5294 = vadd.f32 %v5293, %v5263
      %v5295 = vadd.f32 %v5294, %v5264
      %v5296 = vadd.f32 %v5295, %v5265
      %v5297 = vadd.f32 %v5296, %v5266
      %v5298 = vadd.f32 %v5297, %v5267
      %v5299 = vadd.f32 %v5298, %v5268
      %v5300 = vadd.f32 %v5299, %v5269
      %v5301 = vadd.f32 %v5300, %v5270
      %v5302 = vadd.f32 %v5301, %v5271
      %v5303 = vadd.f32 %v5302, %v5272
      %v5304 = vadd.f32 %v5303, %v5273
      %v5305 = vadd.f32 %v5304, %v5274
      %v5306 = vadd.f32 %v5305, %v5275
      %v5307 = vadd.f32 %v5306, %v5276
      %v5308 = vadd.f32 %v5307, %v5277
      %v5309 = vadd.f32 %v5308, %v5278
      %v5310 = vrot.slane %v5309, 4
      %v5311 = vadd.f32 %v5309, %v5310
      %v5312 = vrot.slane %v5311, 2
      %v5313 = vadd.f32 %v5311, %v5312
      %v5314 = vrot.slane %v5313, 1
      %v5315 = vadd.f32 %v5313, %v5314
      %v5318 = vrot.slane %v5315, 7
      %vm5319 = vcmask 1040384
      %v5320 = vsel %vm5319, %v5246, %v5318
      %v5322 = vlaneseq
      %vm5323 = vcmp.ge.s32.totalorder %v5322, 0
      %vm5324 = vcmp.lt.s32.totalorder %v5322, 256
      %vm5325 = vmand %vm5323, %vm5324
      %5326 = vst.msk [vmem:[%s235] sm:$0x3] %vm5325, %v5320
      %p5327 = scmp.lt.s32.totalorder %s17, 1
      %s5328 = scalar_select %p5327, %s17, 1
      %s5329 = smul.addr %s5328, 32
      %s5330 = smul.addr %s5329, 4
      %s5331 = scalar_lea.vmem %s4, %s5330
      %p5332 = scmp.lt.s32.totalorder %s17, 1
      %s5333 = scalar_select %p5332, %s17, 1
      %s5334 = smul.addr %s5333, 2
      %s5335 = scalar_lea.vmem %s5, %s5334
      // Predicated region
      $region37: #{bottleneck_forward.5} parent=35 // pred_check
        %p5336 = pneg %p124
      $region38: #{bottleneck_forward.5} parent=35 // pred_check_branch
        %5338 = sbr.rel (%p5336) target = $region40
      $region39: #{bottleneck_forward.5} parent=35 // pred_region
        _
      $region40: #{bottleneck_forward.5} parent=35 // pred_fallthru
        _
      // Predicated region
      $region41: #{bottleneck_forward.5} parent=35 // pred_check
        %p5339 = pneg %p150
      $region42: #{bottleneck_forward.5} parent=35 // pred_check_branch
        %5341 = sbr.rel (%p5339) target = $region44
      $region43: #{bottleneck_forward.5} parent=35 // pred_region
        _
      $region44: #{bottleneck_forward.5} parent=35 // pred_fallthru
        _
    $region36: #{bottleneck_forward.5} parent=5 // pred_fallthru
      _
    %p5342 = scmp.le.s32.totalorder 2, %s12
    // Predicated region
    $region45: #{bottleneck_forward.5} parent=5 // pred_check
      %p5343 = pneg %p5342
    $region46: #{bottleneck_forward.5} parent=5 // pred_check_branch
      %5345 = sbr.rel (%p5343) target = $region48
    $region47: #{bottleneck_forward.5} parent=5 // pred_region
      %s5346 = ssub.s32 %s12, 2
      // Predicated region
      $region49: #{bottleneck_forward.5} parent=47 // pred_check
        %p5347 = pneg %p130
      $region50: #{bottleneck_forward.5} parent=47 // pred_check_branch
        %5349 = sbr.rel (%p5347) target = $region52
      $region51: #{bottleneck_forward.5} parent=47 // pred_region
        %p5350 = scmp.lt.s32.totalorder %s18, 1
        %s5351 = scalar_select %p5350, %s18, 1
        %s5352 = smul.addr %s5351, 32
        %s5353 = smul.addr %s5352, 4
        %s5354 = scalar_lea.vmem %s4, %s5353
      $region52: #{bottleneck_forward.5} parent=47 // pred_fallthru
        _
      // Predicated region
      $region53: #{bottleneck_forward.5} parent=47 // pred_check
        %p5355 = pneg %p156
      $region54: #{bottleneck_forward.5} parent=47 // pred_check_branch
        %5357 = sbr.rel (%p5355) target = $region56
      $region55: #{bottleneck_forward.5} parent=47 // pred_region
        %p5358 = scmp.lt.s32.totalorder %s18, 1
        %s5359 = scalar_select %p5358, %s18, 1
        %s5360 = smul.addr %s5359, 2
        %s5361 = scalar_lea.vmem %s5, %s5360
      $region56: #{bottleneck_forward.5} parent=47 // pred_fallthru
        _
    $region48: #{bottleneck_forward.5} parent=5 // pred_fallthru
      _
  $region6: #{bottleneck_forward.5} parent=0 // loop_footer
    %s16 = sadd.s32 1, %s12
  $region7: #{bottleneck_forward.5} parent=0 // loop_footer_branch
    %11 = sbr.rel target = $region3
  $region8: #{bottleneck_forward.5} parent=0 // loop_exit
    _

</llo_original>
